<compile_context>
chip_gen: v7x
topology: tpu7x:2x2x1
jax: 0.10.0
libtpu: 0.0.40
codegen_flags: <defaults>
</compile_context>

<pallas_src>
import functools

import jax
import jax.numpy as jnp
from jax.experimental import pallas as pl
from jax.experimental.pallas import tpu as pltpu

EPS = 1e-5


def _round_up(v, m):
    return (v + m - 1) // m * m


# ----------------------------------------------------------------------------
# Train-mode BatchNorm + ReLU on an (M, C) matrix — single-pass statistics.
# ----------------------------------------------------------------------------
def _bn_relu(y, gamma, beta, m_rows):
    inv_m = 1.0 / float(m_rows)
    s = jnp.sum(y, axis=0, keepdims=True)
    ss = jnp.sum(y * y, axis=0, keepdims=True)            # one read of y for both
    mean = s * inv_m
    var = jnp.maximum(ss * inv_m - mean * mean, 0.0)       # biased (train) variance
    yn = (y - mean) * jax.lax.rsqrt(var + EPS)
    return jnp.maximum(yn * gamma + beta, 0.0)


# ----------------------------------------------------------------------------
# Fused down2 kernel.
# ----------------------------------------------------------------------------
def _down2_fused_kernel(
    x_ref,      # (N, H, W, Cin)        NHWC input
    wp_ref,     # (R, Cmax)             packed conv weights, 8-row-aligned blocks
    gb_ref,     # (8, Cmax)             rows 0-3 = gamma1..4, rows 4-7 = beta1..4
    o_ref,      # (N, out_ch, Ho*Wo)    channel-major (NCHW-flat) output
    pad_ref,    # VMEM (N, Ho+2, Wo+2, int_ch) padded h1 scratch
    *, N, H, W, Cin, int_ch, out_ch, w_offs,
):
    Ho, Wo = H // 2, W // 2
    M = N * Ho * Wo

    # ---- MaxPool2d(2): strided sublane reads for W pairs, free reshape for H
    xw = jnp.maximum(x_ref[:, :, pl.ds(0, Wo, stride=2), :],
                     x_ref[:, :, pl.ds(1, Wo, stride=2), :])        # (N, H, Wo, Cin)
    xh = xw.reshape(N, Ho, 2, Wo, Cin)                              # splits outer dim
    h0 = jnp.maximum(xh[:, :, 0], xh[:, :, 1]).reshape(M, Cin)      # rows = (n,ho,wo)

    # ---- conv[0]: 1x1 -> int_ch, BN(train), ReLU (conv bias cancelled by BN)
    w1 = wp_ref[w_offs[0]:w_offs[0] + Cin, 0:int_ch]
    y1 = jnp.dot(h0, w1, preferred_element_type=jnp.float32)
    y1 = _bn_relu(y1, gb_ref[0:1, 0:int_ch], gb_ref[4:5, 0:int_ch], M)

    # ---- conv[3]: deformable 3x3 (zero offsets == plain 3x3), padding=1 ----
    # Zero only the 1-px halo, write the interior once, then 9 tap matmuls
    # accumulated in registers (no im2col scratch, no padded patch reload).
    zr = jnp.zeros((N, 1, Wo + 2, int_ch), jnp.float32)
    zc = jnp.zeros((N, Ho + 2, 1, int_ch), jnp.float32)
    pad_ref[:, 0:1, :, :] = zr
    pad_ref[:, Ho + 1:Ho + 2, :, :] = zr
    pad_ref[:, :, 0:1, :] = zc
    pad_ref[:, :, Wo + 1:Wo + 2, :] = zc
    pad_ref[:, 1:Ho + 1, 1:Wo + 1, :] = y1.reshape(N, Ho, Wo, int_ch)

    y2 = None
    for t in range(9):
        dy, dx = divmod(t, 3)
        tap = pad_ref[:, dy:dy + Ho, dx:dx + Wo, :].reshape(M, int_ch)
        w2t = wp_ref[w_offs[1 + t]:w_offs[1 + t] + int_ch, 0:int_ch]
        d = jnp.dot(tap, w2t, preferred_element_type=jnp.float32)
        y2 = d if y2 is None else y2 + d
    y2 = _bn_relu(y2, gb_ref[1:2, 0:int_ch], gb_ref[5:6, 0:int_ch], M)

    # ---- conv[6]: 1x1 -> channels, BN, ReLU --------------------------------
    w3 = wp_ref[w_offs[10]:w_offs[10] + int_ch, 0:Cin]
    y3 = jnp.dot(y2, w3, preferred_element_type=jnp.float32)
    y3 = _bn_relu(y3, gb_ref[2:3, 0:Cin], gb_ref[6:7, 0:Cin], M)

    # ---- residual add + adjust 1x1 -> out_ch, BN, ReLU ---------------------
    w4 = wp_ref[w_offs[11]:w_offs[11] + Cin, 0:out_ch]
    y4 = jnp.dot(y3 + h0, w4, preferred_element_type=jnp.float32)
    y4 = _bn_relu(y4, gb_ref[3:4, 0:out_ch], gb_ref[7:8, 0:out_ch], M)

    # ---- channel-major output slab (lane dim = Ho*Wo); wrapper just reshapes
    o_ref[...] = jnp.transpose(y4.reshape(N, Ho * Wo, out_ch), (0, 2, 1))


# ----------------------------------------------------------------------------
# Operand packing (17 operands -> 3) and the wrapper.
# ----------------------------------------------------------------------------
def _pack_weights(p, Cin, int_ch, out_ch):
    blocks = [p["w1"]]
    blocks += [p["w2"][dy, dx] for dy in range(3) for dx in range(3)]
    blocks += [p["w3"], p["w4"]]
    cmax = max(int_ch, Cin, out_ch)
    offs, rows, padded = [], 0, []
    for b in blocks:
        offs.append(rows)
        r = _round_up(b.shape[0], 8)                 # 8-aligned sublane offsets
        pb = jnp.zeros((r, cmax), jnp.float32).at[:b.shape[0], :b.shape[1]].set(b)
        padded.append(pb)
        rows += r
    return jnp.concatenate(padded, axis=0), tuple(offs)


def _pack_gammas_betas(p, Cin, int_ch, out_ch):
    cmax = max(int_ch, Cin, out_ch)

    def row(v):
        return jnp.zeros((1, cmax), jnp.float32).at[:, :v.shape[1]].set(v)

    keys = ("g1", "g2", "g3", "g4", "be1", "be2", "be3", "be4")
    return jnp.concatenate([row(p[k]) for k in keys], axis=0)       # (8, cmax)


def down2_forward(x_nchw, p):
    N, Cin, H, W = x_nchw.shape
    assert H % 2 == 0 and W % 2 == 0, "MaxPool2d(2) path assumes even H and W"
    Ho, Wo = H // 2, W // 2
    int_ch = p["w1"].shape[1]
    out_ch = p["w4"].shape[1]

    # Single remaining boundary layout op (PyTorch NCHW -> channels-last).
    x_nhwc = jnp.transpose(x_nchw, (0, 2, 3, 1))

    w_pack, w_offs = _pack_weights(p, Cin, int_ch, out_ch)
    gb_pack = _pack_gammas_betas(p, Cin, int_ch, out_ch)

    kernel = functools.partial(
        _down2_fused_kernel,
        N=N, H=H, W=W, Cin=Cin, int_ch=int_ch, out_ch=out_ch, w_offs=w_offs)

    y = pl.pallas_call(
        kernel,
        out_shape=jax.ShapeDtypeStruct((N, out_ch, Ho * Wo), jnp.float32),
        scratch_shapes=[
            pltpu.VMEM((N, Ho + 2, Wo + 2, int_ch), jnp.float32),   # padded h1
        ],
    )(x_nhwc, w_pack, gb_pack)

    # Free reshape only — no output transpose launch.
    return y.reshape(N, out_ch, Ho, Wo)


# ----------------------------------------------------------------------------
# Deterministic parameters and a pure-JAX reference (keeps the conv biases,
# faithful to the PyTorch module) for validation.
# ----------------------------------------------------------------------------
def make_params(key, in_ch, out_ch):
    int_ch = in_ch // 2
    ks = jax.random.split(key, 16)

    def conv1x1_p(kw, kb, cin, cout):
        return (0.1 * jax.random.normal(kw, (cin, cout), jnp.float32),
                0.1 * jax.random.normal(kb, (1, cout), jnp.float32))

    def bn_p(kg, kb, c):
        return (1.0 + 0.1 * jax.random.normal(kg, (1, c), jnp.float32),
                0.1 * jax.random.normal(kb, (1, c), jnp.float32))

    p = {}
    p["w1"], p["b1"] = conv1x1_p(ks[0], ks[1], in_ch, int_ch)        # conv[0]
    p["g1"], p["be1"] = bn_p(ks[2], ks[3], int_ch)
    p["w2"] = 0.1 * jax.random.normal(ks[4], (3, 3, int_ch, int_ch), jnp.float32)
    p["b2"] = 0.1 * jax.random.normal(ks[5], (1, int_ch), jnp.float32)  # deform conv
    p["g2"], p["be2"] = bn_p(ks[6], ks[7], int_ch)
    p["w3"], p["b3"] = conv1x1_p(ks[8], ks[9], int_ch, in_ch)        # conv[6]
    p["g3"], p["be3"] = bn_p(ks[10], ks[11], in_ch)
    p["w4"], p["b4"] = conv1x1_p(ks[12], ks[13], in_ch, out_ch)      # adjust conv
    p["g4"], p["be4"] = bn_p(ks[14], ks[15], out_ch)
    return p


def _ref_forward(x_nchw, p):
    """Pure-JAX (non-Pallas) reference with the original module's math
    (including the conv biases that train-mode BN cancels)."""
    hp = jax.lax.Precision.HIGHEST
    x = jnp.transpose(x_nchw, (0, 2, 3, 1))
    N, H, W, C = x.shape
    Ho, Wo = H // 2, W // 2
    h0 = jnp.max(x.reshape(N, Ho, 2, Wo, 2, C), axis=(2, 4))

    def bn_relu(y, g, b):
        mean = jnp.mean(y, axis=(0, 1, 2), keepdims=True)
        var = jnp.mean(jnp.square(y - mean), axis=(0, 1, 2), keepdims=True)
        return jnp.maximum((y - mean) * jax.lax.rsqrt(var + EPS) * g + b, 0.0)

    def conv1x1(y, w, b):
        return jnp.einsum("nhwc,co->nhwo", y, w, precision=hp) + b

    h1 = bn_relu(conv1x1(h0, p["w1"], p["b1"][0]), p["g1"][0], p["be1"][0])
    h1p = jnp.pad(h1, ((0, 0), (1, 1), (1, 1), (0, 0)))
    h2 = sum(jnp.einsum("nhwc,co->nhwo", h1p[:, dy:dy + Ho, dx:dx + Wo, :],
                        p["w2"][dy, dx], precision=hp)
             for dy in range(3) for dx in range(3)) + p["b2"][0]
    h2 = bn_relu(h2, p["g2"][0], p["be2"][0])
    h3 = bn_relu(conv1x1(h2, p["w3"], p["b3"][0]), p["g3"][0], p["be3"][0])
    out = bn_relu(conv1x1(h3 + h0, p["w4"], p["b4"][0]), p["g4"][0], p["be4"][0])
    return jnp.transpose(out, (0, 3, 1, 2))


if __name__ == "__main__":
    key = jax.random.PRNGKey(0)
    k_x, k_p = jax.random.split(key)

    N, in_ch, H, W = 2, 8, 16, 16
    out_ch = 16
    x = jax.random.normal(k_x, (N, in_ch, H, W), jnp.float32)        # PyTorch NCHW
    params = make_params(k_p, in_ch, out_ch)

    y = jax.block_until_ready(down2_forward(x, params))
    assert y.shape == (N, out_ch, H // 2, W // 2), y.shape
    assert bool(jnp.all(jnp.isfinite(y)))

    y_ref = jax.block_until_ready(_ref_forward(x, params))
    err = float(jnp.max(jnp.abs(y - y_ref)))
    assert jnp.allclose(y, y_ref, atol=1e-3, rtol=1e-3), err

    print("KERNEL_OK")
</pallas_src>

<mosaic_0001>
module attributes {stable_mosaic.version = 11 : i64} {
  func.func @_down2_fused_kernel(%arg0: memref<2x16x16x8xf32, #tpu.memory_space<vmem>>, %arg1: memref<96x16xf32, #tpu.memory_space<vmem>>, %arg2: memref<8x16xf32, #tpu.memory_space<vmem>>, %arg3: memref<2x16x64xf32, #tpu.memory_space<vmem>>, %arg4: memref<2x10x10x4xf32, #tpu.memory_space<vmem>>) attributes {dimension_semantics = [], scalar_prefetch = 0 : i64, scratch_operands = 1 : i64, tpu.core_type = #tpu.core_type<tc>} {
    %c0 = arith.constant 0 : index
    %c0_0 = arith.constant 0 : index
    %c0_1 = arith.constant 0 : index
    %c0_2 = arith.constant 0 : index
    %0 = tpu.strided_load %arg0[%c0, %c0_0, %c0_1, %c0_2] {strides = array<i32: 1, 1, 2, 1>} : memref<2x16x16x8xf32, #tpu.memory_space<vmem>>, vector<2x16x8x8xf32>
    %c0_3 = arith.constant 0 : index
    %c0_4 = arith.constant 0 : index
    %c1 = arith.constant 1 : index
    %c0_5 = arith.constant 0 : index
    %1 = tpu.strided_load %arg0[%c0_3, %c0_4, %c1, %c0_5] {strides = array<i32: 1, 1, 2, 1>} : memref<2x16x16x8xf32, #tpu.memory_space<vmem>>, vector<2x16x8x8xf32>
    %2 = arith.maximumf %0, %1 : vector<2x16x8x8xf32>
    %3 = vector.shape_cast %2 : vector<2x16x8x8xf32> to vector<2x8x2x8x8xf32>
    %4 = vector.extract_strided_slice %3 {offsets = [0, 0, 0, 0, 0], sizes = [2, 8, 1, 8, 8], strides = [1, 1, 1, 1, 1]} : vector<2x8x2x8x8xf32> to vector<2x8x1x8x8xf32>
    %5 = vector.shape_cast %4 : vector<2x8x1x8x8xf32> to vector<2x8x8x8xf32>
    %6 = vector.extract_strided_slice %3 {offsets = [0, 0, 1, 0, 0], sizes = [2, 8, 1, 8, 8], strides = [1, 1, 1, 1, 1]} : vector<2x8x2x8x8xf32> to vector<2x8x1x8x8xf32>
    %7 = vector.shape_cast %6 : vector<2x8x1x8x8xf32> to vector<2x8x8x8xf32>
    %8 = arith.maximumf %5, %7 : vector<2x8x8x8xf32>
    %9 = vector.shape_cast %8 : vector<2x8x8x8xf32> to vector<128x8xf32>
    %c0_6 = arith.constant 0 : index
    %c0_7 = arith.constant 0 : index
    %10 = vector.load %arg1[%c0_6, %c0_7] : memref<96x16xf32, #tpu.memory_space<vmem>>, vector<8x4xf32>
    %cst = arith.constant dense<0.000000e+00> : vector<128x4xf32>
    %11 = tpu.matmul %9, %10, %cst {dimension_numbers = #tpu.dot_dimension_numbers<[1], [0], [0], [1], [0, 0, 1, 1], [], []>} : vector<128x8xf32>, vector<8x4xf32>, vector<128x4xf32> -> vector<128x4xf32>
    %c0_8 = arith.constant 0 : index
    %c0_9 = arith.constant 0 : index
    %12 = vector.load %arg2[%c0_8, %c0_9] : memref<8x16xf32, #tpu.memory_space<vmem>>, vector<1x4xf32>
    %c4 = arith.constant 4 : index
    %c0_10 = arith.constant 0 : index
    %13 = vector.load %arg2[%c4, %c0_10] : memref<8x16xf32, #tpu.memory_space<vmem>>, vector<1x4xf32>
    %cst_11 = arith.constant dense<0.000000e+00> : vector<4xf32>
    %14 = vector.multi_reduction <add>, %11, %cst_11 [0] : vector<128x4xf32> to vector<4xf32>
    %15 = vector.shape_cast %14 : vector<4xf32> to vector<1x4xf32>
    %16 = arith.mulf %11, %11 : vector<128x4xf32>
    %cst_12 = arith.constant dense<0.000000e+00> : vector<4xf32>
    %17 = vector.multi_reduction <add>, %16, %cst_12 [0] : vector<128x4xf32> to vector<4xf32>
    %18 = vector.shape_cast %17 : vector<4xf32> to vector<1x4xf32>
    %cst_13 = arith.constant 7.812500e-03 : f32
    %19 = vector.broadcast %cst_13 : f32 to vector<1x4xf32>
    %20 = arith.mulf %15, %19 : vector<1x4xf32>
    %cst_14 = arith.constant 7.812500e-03 : f32
    %21 = vector.broadcast %cst_14 : f32 to vector<1x4xf32>
    %22 = arith.mulf %18, %21 : vector<1x4xf32>
    %23 = arith.mulf %20, %20 : vector<1x4xf32>
    %24 = arith.subf %22, %23 : vector<1x4xf32>
    %cst_15 = arith.constant 0.000000e+00 : f32
    %25 = vector.broadcast %cst_15 : f32 to vector<1x4xf32>
    %26 = arith.maximumf %24, %25 : vector<1x4xf32>
    %27 = vector.broadcast %20 : vector<1x4xf32> to vector<128x4xf32>
    %28 = arith.subf %11, %27 : vector<128x4xf32>
    %cst_16 = arith.constant 9.99999974E-6 : f32
    %29 = vector.broadcast %cst_16 : f32 to vector<1x4xf32>
    %30 = arith.addf %26, %29 : vector<1x4xf32>
    %31 = math.rsqrt %30 : vector<1x4xf32>
    %32 = vector.broadcast %31 : vector<1x4xf32> to vector<128x4xf32>
    %33 = arith.mulf %28, %32 : vector<128x4xf32>
    %34 = vector.broadcast %12 : vector<1x4xf32> to vector<128x4xf32>
    %35 = arith.mulf %33, %34 : vector<128x4xf32>
    %36 = vector.broadcast %13 : vector<1x4xf32> to vector<128x4xf32>
    %37 = arith.addf %35, %36 : vector<128x4xf32>
    %cst_17 = arith.constant 0.000000e+00 : f32
    %38 = vector.broadcast %cst_17 : f32 to vector<128x4xf32>
    %39 = arith.maximumf %37, %38 : vector<128x4xf32>
    %cst_18 = arith.constant 0.000000e+00 : f32
    %40 = vector.broadcast %cst_18 : f32 to vector<2x1x10x4xf32>
    %cst_19 = arith.constant 0.000000e+00 : f32
    %41 = vector.broadcast %cst_19 : f32 to vector<2x10x1x4xf32>
    %c0_20 = arith.constant 0 : index
    %c0_21 = arith.constant 0 : index
    %c0_22 = arith.constant 0 : index
    %c0_23 = arith.constant 0 : index
    %42 = vector.load %arg4[%c0_20, %c0_21, %c0_22, %c0_23] : memref<2x10x10x4xf32, #tpu.memory_space<vmem>>, vector<2x1x10x4xf32>
    tpu.vector_store %arg4[%c0_20, %c0_21, %c0_22, %c0_23], %40 {strides = array<i32>} : memref<2x10x10x4xf32, #tpu.memory_space<vmem>>, vector<2x1x10x4xf32>,
    %c0_24 = arith.constant 0 : index
    %c9 = arith.constant 9 : index
    %c0_25 = arith.constant 0 : index
    %c0_26 = arith.constant 0 : index
    %43 = vector.load %arg4[%c0_24, %c9, %c0_25, %c0_26] : memref<2x10x10x4xf32, #tpu.memory_space<vmem>>, vector<2x1x10x4xf32>
    tpu.vector_store %arg4[%c0_24, %c9, %c0_25, %c0_26], %40 {strides = array<i32>} : memref<2x10x10x4xf32, #tpu.memory_space<vmem>>, vector<2x1x10x4xf32>,
    %c0_27 = arith.constant 0 : index
    %c0_28 = arith.constant 0 : index
    %c0_29 = arith.constant 0 : index
    %c0_30 = arith.constant 0 : index
    %44 = vector.load %arg4[%c0_27, %c0_28, %c0_29, %c0_30] : memref<2x10x10x4xf32, #tpu.memory_space<vmem>>, vector<2x10x1x4xf32>
    tpu.vector_store %arg4[%c0_27, %c0_28, %c0_29, %c0_30], %41 {strides = array<i32>} : memref<2x10x10x4xf32, #tpu.memory_space<vmem>>, vector<2x10x1x4xf32>,
    %c0_31 = arith.constant 0 : index
    %c0_32 = arith.constant 0 : index
    %c9_33 = arith.constant 9 : index
    %c0_34 = arith.constant 0 : index
    %45 = vector.load %arg4[%c0_31, %c0_32, %c9_33, %c0_34] : memref<2x10x10x4xf32, #tpu.memory_space<vmem>>, vector<2x10x1x4xf32>
    tpu.vector_store %arg4[%c0_31, %c0_32, %c9_33, %c0_34], %41 {strides = array<i32>} : memref<2x10x10x4xf32, #tpu.memory_space<vmem>>, vector<2x10x1x4xf32>,
    %46 = vector.shape_cast %39 : vector<128x4xf32> to vector<2x8x8x4xf32>
    %c0_35 = arith.constant 0 : index
    %c1_36 = arith.constant 1 : index
    %c1_37 = arith.constant 1 : index
    %c0_38 = arith.constant 0 : index
    %47 = vector.load %arg4[%c0_35, %c1_36, %c1_37, %c0_38] : memref<2x10x10x4xf32, #tpu.memory_space<vmem>>, vector<2x8x8x4xf32>
    tpu.vector_store %arg4[%c0_35, %c1_36, %c1_37, %c0_38], %46 {strides = array<i32>} : memref<2x10x10x4xf32, #tpu.memory_space<vmem>>, vector<2x8x8x4xf32>,
    %c0_39 = arith.constant 0 : index
    %c0_40 = arith.constant 0 : index
    %c0_41 = arith.constant 0 : index
    %c0_42 = arith.constant 0 : index
    %48 = vector.load %arg4[%c0_39, %c0_40, %c0_41, %c0_42] : memref<2x10x10x4xf32, #tpu.memory_space<vmem>>, vector<2x8x8x4xf32>
    %49 = vector.shape_cast %48 : vector<2x8x8x4xf32> to vector<128x4xf32>
    %c8 = arith.constant 8 : index
    %c0_43 = arith.constant 0 : index
    %50 = vector.load %arg1[%c8, %c0_43] : memref<96x16xf32, #tpu.memory_space<vmem>>, vector<4x4xf32>
    %cst_44 = arith.constant dense<0.000000e+00> : vector<128x4xf32>
    %51 = tpu.matmul %49, %50, %cst_44 {dimension_numbers = #tpu.dot_dimension_numbers<[1], [0], [0], [1], [0, 0, 1, 1], [], []>} : vector<128x4xf32>, vector<4x4xf32>, vector<128x4xf32> -> vector<128x4xf32>
    %c0_45 = arith.constant 0 : index
    %c0_46 = arith.constant 0 : index
    %c1_47 = arith.constant 1 : index
    %c0_48 = arith.constant 0 : index
    %52 = vector.load %arg4[%c0_45, %c0_46, %c1_47, %c0_48] : memref<2x10x10x4xf32, #tpu.memory_space<vmem>>, vector<2x8x8x4xf32>
    %53 = vector.shape_cast %52 : vector<2x8x8x4xf32> to vector<128x4xf32>
    %c16 = arith.constant 16 : index
    %c0_49 = arith.constant 0 : index
    %54 = vector.load %arg1[%c16, %c0_49] : memref<96x16xf32, #tpu.memory_space<vmem>>, vector<4x4xf32>
    %cst_50 = arith.constant dense<0.000000e+00> : vector<128x4xf32>
    %55 = tpu.matmul %53, %54, %cst_50 {dimension_numbers = #tpu.dot_dimension_numbers<[1], [0], [0], [1], [0, 0, 1, 1], [], []>} : vector<128x4xf32>, vector<4x4xf32>, vector<128x4xf32> -> vector<128x4xf32>
    %56 = arith.addf %51, %55 : vector<128x4xf32>
    %c0_51 = arith.constant 0 : index
    %c0_52 = arith.constant 0 : index
    %c2 = arith.constant 2 : index
    %c0_53 = arith.constant 0 : index
    %57 = vector.load %arg4[%c0_51, %c0_52, %c2, %c0_53] : memref<2x10x10x4xf32, #tpu.memory_space<vmem>>, vector<2x8x8x4xf32>
    %58 = vector.shape_cast %57 : vector<2x8x8x4xf32> to vector<128x4xf32>
    %c24 = arith.constant 24 : index
    %c0_54 = arith.constant 0 : index
    %59 = vector.load %arg1[%c24, %c0_54] : memref<96x16xf32, #tpu.memory_space<vmem>>, vector<4x4xf32>
    %cst_55 = arith.constant dense<0.000000e+00> : vector<128x4xf32>
    %60 = tpu.matmul %58, %59, %cst_55 {dimension_numbers = #tpu.dot_dimension_numbers<[1], [0], [0], [1], [0, 0, 1, 1], [], []>} : vector<128x4xf32>, vector<4x4xf32>, vector<128x4xf32> -> vector<128x4xf32>
    %61 = arith.addf %56, %60 : vector<128x4xf32>
    %c0_56 = arith.constant 0 : index
    %c1_57 = arith.constant 1 : index
    %c0_58 = arith.constant 0 : index
    %c0_59 = arith.constant 0 : index
    %62 = vector.load %arg4[%c0_56, %c1_57, %c0_58, %c0_59] : memref<2x10x10x4xf32, #tpu.memory_space<vmem>>, vector<2x8x8x4xf32>
    %63 = vector.shape_cast %62 : vector<2x8x8x4xf32> to vector<128x4xf32>
    %c32 = arith.constant 32 : index
    %c0_60 = arith.constant 0 : index
    %64 = vector.load %arg1[%c32, %c0_60] : memref<96x16xf32, #tpu.memory_space<vmem>>, vector<4x4xf32>
    %cst_61 = arith.constant dense<0.000000e+00> : vector<128x4xf32>
    %65 = tpu.matmul %63, %64, %cst_61 {dimension_numbers = #tpu.dot_dimension_numbers<[1], [0], [0], [1], [0, 0, 1, 1], [], []>} : vector<128x4xf32>, vector<4x4xf32>, vector<128x4xf32> -> vector<128x4xf32>
    %66 = arith.addf %61, %65 : vector<128x4xf32>
    %c0_62 = arith.constant 0 : index
    %c1_63 = arith.constant 1 : index
    %c1_64 = arith.constant 1 : index
    %c0_65 = arith.constant 0 : index
    %67 = vector.load %arg4[%c0_62, %c1_63, %c1_64, %c0_65] : memref<2x10x10x4xf32, #tpu.memory_space<vmem>>, vector<2x8x8x4xf32>
    %68 = vector.shape_cast %67 : vector<2x8x8x4xf32> to vector<128x4xf32>
    %c40 = arith.constant 40 : index
    %c0_66 = arith.constant 0 : index
    %69 = vector.load %arg1[%c40, %c0_66] : memref<96x16xf32, #tpu.memory_space<vmem>>, vector<4x4xf32>
    %cst_67 = arith.constant dense<0.000000e+00> : vector<128x4xf32>
    %70 = tpu.matmul %68, %69, %cst_67 {dimension_numbers = #tpu.dot_dimension_numbers<[1], [0], [0], [1], [0, 0, 1, 1], [], []>} : vector<128x4xf32>, vector<4x4xf32>, vector<128x4xf32> -> vector<128x4xf32>
    %71 = arith.addf %66, %70 : vector<128x4xf32>
    %c0_68 = arith.constant 0 : index
    %c1_69 = arith.constant 1 : index
    %c2_70 = arith.constant 2 : index
    %c0_71 = arith.constant 0 : index
    %72 = vector.load %arg4[%c0_68, %c1_69, %c2_70, %c0_71] : memref<2x10x10x4xf32, #tpu.memory_space<vmem>>, vector<2x8x8x4xf32>
    %73 = vector.shape_cast %72 : vector<2x8x8x4xf32> to vector<128x4xf32>
    %c48 = arith.constant 48 : index
    %c0_72 = arith.constant 0 : index
    %74 = vector.load %arg1[%c48, %c0_72] : memref<96x16xf32, #tpu.memory_space<vmem>>, vector<4x4xf32>
    %cst_73 = arith.constant dense<0.000000e+00> : vector<128x4xf32>
    %75 = tpu.matmul %73, %74, %cst_73 {dimension_numbers = #tpu.dot_dimension_numbers<[1], [0], [0], [1], [0, 0, 1, 1], [], []>} : vector<128x4xf32>, vector<4x4xf32>, vector<128x4xf32> -> vector<128x4xf32>
    %76 = arith.addf %71, %75 : vector<128x4xf32>
    %c0_74 = arith.constant 0 : index
    %c2_75 = arith.constant 2 : index
    %c0_76 = arith.constant 0 : index
    %c0_77 = arith.constant 0 : index
    %77 = vector.load %arg4[%c0_74, %c2_75, %c0_76, %c0_77] : memref<2x10x10x4xf32, #tpu.memory_space<vmem>>, vector<2x8x8x4xf32>
    %78 = vector.shape_cast %77 : vector<2x8x8x4xf32> to vector<128x4xf32>
    %c56 = arith.constant 56 : index
    %c0_78 = arith.constant 0 : index
    %79 = vector.load %arg1[%c56, %c0_78] : memref<96x16xf32, #tpu.memory_space<vmem>>, vector<4x4xf32>
    %cst_79 = arith.constant dense<0.000000e+00> : vector<128x4xf32>
    %80 = tpu.matmul %78, %79, %cst_79 {dimension_numbers = #tpu.dot_dimension_numbers<[1], [0], [0], [1], [0, 0, 1, 1], [], []>} : vector<128x4xf32>, vector<4x4xf32>, vector<128x4xf32> -> vector<128x4xf32>
    %81 = arith.addf %76, %80 : vector<128x4xf32>
    %c0_80 = arith.constant 0 : index
    %c2_81 = arith.constant 2 : index
    %c1_82 = arith.constant 1 : index
    %c0_83 = arith.constant 0 : index
    %82 = vector.load %arg4[%c0_80, %c2_81, %c1_82, %c0_83] : memref<2x10x10x4xf32, #tpu.memory_space<vmem>>, vector<2x8x8x4xf32>
    %83 = vector.shape_cast %82 : vector<2x8x8x4xf32> to vector<128x4xf32>
    %c64 = arith.constant 64 : index
    %c0_84 = arith.constant 0 : index
    %84 = vector.load %arg1[%c64, %c0_84] : memref<96x16xf32, #tpu.memory_space<vmem>>, vector<4x4xf32>
    %cst_85 = arith.constant dense<0.000000e+00> : vector<128x4xf32>
    %85 = tpu.matmul %83, %84, %cst_85 {dimension_numbers = #tpu.dot_dimension_numbers<[1], [0], [0], [1], [0, 0, 1, 1], [], []>} : vector<128x4xf32>, vector<4x4xf32>, vector<128x4xf32> -> vector<128x4xf32>
    %86 = arith.addf %81, %85 : vector<128x4xf32>
    %c0_86 = arith.constant 0 : index
    %c2_87 = arith.constant 2 : index
    %c2_88 = arith.constant 2 : index
    %c0_89 = arith.constant 0 : index
    %87 = vector.load %arg4[%c0_86, %c2_87, %c2_88, %c0_89] : memref<2x10x10x4xf32, #tpu.memory_space<vmem>>, vector<2x8x8x4xf32>
    %88 = vector.shape_cast %87 : vector<2x8x8x4xf32> to vector<128x4xf32>
    %c72 = arith.constant 72 : index
    %c0_90 = arith.constant 0 : index
    %89 = vector.load %arg1[%c72, %c0_90] : memref<96x16xf32, #tpu.memory_space<vmem>>, vector<4x4xf32>
    %cst_91 = arith.constant dense<0.000000e+00> : vector<128x4xf32>
    %90 = tpu.matmul %88, %89, %cst_91 {dimension_numbers = #tpu.dot_dimension_numbers<[1], [0], [0], [1], [0, 0, 1, 1], [], []>} : vector<128x4xf32>, vector<4x4xf32>, vector<128x4xf32> -> vector<128x4xf32>
    %91 = arith.addf %86, %90 : vector<128x4xf32>
    %c1_92 = arith.constant 1 : index
    %c0_93 = arith.constant 0 : index
    %92 = vector.load %arg2[%c1_92, %c0_93] : memref<8x16xf32, #tpu.memory_space<vmem>>, vector<1x4xf32>
    %c5 = arith.constant 5 : index
    %c0_94 = arith.constant 0 : index
    %93 = vector.load %arg2[%c5, %c0_94] : memref<8x16xf32, #tpu.memory_space<vmem>>, vector<1x4xf32>
    %cst_95 = arith.constant dense<0.000000e+00> : vector<4xf32>
    %94 = vector.multi_reduction <add>, %91, %cst_95 [0] : vector<128x4xf32> to vector<4xf32>
    %95 = vector.shape_cast %94 : vector<4xf32> to vector<1x4xf32>
    %96 = arith.mulf %91, %91 : vector<128x4xf32>
    %cst_96 = arith.constant dense<0.000000e+00> : vector<4xf32>
    %97 = vector.multi_reduction <add>, %96, %cst_96 [0] : vector<128x4xf32> to vector<4xf32>
    %98 = vector.shape_cast %97 : vector<4xf32> to vector<1x4xf32>
    %cst_97 = arith.constant 7.812500e-03 : f32
    %99 = vector.broadcast %cst_97 : f32 to vector<1x4xf32>
    %100 = arith.mulf %95, %99 : vector<1x4xf32>
    %cst_98 = arith.constant 7.812500e-03 : f32
    %101 = vector.broadcast %cst_98 : f32 to vector<1x4xf32>
    %102 = arith.mulf %98, %101 : vector<1x4xf32>
    %103 = arith.mulf %100, %100 : vector<1x4xf32>
    %104 = arith.subf %102, %103 : vector<1x4xf32>
    %cst_99 = arith.constant 0.000000e+00 : f32
    %105 = vector.broadcast %cst_99 : f32 to vector<1x4xf32>
    %106 = arith.maximumf %104, %105 : vector<1x4xf32>
    %107 = vector.broadcast %100 : vector<1x4xf32> to vector<128x4xf32>
    %108 = arith.subf %91, %107 : vector<128x4xf32>
    %cst_100 = arith.constant 9.99999974E-6 : f32
    %109 = vector.broadcast %cst_100 : f32 to vector<1x4xf32>
    %110 = arith.addf %106, %109 : vector<1x4xf32>
    %111 = math.rsqrt %110 : vector<1x4xf32>
    %112 = vector.broadcast %111 : vector<1x4xf32> to vector<128x4xf32>
    %113 = arith.mulf %108, %112 : vector<128x4xf32>
    %114 = vector.broadcast %92 : vector<1x4xf32> to vector<128x4xf32>
    %115 = arith.mulf %113, %114 : vector<128x4xf32>
    %116 = vector.broadcast %93 : vector<1x4xf32> to vector<128x4xf32>
    %117 = arith.addf %115, %116 : vector<128x4xf32>
    %cst_101 = arith.constant 0.000000e+00 : f32
    %118 = vector.broadcast %cst_101 : f32 to vector<128x4xf32>
    %119 = arith.maximumf %117, %118 : vector<128x4xf32>
    %c80 = arith.constant 80 : index
    %c0_102 = arith.constant 0 : index
    %120 = vector.load %arg1[%c80, %c0_102] : memref<96x16xf32, #tpu.memory_space<vmem>>, vector<4x8xf32>
    %cst_103 = arith.constant dense<0.000000e+00> : vector<128x8xf32>
    %121 = tpu.matmul %119, %120, %cst_103 {dimension_numbers = #tpu.dot_dimension_numbers<[1], [0], [0], [1], [0, 0, 1, 1], [], []>} : vector<128x4xf32>, vector<4x8xf32>, vector<128x8xf32> -> vector<128x8xf32>
    %c2_104 = arith.constant 2 : index
    %c0_105 = arith.constant 0 : index
    %122 = vector.load %arg2[%c2_104, %c0_105] : memref<8x16xf32, #tpu.memory_space<vmem>>, vector<1x8xf32>
    %c6 = arith.constant 6 : index
    %c0_106 = arith.constant 0 : index
    %123 = vector.load %arg2[%c6, %c0_106] : memref<8x16xf32, #tpu.memory_space<vmem>>, vector<1x8xf32>
    %cst_107 = arith.constant dense<0.000000e+00> : vector<8xf32>
    %124 = vector.multi_reduction <add>, %121, %cst_107 [0] : vector<128x8xf32> to vector<8xf32>
    %125 = vector.shape_cast %124 : vector<8xf32> to vector<1x8xf32>
    %126 = arith.mulf %121, %121 : vector<128x8xf32>
    %cst_108 = arith.constant dense<0.000000e+00> : vector<8xf32>
    %127 = vector.multi_reduction <add>, %126, %cst_108 [0] : vector<128x8xf32> to vector<8xf32>
    %128 = vector.shape_cast %127 : vector<8xf32> to vector<1x8xf32>
    %cst_109 = arith.constant 7.812500e-03 : f32
    %129 = vector.broadcast %cst_109 : f32 to vector<1x8xf32>
    %130 = arith.mulf %125, %129 : vector<1x8xf32>
    %cst_110 = arith.constant 7.812500e-03 : f32
    %131 = vector.broadcast %cst_110 : f32 to vector<1x8xf32>
    %132 = arith.mulf %128, %131 : vector<1x8xf32>
    %133 = arith.mulf %130, %130 : vector<1x8xf32>
    %134 = arith.subf %132, %133 : vector<1x8xf32>
    %cst_111 = arith.constant 0.000000e+00 : f32
    %135 = vector.broadcast %cst_111 : f32 to vector<1x8xf32>
    %136 = arith.maximumf %134, %135 : vector<1x8xf32>
    %137 = vector.broadcast %130 : vector<1x8xf32> to vector<128x8xf32>
    %138 = arith.subf %121, %137 : vector<128x8xf32>
    %cst_112 = arith.constant 9.99999974E-6 : f32
    %139 = vector.broadcast %cst_112 : f32 to vector<1x8xf32>
    %140 = arith.addf %136, %139 : vector<1x8xf32>
    %141 = math.rsqrt %140 : vector<1x8xf32>
    %142 = vector.broadcast %141 : vector<1x8xf32> to vector<128x8xf32>
    %143 = arith.mulf %138, %142 : vector<128x8xf32>
    %144 = vector.broadcast %122 : vector<1x8xf32> to vector<128x8xf32>
    %145 = arith.mulf %143, %144 : vector<128x8xf32>
    %146 = vector.broadcast %123 : vector<1x8xf32> to vector<128x8xf32>
    %147 = arith.addf %145, %146 : vector<128x8xf32>
    %cst_113 = arith.constant 0.000000e+00 : f32
    %148 = vector.broadcast %cst_113 : f32 to vector<128x8xf32>
    %149 = arith.maximumf %147, %148 : vector<128x8xf32>
    %c88 = arith.constant 88 : index
    %c0_114 = arith.constant 0 : index
    %150 = vector.load %arg1[%c88, %c0_114] : memref<96x16xf32, #tpu.memory_space<vmem>>, vector<8x16xf32>
    %151 = arith.addf %149, %9 : vector<128x8xf32>
    %cst_115 = arith.constant dense<0.000000e+00> : vector<128x16xf32>
    %152 = tpu.matmul %151, %150, %cst_115 {dimension_numbers = #tpu.dot_dimension_numbers<[1], [0], [0], [1], [0, 0, 1, 1], [], []>} : vector<128x8xf32>, vector<8x16xf32>, vector<128x16xf32> -> vector<128x16xf32>
    %c3 = arith.constant 3 : index
    %c0_116 = arith.constant 0 : index
    %153 = vector.load %arg2[%c3, %c0_116] : memref<8x16xf32, #tpu.memory_space<vmem>>, vector<1x16xf32>
    %c7 = arith.constant 7 : index
    %c0_117 = arith.constant 0 : index
    %154 = vector.load %arg2[%c7, %c0_117] : memref<8x16xf32, #tpu.memory_space<vmem>>, vector<1x16xf32>
    %cst_118 = arith.constant dense<0.000000e+00> : vector<16xf32>
    %155 = vector.multi_reduction <add>, %152, %cst_118 [0] : vector<128x16xf32> to vector<16xf32>
    %156 = vector.shape_cast %155 : vector<16xf32> to vector<1x16xf32>
    %157 = arith.mulf %152, %152 : vector<128x16xf32>
    %cst_119 = arith.constant dense<0.000000e+00> : vector<16xf32>
    %158 = vector.multi_reduction <add>, %157, %cst_119 [0] : vector<128x16xf32> to vector<16xf32>
    %159 = vector.shape_cast %158 : vector<16xf32> to vector<1x16xf32>
    %cst_120 = arith.constant 7.812500e-03 : f32
    %160 = vector.broadcast %cst_120 : f32 to vector<1x16xf32>
    %161 = arith.mulf %156, %160 : vector<1x16xf32>
    %cst_121 = arith.constant 7.812500e-03 : f32
    %162 = vector.broadcast %cst_121 : f32 to vector<1x16xf32>
    %163 = arith.mulf %159, %162 : vector<1x16xf32>
    %164 = arith.mulf %161, %161 : vector<1x16xf32>
    %165 = arith.subf %163, %164 : vector<1x16xf32>
    %cst_122 = arith.constant 0.000000e+00 : f32
    %166 = vector.broadcast %cst_122 : f32 to vector<1x16xf32>
    %167 = arith.maximumf %165, %166 : vector<1x16xf32>
    %168 = vector.broadcast %161 : vector<1x16xf32> to vector<128x16xf32>
    %169 = arith.subf %152, %168 : vector<128x16xf32>
    %cst_123 = arith.constant 9.99999974E-6 : f32
    %170 = vector.broadcast %cst_123 : f32 to vector<1x16xf32>
    %171 = arith.addf %167, %170 : vector<1x16xf32>
    %172 = math.rsqrt %171 : vector<1x16xf32>
    %173 = vector.broadcast %172 : vector<1x16xf32> to vector<128x16xf32>
    %174 = arith.mulf %169, %173 : vector<128x16xf32>
    %175 = vector.broadcast %153 : vector<1x16xf32> to vector<128x16xf32>
    %176 = arith.mulf %174, %175 : vector<128x16xf32>
    %177 = vector.broadcast %154 : vector<1x16xf32> to vector<128x16xf32>
    %178 = arith.addf %176, %177 : vector<128x16xf32>
    %cst_124 = arith.constant 0.000000e+00 : f32
    %179 = vector.broadcast %cst_124 : f32 to vector<128x16xf32>
    %180 = arith.maximumf %178, %179 : vector<128x16xf32>
    %181 = vector.shape_cast %180 : vector<128x16xf32> to vector<2x64x16xf32>
    %182 = tpu.transpose %181, [0, 2, 1] : vector<2x64x16xf32> -> vector<2x16x64xf32>
    %c0_125 = arith.constant 0 : index
    %c0_126 = arith.constant 0 : index
    %c0_127 = arith.constant 0 : index
    %183 = vector.load %arg3[%c0_125, %c0_126, %c0_127] : memref<2x16x64xf32, #tpu.memory_space<vmem>>, vector<2x16x64xf32>
    tpu.vector_store %arg3[%c0_125, %c0_126, %c0_127], %182 {strides = array<i32>} : memref<2x16x64xf32, #tpu.memory_space<vmem>>, vector<2x16x64xf32>,
    return
  }
}

</mosaic_0001>

<llo_original>
// kernel: tpu_custom_call.1
$region0: #{tpu_custom_call.1}
  #allocation0 [shape = 'u32[]', space=smem, size = 0x4, offset = 0x4, fixed_abs, tag = 'smem constant byte address 0x4 - core index']
  #allocation1 [shape = 'u32[144,128]{1,0:T(1,128)}', space=vmem, size = 0x12000, scoped, tag = 'internal scratch']
  #allocation2 [shape = 'f32[2,10,10,4]{3,2,1,0:T(8,128)}', space=vmem, size = 0x28000, scoped, tag = 'scratch operand']
  %s0 = inlined_call_operand.vmem [shape: f32[2,16,16,8], index: 0, kind: input, shape index: {}]
  %s1 = inlined_call_operand.vmem [shape: f32[96,16], index: 1, kind: input, shape index: {}]
  %s2 = inlined_call_operand.vmem [shape: f32[8,16], index: 2, kind: input, shape index: {}]
  %s3 = inlined_call_operand.hbm [shape: f32[2,16,64], index: 3, kind: output, shape index: {}]
  %s4 = sld [smem:[#allocation0]]
  $region22: #{tpu_custom_call.1} parent=0
    _
  %s6 = ssub.s32 1, %s4
  %s7 = scalar_select 0, %s6, %s4
  $region1: #{tpu_custom_call.1} parent=0
    #allocation3 [shape = 'u8[16384]{0}', space=vmem, size = 0x4000, scoped, tag = 'output window, operand 0, single buffered']
    #allocation4 [shape = 's32[1]{0}', space=sflag, size = 0x4, scoped, tag = 'scoped memory for tpu_custom_call.1']
    %8 = vsyncpa [#allocation4], 0
    // Predicated region
    $region2: #{tpu_custom_call.1} parent=1 // pred_check
      _
    $region3: #{tpu_custom_call.1} parent=1 // pred_check_branch
      %10 = sbr.rel (0) target = $region5
    $region4: #{tpu_custom_call.1} parent=1 // pred_region
      _
    $region5: #{tpu_custom_call.1} parent=1 // pred_fallthru
      _
    // Predicated region
    $region6: #{tpu_custom_call.1} parent=1 // pred_check
      _
    $region7: #{tpu_custom_call.1} parent=1 // pred_check_branch
      %12 = sbr.rel (0) target = $region9
    $region8: #{tpu_custom_call.1} parent=1 // pred_region
      _
    $region9: #{tpu_custom_call.1} parent=1 // pred_fallthru
      _
    // Predicated region
    $region10: #{tpu_custom_call.1} parent=1 // pred_check
      _
    $region11: #{tpu_custom_call.1} parent=1 // pred_check_branch
      %14 = sbr.rel (0) target = $region13
    $region12: #{tpu_custom_call.1} parent=1 // pred_region
      _
    $region13: #{tpu_custom_call.1} parent=1 // pred_fallthru
      _
    %v15 = vld [vmem:[%s0] ss:$2 sm:$0xff]
    %s16 = scalar_lea.vmem %s0, 16
    %v17 = vld [vmem:[%s16] ss:$2 sm:$0xff]
    %s18 = scalar_lea.vmem %s0, 32
    %v19 = vld [vmem:[%s18] ss:$2 sm:$0xff]
    %s20 = scalar_lea.vmem %s0, 48
    %v21 = vld [vmem:[%s20] ss:$2 sm:$0xff]
    %s22 = scalar_lea.vmem %s0, 64
    %v23 = vld [vmem:[%s22] ss:$2 sm:$0xff]
    %s24 = scalar_lea.vmem %s0, 80
    %v25 = vld [vmem:[%s24] ss:$2 sm:$0xff]
    %s26 = scalar_lea.vmem %s0, 96
    %v27 = vld [vmem:[%s26] ss:$2 sm:$0xff]
    %s28 = scalar_lea.vmem %s0, 112
    %v29 = vld [vmem:[%s28] ss:$2 sm:$0xff]
    %s30 = scalar_lea.vmem %s0, 128
    %v31 = vld [vmem:[%s30] ss:$2 sm:$0xff]
    %s32 = scalar_lea.vmem %s0, 144
    %v33 = vld [vmem:[%s32] ss:$2 sm:$0xff]
    %s34 = scalar_lea.vmem %s0, 160
    %v35 = vld [vmem:[%s34] ss:$2 sm:$0xff]
    %s36 = scalar_lea.vmem %s0, 176
    %v37 = vld [vmem:[%s36] ss:$2 sm:$0xff]
    %s38 = scalar_lea.vmem %s0, 192
    %v39 = vld [vmem:[%s38] ss:$2 sm:$0xff]
    %s40 = scalar_lea.vmem %s0, 208
    %v41 = vld [vmem:[%s40] ss:$2 sm:$0xff]
    %s42 = scalar_lea.vmem %s0, 224
    %v43 = vld [vmem:[%s42] ss:$2 sm:$0xff]
    %s44 = scalar_lea.vmem %s0, 240
    %v45 = vld [vmem:[%s44] ss:$2 sm:$0xff]
    %s46 = scalar_lea.vmem %s0, 256
    %v47 = vld [vmem:[%s46] ss:$2 sm:$0xff]
    %s48 = scalar_lea.vmem %s0, 272
    %v49 = vld [vmem:[%s48] ss:$2 sm:$0xff]
    %s50 = scalar_lea.vmem %s0, 288
    %v51 = vld [vmem:[%s50] ss:$2 sm:$0xff]
    %s52 = scalar_lea.vmem %s0, 304
    %v53 = vld [vmem:[%s52] ss:$2 sm:$0xff]
    %s54 = scalar_lea.vmem %s0, 320
    %v55 = vld [vmem:[%s54] ss:$2 sm:$0xff]
    %s56 = scalar_lea.vmem %s0, 336
    %v57 = vld [vmem:[%s56] ss:$2 sm:$0xff]
    %s58 = scalar_lea.vmem %s0, 352
    %v59 = vld [vmem:[%s58] ss:$2 sm:$0xff]
    %s60 = scalar_lea.vmem %s0, 368
    %v61 = vld [vmem:[%s60] ss:$2 sm:$0xff]
    %s62 = scalar_lea.vmem %s0, 384
    %v63 = vld [vmem:[%s62] ss:$2 sm:$0xff]
    %s64 = scalar_lea.vmem %s0, 400
    %v65 = vld [vmem:[%s64] ss:$2 sm:$0xff]
    %s66 = scalar_lea.vmem %s0, 416
    %v67 = vld [vmem:[%s66] ss:$2 sm:$0xff]
    %s68 = scalar_lea.vmem %s0, 432
    %v69 = vld [vmem:[%s68] ss:$2 sm:$0xff]
    %s70 = scalar_lea.vmem %s0, 448
    %v71 = vld [vmem:[%s70] ss:$2 sm:$0xff]
    %s72 = scalar_lea.vmem %s0, 464
    %v73 = vld [vmem:[%s72] ss:$2 sm:$0xff]
    %s74 = scalar_lea.vmem %s0, 480
    %v75 = vld [vmem:[%s74] ss:$2 sm:$0xff]
    %s76 = scalar_lea.vmem %s0, 496
    %v77 = vld [vmem:[%s76] ss:$2 sm:$0xff]
    %s78 = scalar_lea.vmem %s0, 1
    %v79 = vld [vmem:[%s78] ss:$2 sm:$0xff]
    %s80 = scalar_lea.vmem %s0, 17
    %v81 = vld [vmem:[%s80] ss:$2 sm:$0xff]
    %s82 = scalar_lea.vmem %s0, 33
    %v83 = vld [vmem:[%s82] ss:$2 sm:$0xff]
    %s84 = scalar_lea.vmem %s0, 49
    %v85 = vld [vmem:[%s84] ss:$2 sm:$0xff]
    %s86 = scalar_lea.vmem %s0, 65
    %v87 = vld [vmem:[%s86] ss:$2 sm:$0xff]
    %s88 = scalar_lea.vmem %s0, 81
    %v89 = vld [vmem:[%s88] ss:$2 sm:$0xff]
    %s90 = scalar_lea.vmem %s0, 97
    %v91 = vld [vmem:[%s90] ss:$2 sm:$0xff]
    %s92 = scalar_lea.vmem %s0, 113
    %v93 = vld [vmem:[%s92] ss:$2 sm:$0xff]
    %s94 = scalar_lea.vmem %s0, 129
    %v95 = vld [vmem:[%s94] ss:$2 sm:$0xff]
    %s96 = scalar_lea.vmem %s0, 145
    %v97 = vld [vmem:[%s96] ss:$2 sm:$0xff]
    %s98 = scalar_lea.vmem %s0, 161
    %v99 = vld [vmem:[%s98] ss:$2 sm:$0xff]
    %s100 = scalar_lea.vmem %s0, 177
    %v101 = vld [vmem:[%s100] ss:$2 sm:$0xff]
    %s102 = scalar_lea.vmem %s0, 193
    %v103 = vld [vmem:[%s102] ss:$2 sm:$0xff]
    %s104 = scalar_lea.vmem %s0, 209
    %v105 = vld [vmem:[%s104] ss:$2 sm:$0xff]
    %s106 = scalar_lea.vmem %s0, 225
    %v107 = vld [vmem:[%s106] ss:$2 sm:$0xff]
    %s108 = scalar_lea.vmem %s0, 241
    %v109 = vld [vmem:[%s108] ss:$2 sm:$0xff]
    %s110 = scalar_lea.vmem %s0, 257
    %v111 = vld [vmem:[%s110] ss:$2 sm:$0xff]
    %s112 = scalar_lea.vmem %s0, 273
    %v113 = vld [vmem:[%s112] ss:$2 sm:$0xff]
    %s114 = scalar_lea.vmem %s0, 289
    %v115 = vld [vmem:[%s114] ss:$2 sm:$0xff]
    %s116 = scalar_lea.vmem %s0, 305
    %v117 = vld [vmem:[%s116] ss:$2 sm:$0xff]
    %s118 = scalar_lea.vmem %s0, 321
    %v119 = vld [vmem:[%s118] ss:$2 sm:$0xff]
    %s120 = scalar_lea.vmem %s0, 337
    %v121 = vld [vmem:[%s120] ss:$2 sm:$0xff]
    %s122 = scalar_lea.vmem %s0, 353
    %v123 = vld [vmem:[%s122] ss:$2 sm:$0xff]
    %s124 = scalar_lea.vmem %s0, 369
    %v125 = vld [vmem:[%s124] ss:$2 sm:$0xff]
    %s126 = scalar_lea.vmem %s0, 385
    %v127 = vld [vmem:[%s126] ss:$2 sm:$0xff]
    %s128 = scalar_lea.vmem %s0, 401
    %v129 = vld [vmem:[%s128] ss:$2 sm:$0xff]
    %s130 = scalar_lea.vmem %s0, 417
    %v131 = vld [vmem:[%s130] ss:$2 sm:$0xff]
    %s132 = scalar_lea.vmem %s0, 433
    %v133 = vld [vmem:[%s132] ss:$2 sm:$0xff]
    %s134 = scalar_lea.vmem %s0, 449
    %v135 = vld [vmem:[%s134] ss:$2 sm:$0xff]
    %s136 = scalar_lea.vmem %s0, 465
    %v137 = vld [vmem:[%s136] ss:$2 sm:$0xff]
    %s138 = scalar_lea.vmem %s0, 481
    %v139 = vld [vmem:[%s138] ss:$2 sm:$0xff]
    %s140 = scalar_lea.vmem %s0, 497
    %v141 = vld [vmem:[%s140] ss:$2 sm:$0xff]
    %v142 = vmax.f32 %v15, %v79
    %v143 = vmax.f32 %v17, %v81
    %v144 = vmax.f32 %v19, %v83
    %v145 = vmax.f32 %v21, %v85
    %v146 = vmax.f32 %v23, %v87
    %v147 = vmax.f32 %v25, %v89
    %v148 = vmax.f32 %v27, %v91
    %v149 = vmax.f32 %v29, %v93
    %v150 = vmax.f32 %v31, %v95
    %v151 = vmax.f32 %v33, %v97
    %v152 = vmax.f32 %v35, %v99
    %v153 = vmax.f32 %v37, %v101
    %v154 = vmax.f32 %v39, %v103
    %v155 = vmax.f32 %v41, %v105
    %v156 = vmax.f32 %v43, %v107
    %v157 = vmax.f32 %v45, %v109
    %v158 = vmax.f32 %v47, %v111
    %v159 = vmax.f32 %v49, %v113
    %v160 = vmax.f32 %v51, %v115
    %v161 = vmax.f32 %v53, %v117
    %v162 = vmax.f32 %v55, %v119
    %v163 = vmax.f32 %v57, %v121
    %v164 = vmax.f32 %v59, %v123
    %v165 = vmax.f32 %v61, %v125
    %v166 = vmax.f32 %v63, %v127
    %v167 = vmax.f32 %v65, %v129
    %v168 = vmax.f32 %v67, %v131
    %v169 = vmax.f32 %v69, %v133
    %v170 = vmax.f32 %v71, %v135
    %v171 = vmax.f32 %v73, %v137
    %v172 = vmax.f32 %v75, %v139
    %v173 = vmax.f32 %v77, %v141
    %v174 = vmax.f32 %v142, %v143
    %v175 = vmax.f32 %v144, %v145
    %v176 = vmax.f32 %v146, %v147
    %v177 = vmax.f32 %v148, %v149
    %v178 = vmax.f32 %v150, %v151
    %v179 = vmax.f32 %v152, %v153
    %v180 = vmax.f32 %v154, %v155
    %v181 = vmax.f32 %v156, %v157
    %v182 = vmax.f32 %v158, %v159
    %v183 = vmax.f32 %v160, %v161
    %v184 = vmax.f32 %v162, %v163
    %v185 = vmax.f32 %v164, %v165
    %v186 = vmax.f32 %v166, %v167
    %v187 = vmax.f32 %v168, %v169
    %v188 = vmax.f32 %v170, %v171
    %v189 = vmax.f32 %v172, %v173
    %v190 = vld [vmem:[%s1] sm:$0xff]
    %vm191 = vcmask 64512
    %v193 = vsel %vm191, %v174, 0
    %v196 = vsel %vm191, %v175, 0
    %v199 = vsel %vm191, %v176, 0
    %v202 = vsel %vm191, %v177, 0
    %v205 = vsel %vm191, %v178, 0
    %v208 = vsel %vm191, %v179, 0
    %v211 = vsel %vm191, %v180, 0
    %v214 = vsel %vm191, %v181, 0
    %v217 = vsel %vm191, %v182, 0
    %v220 = vsel %vm191, %v183, 0
    %v223 = vsel %vm191, %v184, 0
    %v226 = vsel %vm191, %v185, 0
    %v229 = vsel %vm191, %v186, 0
    %v232 = vsel %vm191, %v187, 0
    %v235 = vsel %vm191, %v188, 0
    %v238 = vsel %vm191, %v189, 0
    %240 = vmatprep.subr.mxu0 0.0
    %241 = vmatpush1.msra.mxu0 %v190
    %242 = vmatprep.subr.mxu0 0.0
    %243 = vmatpush1.msra.mxu0 0.0
    %244 = vmatprep.subr.mxu0 0.0
    %245 = vmatpush1.msra.mxu0 0.0
    %246 = vmatprep.subr.mxu0 0.0
    %247 = vmatpush1.msra.mxu0 0.0
    %248 = vmatprep.subr.mxu0 0.0
    %249 = vmatpush1.msra.mxu0 0.0
    %250 = vmatprep.subr.mxu0 0.0
    %251 = vmatpush1.msra.mxu0 0.0
    %252 = vmatprep.subr.mxu0 0.0
    %253 = vmatpush1.msra.mxu0 0.0
    %254 = vmatprep.subr.mxu0 0.0
    %255 = vmatpush1.msra.mxu0 0.0
    %256 = vmatprep.subr.mxu0 0.0
    %257 = vmatpush1.msra.mxu0 0.0
    %258 = vmatprep.subr.mxu0 0.0
    %259 = vmatpush1.msra.mxu0 0.0
    %260 = vmatprep.subr.mxu0 0.0
    %261 = vmatpush1.msra.mxu0 0.0
    %262 = vmatprep.subr.mxu0 0.0
    %263 = vmatpush1.msra.mxu0 0.0
    %264 = vmatprep.subr.mxu0 0.0
    %265 = vmatpush1.msra.mxu0 0.0
    %266 = vmatprep.subr.mxu0 0.0
    %267 = vmatpush1.msra.mxu0 0.0
    %268 = vmatprep.subr.mxu0 0.0
    %269 = vmatpush1.msra.mxu0 0.0
    %270 = vmatprep.subr.mxu0 0.0
    %271 = vmatpush1.msra.mxu0 0.0
    %272 = vmatprep.subr.mxu0 0.0
    %273 = vmatpush1.msra.mxu0 0.0
    %274 = vmatprep.subr.mxu0 0.0
    %275 = vmatpush1.msra.mxu0 0.0
    %276 = vmatprep.subr.mxu0 0.0
    %277 = vmatpush1.msra.mxu0 0.0
    %278 = vmatprep.subr.mxu0 0.0
    %279 = vmatpush1.msra.mxu0 0.0
    %280 = vmatprep.subr.mxu0 0.0
    %281 = vmatpush1.msra.mxu0 0.0
    %282 = vmatprep.subr.mxu0 0.0
    %283 = vmatpush1.msra.mxu0 0.0
    %284 = vmatprep.subr.mxu0 0.0
    %285 = vmatpush1.msra.mxu0 0.0
    %286 = vmatprep.subr.mxu0 0.0
    %287 = vmatpush1.msra.mxu0 0.0
    %288 = vmatprep.subr.mxu0 0.0
    %289 = vmatpush1.msra.mxu0 0.0
    %290 = vmatprep.subr.mxu0 0.0
    %291 = vmatpush1.msra.mxu0 0.0
    %292 = vmatprep.subr.mxu0 0.0
    %293 = vmatpush1.msra.mxu0 0.0
    %294 = vmatprep.subr.mxu0 0.0
    %295 = vmatpush1.msra.mxu0 0.0
    %296 = vmatprep.subr.mxu0 0.0
    %297 = vmatpush1.msra.mxu0 0.0
    %298 = vmatprep.subr.mxu0 0.0
    %299 = vmatpush1.msra.mxu0 0.0
    %300 = vmatprep.subr.mxu0 0.0
    %301 = vmatpush1.msra.mxu0 0.0
    %302 = vmatprep.subr.mxu0 0.0
    %303 = vmatpush1.msra.mxu0 0.0
    %304 = vmatprep.mubr.f32.mxu0 0.0
    %305 = vmatmul.mubr.f32.gmra.mrb[0].mxu0 %v193
    %v306 = vpop.f32.mrb[0].mxu0
    %v307 = vadd.f32 0.0, %v306
    %v308 = vpop.f32.mrb[0].mxu0
    %309 = vmatprep.mubr.f32.mxu0 0.0
    %310 = vmatmul.mubr.f32.gmra.mrb[0].mxu0 %v196
    %v311 = vpop.f32.mrb[0].mxu0
    %v312 = vadd.f32 0.0, %v311
    %v313 = vpop.f32.mrb[0].mxu0
    %314 = vmatprep.mubr.f32.mxu0 0.0
    %315 = vmatmul.mubr.f32.gmra.mrb[0].mxu0 %v199
    %v316 = vpop.f32.mrb[0].mxu0
    %v317 = vadd.f32 0.0, %v316
    %v318 = vpop.f32.mrb[0].mxu0
    %319 = vmatprep.mubr.f32.mxu0 0.0
    %320 = vmatmul.mubr.f32.gmra.mrb[0].mxu0 %v202
    %v321 = vpop.f32.mrb[0].mxu0
    %v322 = vadd.f32 0.0, %v321
    %v323 = vpop.f32.mrb[0].mxu0
    %324 = vmatprep.mubr.f32.mxu0 0.0
    %325 = vmatmul.mubr.f32.gmra.mrb[0].mxu0 %v205
    %v326 = vpop.f32.mrb[0].mxu0
    %v327 = vadd.f32 0.0, %v326
    %v328 = vpop.f32.mrb[0].mxu0
    %329 = vmatprep.mubr.f32.mxu0 0.0
    %330 = vmatmul.mubr.f32.gmra.mrb[0].mxu0 %v208
    %v331 = vpop.f32.mrb[0].mxu0
    %v332 = vadd.f32 0.0, %v331
    %v333 = vpop.f32.mrb[0].mxu0
    %334 = vmatprep.mubr.f32.mxu0 0.0
    %335 = vmatmul.mubr.f32.gmra.mrb[0].mxu0 %v211
    %v336 = vpop.f32.mrb[0].mxu0
    %v337 = vadd.f32 0.0, %v336
    %v338 = vpop.f32.mrb[0].mxu0
    %339 = vmatprep.mubr.f32.mxu0 0.0
    %340 = vmatmul.mubr.f32.gmra.mrb[0].mxu0 %v214
    %v341 = vpop.f32.mrb[0].mxu0
    %v342 = vadd.f32 0.0, %v341
    %v343 = vpop.f32.mrb[0].mxu0
    %344 = vmatprep.mubr.f32.mxu0 0.0
    %345 = vmatmul.mubr.f32.gmra.mrb[0].mxu0 %v217
    %v346 = vpop.f32.mrb[0].mxu0
    %v347 = vadd.f32 0.0, %v346
    %v348 = vpop.f32.mrb[0].mxu0
    %349 = vmatprep.mubr.f32.mxu0 0.0
    %350 = vmatmul.mubr.f32.gmra.mrb[0].mxu0 %v220
    %v351 = vpop.f32.mrb[0].mxu0
    %v352 = vadd.f32 0.0, %v351
    %v353 = vpop.f32.mrb[0].mxu0
    %354 = vmatprep.mubr.f32.mxu0 0.0
    %355 = vmatmul.mubr.f32.gmra.mrb[0].mxu0 %v223
    %v356 = vpop.f32.mrb[0].mxu0
    %v357 = vadd.f32 0.0, %v356
    %v358 = vpop.f32.mrb[0].mxu0
    %359 = vmatprep.mubr.f32.mxu0 0.0
    %360 = vmatmul.mubr.f32.gmra.mrb[0].mxu0 %v226
    %v361 = vpop.f32.mrb[0].mxu0
    %v362 = vadd.f32 0.0, %v361
    %v363 = vpop.f32.mrb[0].mxu0
    %364 = vmatprep.mubr.f32.mxu0 0.0
    %365 = vmatmul.mubr.f32.gmra.mrb[0].mxu0 %v229
    %v366 = vpop.f32.mrb[0].mxu0
    %v367 = vadd.f32 0.0, %v366
    %v368 = vpop.f32.mrb[0].mxu0
    %369 = vmatprep.mubr.f32.mxu0 0.0
    %370 = vmatmul.mubr.f32.gmra.mrb[0].mxu0 %v232
    %v371 = vpop.f32.mrb[0].mxu0
    %v372 = vadd.f32 0.0, %v371
    %v373 = vpop.f32.mrb[0].mxu0
    %374 = vmatprep.mubr.f32.mxu0 0.0
    %375 = vmatmul.mubr.f32.gmra.mrb[0].mxu0 %v235
    %v376 = vpop.f32.mrb[0].mxu0
    %v377 = vadd.f32 0.0, %v376
    %v378 = vpop.f32.mrb[0].mxu0
    %379 = vmatprep.mubr.f32.mxu0 0.0
    %380 = vmatmul.mubr.f32.gmra.mrb[0].mxu0 %v238
    %v381 = vpop.f32.mrb[0].mxu0
    %v382 = vadd.f32 0.0, %v381
    %v383 = vpop.f32.mrb[0].mxu0
    %384 = vdwg.mxu0
    %v385 = vld [vmem:[%s2] sm:$0x1]
    %v386 = vld [vmem:[%s2 + $0x4] sm:$0x1]
    %vm387 = vcmask 31744
    %v388 = vsel %vm387, %v307, 0.0
    %v389 = vsel %vm387, %v312, 0.0
    %v390 = vadd.f32 %v388, %v389
    %v391 = vsel %vm387, %v317, 0.0
    %v392 = vadd.f32 %v390, %v391
    %v393 = vsel %vm387, %v322, 0.0
    %v394 = vadd.f32 %v392, %v393
    %v395 = vsel %vm387, %v327, 0.0
    %v396 = vadd.f32 %v394, %v395
    %v397 = vsel %vm387, %v332, 0.0
    %v398 = vadd.f32 %v396, %v397
    %v399 = vsel %vm387, %v337, 0.0
    %v400 = vadd.f32 %v398, %v399
    %v401 = vsel %vm387, %v342, 0.0
    %v402 = vadd.f32 %v400, %v401
    %v403 = vsel %vm387, %v347, 0.0
    %v404 = vadd.f32 %v402, %v403
    %v405 = vsel %vm387, %v352, 0.0
    %v406 = vadd.f32 %v404, %v405
    %v407 = vsel %vm387, %v357, 0.0
    %v408 = vadd.f32 %v406, %v407
    %v409 = vsel %vm387, %v362, 0.0
    %v410 = vadd.f32 %v408, %v409
    %v411 = vsel %vm387, %v367, 0.0
    %v412 = vadd.f32 %v410, %v411
    %v413 = vsel %vm387, %v372, 0.0
    %v414 = vadd.f32 %v412, %v413
    %v415 = vsel %vm387, %v377, 0.0
    %v416 = vadd.f32 %v414, %v415
    %v417 = vsel %vm387, %v382, 0.0
    %v418 = vadd.f32 %v416, %v417
    %v419 = vrot.slane %v418, 4
    %v420 = vadd.f32 %v418, %v419
    %v421 = vrot.slane %v420, 2
    %v422 = vadd.f32 %v420, %v421
    %v423 = vrot.slane %v422, 1
    %v424 = vadd.f32 %v422, %v423
    %v425 = vmul.f32 %v307, %v307
    %v426 = vmul.f32 %v312, %v312
    %v427 = vmul.f32 %v317, %v317
    %v428 = vmul.f32 %v322, %v322
    %v429 = vmul.f32 %v327, %v327
    %v430 = vmul.f32 %v332, %v332
    %v431 = vmul.f32 %v337, %v337
    %v432 = vmul.f32 %v342, %v342
    %v433 = vmul.f32 %v347, %v347
    %v434 = vmul.f32 %v352, %v352
    %v435 = vmul.f32 %v357, %v357
    %v436 = vmul.f32 %v362, %v362
    %v437 = vmul.f32 %v367, %v367
    %v438 = vmul.f32 %v372, %v372
    %v439 = vmul.f32 %v377, %v377
    %v440 = vmul.f32 %v382, %v382
    %v441 = vsel %vm387, %v425, 0.0
    %v442 = vsel %vm387, %v426, 0.0
    %v443 = vadd.f32 %v441, %v442
    %v444 = vsel %vm387, %v427, 0.0
    %v445 = vadd.f32 %v443, %v444
    %v446 = vsel %vm387, %v428, 0.0
    %v447 = vadd.f32 %v445, %v446
    %v448 = vsel %vm387, %v429, 0.0
    %v449 = vadd.f32 %v447, %v448
    %v450 = vsel %vm387, %v430, 0.0
    %v451 = vadd.f32 %v449, %v450
    %v452 = vsel %vm387, %v431, 0.0
    %v453 = vadd.f32 %v451, %v452
    %v454 = vsel %vm387, %v432, 0.0
    %v455 = vadd.f32 %v453, %v454
    %v456 = vsel %vm387, %v433, 0.0
    %v457 = vadd.f32 %v455, %v456
    %v458 = vsel %vm387, %v434, 0.0
    %v459 = vadd.f32 %v457, %v458
    %v460 = vsel %vm387, %v435, 0.0
    %v461 = vadd.f32 %v459, %v460
    %v462 = vsel %vm387, %v436, 0.0
    %v463 = vadd.f32 %v461, %v462
    %v464 = vsel %vm387, %v437, 0.0
    %v465 = vadd.f32 %v463, %v464
    %v466 = vsel %vm387, %v438, 0.0
    %v467 = vadd.f32 %v465, %v466
    %v468 = vsel %vm387, %v439, 0.0
    %v469 = vadd.f32 %v467, %v468
    %v470 = vsel %vm387, %v440, 0.0
    %v471 = vadd.f32 %v469, %v470
    %v472 = vrot.slane %v471, 4
    %v473 = vadd.f32 %v471, %v472
    %v474 = vrot.slane %v473, 2
    %v475 = vadd.f32 %v473, %v474
    %v476 = vrot.slane %v475, 1
    %v477 = vadd.f32 %v475, %v476
    %v478 = vmul.f32 %v424, 0.0078125
    %v479 = vmul.f32 %v477, 0.0078125
    %v480 = vmul.f32 %v478, %v478
    %v481 = vsub.f32 %v479, %v480
    %v482 = vmax.f32 %v481, 0.0
    %v483 = vsub.f32 %v307, %v478
    %v484 = vsub.f32 %v312, %v478
    %v485 = vsub.f32 %v317, %v478
    %v486 = vsub.f32 %v322, %v478
    %v487 = vsub.f32 %v327, %v478
    %v488 = vsub.f32 %v332, %v478
    %v489 = vsub.f32 %v337, %v478
    %v490 = vsub.f32 %v342, %v478
    %v491 = vsub.f32 %v347, %v478
    %v492 = vsub.f32 %v352, %v478
    %v493 = vsub.f32 %v357, %v478
    %v494 = vsub.f32 %v362, %v478
    %v495 = vsub.f32 %v367, %v478
    %v496 = vsub.f32 %v372, %v478
    %v497 = vsub.f32 %v377, %v478
    %v498 = vsub.f32 %v382, %v478
    %v499 = vadd.f32 %v482, 1e-05
    %v500 = vrsqrt.pop %v499
    %v501 = vmul.f32 %v483, %v500
    %v502 = vmul.f32 %v484, %v500
    %v503 = vmul.f32 %v485, %v500
    %v504 = vmul.f32 %v486, %v500
    %v505 = vmul.f32 %v487, %v500
    %v506 = vmul.f32 %v488, %v500
    %v507 = vmul.f32 %v489, %v500
    %v508 = vmul.f32 %v490, %v500
    %v509 = vmul.f32 %v491, %v500
    %v510 = vmul.f32 %v492, %v500
    %v511 = vmul.f32 %v493, %v500
    %v512 = vmul.f32 %v494, %v500
    %v513 = vmul.f32 %v495, %v500
    %v514 = vmul.f32 %v496, %v500
    %v515 = vmul.f32 %v497, %v500
    %v516 = vmul.f32 %v498, %v500
    %v517 = vlaneseq
    %v518 = vshrl.u32 %v517, 7
    %v519 = vsub.s32 0, %v518
    %v520 = vrot.slane %v385, %v519
    %v521 = vmul.f32 %v501, %v520
    %v522 = vmul.f32 %v502, %v520
    %v523 = vmul.f32 %v503, %v520
    %v524 = vmul.f32 %v504, %v520
    %v525 = vmul.f32 %v505, %v520
    %v526 = vmul.f32 %v506, %v520
    %v527 = vmul.f32 %v507, %v520
    %v528 = vmul.f32 %v508, %v520
    %v529 = vmul.f32 %v509, %v520
    %v530 = vmul.f32 %v510, %v520
    %v531 = vmul.f32 %v511, %v520
    %v532 = vmul.f32 %v512, %v520
    %v533 = vmul.f32 %v513, %v520
    %v534 = vmul.f32 %v514, %v520
    %v535 = vmul.f32 %v515, %v520
    %v536 = vmul.f32 %v516, %v520
    %v537 = vlaneseq
    %v538 = vshrl.u32 %v537, 7
    %v539 = vsub.s32 0, %v538
    %v540 = vrot.slane %v386, %v539
    %v541 = vadd.f32 %v521, %v540
    %v542 = vadd.f32 %v522, %v540
    %v543 = vadd.f32 %v523, %v540
    %v544 = vadd.f32 %v524, %v540
    %v545 = vadd.f32 %v525, %v540
    %v546 = vadd.f32 %v526, %v540
    %v547 = vadd.f32 %v527, %v540
    %v548 = vadd.f32 %v528, %v540
    %v549 = vadd.f32 %v529, %v540
    %v550 = vadd.f32 %v530, %v540
    %v551 = vadd.f32 %v531, %v540
    %v552 = vadd.f32 %v532, %v540
    %v553 = vadd.f32 %v533, %v540
    %v554 = vadd.f32 %v534, %v540
    %v555 = vadd.f32 %v535, %v540
    %v556 = vadd.f32 %v536, %v540
    %v557 = vmax.f32 %v541, 0.0
    %v558 = vmax.f32 %v542, 0.0
    %v559 = vmax.f32 %v543, 0.0
    %v560 = vmax.f32 %v544, 0.0
    %v561 = vmax.f32 %v545, 0.0
    %v562 = vmax.f32 %v546, 0.0
    %v563 = vmax.f32 %v547, 0.0
    %v564 = vmax.f32 %v548, 0.0
    %v565 = vmax.f32 %v549, 0.0
    %v566 = vmax.f32 %v550, 0.0
    %v567 = vmax.f32 %v551, 0.0
    %v568 = vmax.f32 %v552, 0.0
    %v569 = vmax.f32 %v553, 0.0
    %v570 = vmax.f32 %v554, 0.0
    %v571 = vmax.f32 %v555, 0.0
    %v572 = vmax.f32 %v556, 0.0
    %573 = vst.msk [vmem:[#allocation2] sm:$0xff] %vm387, 0.0
    %vm574 = vcmask 25600
    %575 = vst.msk [vmem:[#allocation2 + $0x8] sm:$0x3] %vm574, 0.0
    %576 = vst.msk [vmem:[#allocation2 + $0xa0] sm:$0xff] %vm387, 0.0
    %577 = vst.msk [vmem:[#allocation2 + $0xa8] sm:$0x3] %vm574, 0.0
    %s578 = scalar_lea.vmem [#allocation2], 144
    %579 = vst.msk [vmem:[%s578] sm:$0xff] %vm387, 0.0
    %580 = vst.msk [vmem:[%s578 + $0x8] sm:$0x3] %vm574, 0.0
    %581 = vst.msk [vmem:[%s578 + $0xa0] sm:$0xff] %vm387, 0.0
    %582 = vst.msk [vmem:[%s578 + $0xa8] sm:$0x3] %vm574, 0.0
    %vm583 = vcmask 24576
    %584 = vst.msk [vmem:[#allocation2] sm:$0x1] %vm583, 0.0
    %585 = vst.msk [vmem:[#allocation2 + $0x10] sm:$0x1] %vm583, 0.0
    %586 = vst.msk [vmem:[#allocation2 + $0x20] sm:$0x1] %vm583, 0.0
    %587 = vst.msk [vmem:[#allocation2 + $0x30] sm:$0x1] %vm583, 0.0
    %588 = vst.msk [vmem:[#allocation2 + $0x40] sm:$0x1] %vm583, 0.0
    %589 = vst.msk [vmem:[#allocation2 + $0x50] sm:$0x1] %vm583, 0.0
    %590 = vst.msk [vmem:[#allocation2 + $0x60] sm:$0x1] %vm583, 0.0
    %591 = vst.msk [vmem:[#allocation2 + $0x70] sm:$0x1] %vm583, 0.0
    %592 = vst.msk [vmem:[#allocation2 + $0x80] sm:$0x1] %vm583, 0.0
    %593 = vst.msk [vmem:[#allocation2 + $0x90] sm:$0x1] %vm583, 0.0
    %594 = vst.msk [vmem:[#allocation2 + $0xa0] sm:$0x1] %vm583, 0.0
    %595 = vst.msk [vmem:[#allocation2 + $0xb0] sm:$0x1] %vm583, 0.0
    %596 = vst.msk [vmem:[#allocation2 + $0xc0] sm:$0x1] %vm583, 0.0
    %597 = vst.msk [vmem:[#allocation2 + $0xd0] sm:$0x1] %vm583, 0.0
    %598 = vst.msk [vmem:[#allocation2 + $0xe0] sm:$0x1] %vm583, 0.0
    %599 = vst.msk [vmem:[#allocation2 + $0xf0] sm:$0x1] %vm583, 0.0
    %600 = vst.msk [vmem:[#allocation2 + $0x100] sm:$0x1] %vm583, 0.0
    %601 = vst.msk [vmem:[#allocation2 + $0x110] sm:$0x1] %vm583, 0.0
    %602 = vst.msk [vmem:[#allocation2 + $0x120] sm:$0x1] %vm583, 0.0
    %603 = vst.msk [vmem:[#allocation2 + $0x130] sm:$0x1] %vm583, 0.0
    %604 = vst.msk [vmem:[#allocation2 + $0x9] sm:$0x1] %vm583, 0.0
    %605 = vst.msk [vmem:[#allocation2 + $0x19] sm:$0x1] %vm583, 0.0
    %606 = vst.msk [vmem:[#allocation2 + $0x29] sm:$0x1] %vm583, 0.0
    %607 = vst.msk [vmem:[#allocation2 + $0x39] sm:$0x1] %vm583, 0.0
    %608 = vst.msk [vmem:[#allocation2 + $0x49] sm:$0x1] %vm583, 0.0
    %609 = vst.msk [vmem:[#allocation2 + $0x59] sm:$0x1] %vm583, 0.0
    %610 = vst.msk [vmem:[#allocation2 + $0x69] sm:$0x1] %vm583, 0.0
    %611 = vst.msk [vmem:[#allocation2 + $0x79] sm:$0x1] %vm583, 0.0
    %612 = vst.msk [vmem:[#allocation2 + $0x89] sm:$0x1] %vm583, 0.0
    %613 = vst.msk [vmem:[#allocation2 + $0x99] sm:$0x1] %vm583, 0.0
    %614 = vst.msk [vmem:[#allocation2 + $0xa9] sm:$0x1] %vm583, 0.0
    %615 = vst.msk [vmem:[#allocation2 + $0xb9] sm:$0x1] %vm583, 0.0
    %616 = vst.msk [vmem:[#allocation2 + $0xc9] sm:$0x1] %vm583, 0.0
    %617 = vst.msk [vmem:[#allocation2 + $0xd9] sm:$0x1] %vm583, 0.0
    %618 = vst.msk [vmem:[#allocation2 + $0xe9] sm:$0x1] %vm583, 0.0
    %619 = vst.msk [vmem:[#allocation2 + $0xf9] sm:$0x1] %vm583, 0.0
    %620 = vst.msk [vmem:[#allocation2 + $0x109] sm:$0x1] %vm583, 0.0
    %621 = vst.msk [vmem:[#allocation2 + $0x119] sm:$0x1] %vm583, 0.0
    %622 = vst.msk [vmem:[#allocation2 + $0x129] sm:$0x1] %vm583, 0.0
    %623 = vst.msk [vmem:[#allocation2 + $0x139] sm:$0x1] %vm583, 0.0
    %s624 = scalar_lea.vmem [#allocation2], 16
    %625 = vst.msk [vmem:[%s624 + $0x1] sm:$0xff] %vm387, %v557
    %626 = vst.msk [vmem:[%s624 + $0x11] sm:$0xff] %vm387, %v558
    %627 = vst.msk [vmem:[%s624 + $0x21] sm:$0xff] %vm387, %v559
    %628 = vst.msk [vmem:[%s624 + $0x31] sm:$0xff] %vm387, %v560
    %629 = vst.msk [vmem:[%s624 + $0x41] sm:$0xff] %vm387, %v561
    %630 = vst.msk [vmem:[%s624 + $0x51] sm:$0xff] %vm387, %v562
    %631 = vst.msk [vmem:[%s624 + $0x61] sm:$0xff] %vm387, %v563
    %632 = vst.msk [vmem:[%s624 + $0x71] sm:$0xff] %vm387, %v564
    %633 = vst.msk [vmem:[%s624 + $0xa1] sm:$0xff] %vm387, %v565
    %634 = vst.msk [vmem:[%s624 + $0xb1] sm:$0xff] %vm387, %v566
    %635 = vst.msk [vmem:[%s624 + $0xc1] sm:$0xff] %vm387, %v567
    %636 = vst.msk [vmem:[%s624 + $0xd1] sm:$0xff] %vm387, %v568
    %637 = vst.msk [vmem:[%s624 + $0xe1] sm:$0xff] %vm387, %v569
    %638 = vst.msk [vmem:[%s624 + $0xf1] sm:$0xff] %vm387, %v570
    %639 = vst.msk [vmem:[%s624 + $0x101] sm:$0xff] %vm387, %v571
    %640 = vst.msk [vmem:[%s624 + $0x111] sm:$0xff] %vm387, %v572
    %v641 = vld [vmem:[#allocation2] sm:$0xff]
    %v642 = vld [vmem:[#allocation2 + $0x10] sm:$0xff]
    %v643 = vld [vmem:[#allocation2 + $0x20] sm:$0xff]
    %v644 = vld [vmem:[#allocation2 + $0x30] sm:$0xff]
    %v645 = vld [vmem:[#allocation2 + $0x40] sm:$0xff]
    %v646 = vld [vmem:[#allocation2 + $0x50] sm:$0xff]
    %v647 = vld [vmem:[#allocation2 + $0x60] sm:$0xff]
    %v648 = vld [vmem:[#allocation2 + $0x70] sm:$0xff]
    %v649 = vld [vmem:[#allocation2 + $0xa0] sm:$0xff]
    %v650 = vld [vmem:[#allocation2 + $0xb0] sm:$0xff]
    %v651 = vld [vmem:[#allocation2 + $0xc0] sm:$0xff]
    %v652 = vld [vmem:[#allocation2 + $0xd0] sm:$0xff]
    %v653 = vld [vmem:[#allocation2 + $0xe0] sm:$0xff]
    %v654 = vld [vmem:[#allocation2 + $0xf0] sm:$0xff]
    %v655 = vld [vmem:[#allocation2 + $0x100] sm:$0xff]
    %v656 = vld [vmem:[#allocation2 + $0x110] sm:$0xff]
    %v657 = vld [vmem:[%s1 + $0x8] sm:$0xf]
    %v658 = vld [vmem:[#allocation2 + $0x1] sm:$0xff]
    %v659 = vld [vmem:[#allocation2 + $0x11] sm:$0xff]
    %v660 = vld [vmem:[#allocation2 + $0x21] sm:$0xff]
    %v661 = vld [vmem:[#allocation2 + $0x31] sm:$0xff]
    %v662 = vld [vmem:[#allocation2 + $0x41] sm:$0xff]
    %v663 = vld [vmem:[#allocation2 + $0x51] sm:$0xff]
    %v664 = vld [vmem:[#allocation2 + $0x61] sm:$0xff]
    %v665 = vld [vmem:[#allocation2 + $0x71] sm:$0xff]
    %v666 = vld [vmem:[#allocation2 + $0xa1] sm:$0xff]
    %v667 = vld [vmem:[#allocation2 + $0xb1] sm:$0xff]
    %v668 = vld [vmem:[#allocation2 + $0xc1] sm:$0xff]
    %v669 = vld [vmem:[#allocation2 + $0xd1] sm:$0xff]
    %v670 = vld [vmem:[#allocation2 + $0xe1] sm:$0xff]
    %v671 = vld [vmem:[#allocation2 + $0xf1] sm:$0xff]
    %v672 = vld [vmem:[#allocation2 + $0x101] sm:$0xff]
    %v673 = vld [vmem:[#allocation2 + $0x111] sm:$0xff]
    %v674 = vld [vmem:[%s1 + $0x10] sm:$0xf]
    %v676 = vsel %vm387, %v658, 0
    %v679 = vsel %vm387, %v659, 0
    %v682 = vsel %vm387, %v660, 0
    %v685 = vsel %vm387, %v661, 0
    %v688 = vsel %vm387, %v662, 0
    %v691 = vsel %vm387, %v663, 0
    %v694 = vsel %vm387, %v664, 0
    %v697 = vsel %vm387, %v665, 0
    %v700 = vsel %vm387, %v666, 0
    %v703 = vsel %vm387, %v667, 0
    %v706 = vsel %vm387, %v668, 0
    %v709 = vsel %vm387, %v669, 0
    %v712 = vsel %vm387, %v670, 0
    %v715 = vsel %vm387, %v671, 0
    %v718 = vsel %vm387, %v672, 0
    %v721 = vsel %vm387, %v673, 0
    %vm723 = vcmask 1043456
    %v725 = vsel %vm723, %v674, 0
    %727 = vmatprep.subr.mxu0 0.0
    %728 = vmatpush1.msra.mxu0 %v725
    %729 = vmatprep.subr.mxu0 0.0
    %730 = vmatpush1.msra.mxu0 0.0
    %731 = vmatprep.subr.mxu0 0.0
    %732 = vmatpush1.msra.mxu0 0.0
    %733 = vmatprep.subr.mxu0 0.0
    %734 = vmatpush1.msra.mxu0 0.0
    %735 = vmatprep.subr.mxu0 0.0
    %736 = vmatpush1.msra.mxu0 0.0
    %737 = vmatprep.subr.mxu0 0.0
    %738 = vmatpush1.msra.mxu0 0.0
    %739 = vmatprep.subr.mxu0 0.0
    %740 = vmatpush1.msra.mxu0 0.0
    %741 = vmatprep.subr.mxu0 0.0
    %742 = vmatpush1.msra.mxu0 0.0
    %743 = vmatprep.subr.mxu0 0.0
    %744 = vmatpush1.msra.mxu0 0.0
    %745 = vmatprep.subr.mxu0 0.0
    %746 = vmatpush1.msra.mxu0 0.0
    %747 = vmatprep.subr.mxu0 0.0
    %748 = vmatpush1.msra.mxu0 0.0
    %749 = vmatprep.subr.mxu0 0.0
    %750 = vmatpush1.msra.mxu0 0.0
    %751 = vmatprep.subr.mxu0 0.0
    %752 = vmatpush1.msra.mxu0 0.0
    %753 = vmatprep.subr.mxu0 0.0
    %754 = vmatpush1.msra.mxu0 0.0
    %755 = vmatprep.subr.mxu0 0.0
    %756 = vmatpush1.msra.mxu0 0.0
    %757 = vmatprep.subr.mxu0 0.0
    %758 = vmatpush1.msra.mxu0 0.0
    %759 = vmatprep.subr.mxu0 0.0
    %760 = vmatpush1.msra.mxu0 0.0
    %761 = vmatprep.subr.mxu0 0.0
    %762 = vmatpush1.msra.mxu0 0.0
    %763 = vmatprep.subr.mxu0 0.0
    %764 = vmatpush1.msra.mxu0 0.0
    %765 = vmatprep.subr.mxu0 0.0
    %766 = vmatpush1.msra.mxu0 0.0
    %767 = vmatprep.subr.mxu0 0.0
    %768 = vmatpush1.msra.mxu0 0.0
    %769 = vmatprep.subr.mxu0 0.0
    %770 = vmatpush1.msra.mxu0 0.0
    %771 = vmatprep.subr.mxu0 0.0
    %772 = vmatpush1.msra.mxu0 0.0
    %773 = vmatprep.subr.mxu0 0.0
    %774 = vmatpush1.msra.mxu0 0.0
    %775 = vmatprep.subr.mxu0 0.0
    %776 = vmatpush1.msra.mxu0 0.0
    %777 = vmatprep.subr.mxu0 0.0
    %778 = vmatpush1.msra.mxu0 0.0
    %779 = vmatprep.subr.mxu0 0.0
    %780 = vmatpush1.msra.mxu0 0.0
    %781 = vmatprep.subr.mxu0 0.0
    %782 = vmatpush1.msra.mxu0 0.0
    %783 = vmatprep.subr.mxu0 0.0
    %784 = vmatpush1.msra.mxu0 0.0
    %785 = vmatprep.subr.mxu0 0.0
    %786 = vmatpush1.msra.mxu0 0.0
    %787 = vmatprep.subr.mxu0 0.0
    %788 = vmatpush1.msra.mxu0 0.0
    %789 = vmatprep.subr.mxu0 0.0
    %790 = vmatpush1.msra.mxu0 0.0
    %791 = vmatprep.mubr.f32.mxu0 0.0
    %792 = vmatmul.mubr.f32.gmra.mrb[0].mxu0 %v676
    %v793 = vpop.f32.mrb[0].mxu0
    %v794 = vadd.f32 0.0, %v793
    %v795 = vpop.f32.mrb[0].mxu0
    %796 = vmatprep.mubr.f32.mxu0 0.0
    %797 = vmatmul.mubr.f32.gmra.mrb[0].mxu0 %v679
    %v798 = vpop.f32.mrb[0].mxu0
    %v799 = vadd.f32 0.0, %v798
    %v800 = vpop.f32.mrb[0].mxu0
    %801 = vmatprep.mubr.f32.mxu0 0.0
    %802 = vmatmul.mubr.f32.gmra.mrb[0].mxu0 %v682
    %v803 = vpop.f32.mrb[0].mxu0
    %v804 = vadd.f32 0.0, %v803
    %v805 = vpop.f32.mrb[0].mxu0
    %806 = vmatprep.mubr.f32.mxu0 0.0
    %807 = vmatmul.mubr.f32.gmra.mrb[0].mxu0 %v685
    %v808 = vpop.f32.mrb[0].mxu0
    %v809 = vadd.f32 0.0, %v808
    %v810 = vpop.f32.mrb[0].mxu0
    %811 = vmatprep.mubr.f32.mxu0 0.0
    %812 = vmatmul.mubr.f32.gmra.mrb[0].mxu0 %v688
    %v813 = vpop.f32.mrb[0].mxu0
    %v814 = vadd.f32 0.0, %v813
    %v815 = vpop.f32.mrb[0].mxu0
    %816 = vmatprep.mubr.f32.mxu0 0.0
    %817 = vmatmul.mubr.f32.gmra.mrb[0].mxu0 %v691
    %v818 = vpop.f32.mrb[0].mxu0
    %v819 = vadd.f32 0.0, %v818
    %v820 = vpop.f32.mrb[0].mxu0
    %821 = vmatprep.mubr.f32.mxu0 0.0
    %822 = vmatmul.mubr.f32.gmra.mrb[0].mxu0 %v694
    %v823 = vpop.f32.mrb[0].mxu0
    %v824 = vadd.f32 0.0, %v823
    %v825 = vpop.f32.mrb[0].mxu0
    %826 = vmatprep.mubr.f32.mxu0 0.0
    %827 = vmatmul.mubr.f32.gmra.mrb[0].mxu0 %v697
    %v828 = vpop.f32.mrb[0].mxu0
    %v829 = vadd.f32 0.0, %v828
    %v830 = vpop.f32.mrb[0].mxu0
    %831 = vmatprep.mubr.f32.mxu0 0.0
    %832 = vmatmul.mubr.f32.gmra.mrb[0].mxu0 %v700
    %v833 = vpop.f32.mrb[0].mxu0
    %v834 = vadd.f32 0.0, %v833
    %v835 = vpop.f32.mrb[0].mxu0
    %836 = vmatprep.mubr.f32.mxu0 0.0
    %837 = vmatmul.mubr.f32.gmra.mrb[0].mxu0 %v703
    %v838 = vpop.f32.mrb[0].mxu0
    %v839 = vadd.f32 0.0, %v838
    %v840 = vpop.f32.mrb[0].mxu0
    %841 = vmatprep.mubr.f32.mxu0 0.0
    %842 = vmatmul.mubr.f32.gmra.mrb[0].mxu0 %v706
    %v843 = vpop.f32.mrb[0].mxu0
    %v844 = vadd.f32 0.0, %v843
    %v845 = vpop.f32.mrb[0].mxu0
    %846 = vmatprep.mubr.f32.mxu0 0.0
    %847 = vmatmul.mubr.f32.gmra.mrb[0].mxu0 %v709
    %v848 = vpop.f32.mrb[0].mxu0
    %v849 = vadd.f32 0.0, %v848
    %v850 = vpop.f32.mrb[0].mxu0
    %851 = vmatprep.mubr.f32.mxu0 0.0
    %852 = vmatmul.mubr.f32.gmra.mrb[0].mxu0 %v712
    %v853 = vpop.f32.mrb[0].mxu0
    %v854 = vadd.f32 0.0, %v853
    %v855 = vpop.f32.mrb[0].mxu0
    %856 = vmatprep.mubr.f32.mxu0 0.0
    %857 = vmatmul.mubr.f32.gmra.mrb[0].mxu0 %v715
    %v858 = vpop.f32.mrb[0].mxu0
    %v859 = vadd.f32 0.0, %v858
    %v860 = vpop.f32.mrb[0].mxu0
    %861 = vmatprep.mubr.f32.mxu0 0.0
    %862 = vmatmul.mubr.f32.gmra.mrb[0].mxu0 %v718
    %v863 = vpop.f32.mrb[0].mxu0
    %v864 = vadd.f32 0.0, %v863
    %v865 = vpop.f32.mrb[0].mxu0
    %866 = vmatprep.mubr.f32.mxu0 0.0
    %867 = vmatmul.mubr.f32.gmra.mrb[0].mxu0 %v721
    %v868 = vpop.f32.mrb[0].mxu0
    %v869 = vadd.f32 0.0, %v868
    %v870 = vpop.f32.mrb[0].mxu0
    %871 = vdwg.mxu0
    %v873 = vsel %vm387, %v641, 0
    %v876 = vsel %vm387, %v642, 0
    %v879 = vsel %vm387, %v643, 0
    %v882 = vsel %vm387, %v644, 0
    %v885 = vsel %vm387, %v645, 0
    %v888 = vsel %vm387, %v646, 0
    %v891 = vsel %vm387, %v647, 0
    %v894 = vsel %vm387, %v648, 0
    %v897 = vsel %vm387, %v649, 0
    %v900 = vsel %vm387, %v650, 0
    %v903 = vsel %vm387, %v651, 0
    %v906 = vsel %vm387, %v652, 0
    %v909 = vsel %vm387, %v653, 0
    %v912 = vsel %vm387, %v654, 0
    %v915 = vsel %vm387, %v655, 0
    %v918 = vsel %vm387, %v656, 0
    %v921 = vsel %vm723, %v657, 0
    %923 = vmatprep.subr.mxu0 0.0
    %924 = vmatpush1.msra.mxu0 %v921
    %925 = vmatprep.subr.mxu0 0.0
    %926 = vmatpush1.msra.mxu0 0.0
    %927 = vmatprep.subr.mxu0 0.0
    %928 = vmatpush1.msra.mxu0 0.0
    %929 = vmatprep.subr.mxu0 0.0
    %930 = vmatpush1.msra.mxu0 0.0
    %931 = vmatprep.subr.mxu0 0.0
    %932 = vmatpush1.msra.mxu0 0.0
    %933 = vmatprep.subr.mxu0 0.0
    %934 = vmatpush1.msra.mxu0 0.0
    %935 = vmatprep.subr.mxu0 0.0
    %936 = vmatpush1.msra.mxu0 0.0
    %937 = vmatprep.subr.mxu0 0.0
    %938 = vmatpush1.msra.mxu0 0.0
    %939 = vmatprep.subr.mxu0 0.0
    %940 = vmatpush1.msra.mxu0 0.0
    %941 = vmatprep.subr.mxu0 0.0
    %942 = vmatpush1.msra.mxu0 0.0
    %943 = vmatprep.subr.mxu0 0.0
    %944 = vmatpush1.msra.mxu0 0.0
    %945 = vmatprep.subr.mxu0 0.0
    %946 = vmatpush1.msra.mxu0 0.0
    %947 = vmatprep.subr.mxu0 0.0
    %948 = vmatpush1.msra.mxu0 0.0
    %949 = vmatprep.subr.mxu0 0.0
    %950 = vmatpush1.msra.mxu0 0.0
    %951 = vmatprep.subr.mxu0 0.0
    %952 = vmatpush1.msra.mxu0 0.0
    %953 = vmatprep.subr.mxu0 0.0
    %954 = vmatpush1.msra.mxu0 0.0
    %955 = vmatprep.subr.mxu0 0.0
    %956 = vmatpush1.msra.mxu0 0.0
    %957 = vmatprep.subr.mxu0 0.0
    %958 = vmatpush1.msra.mxu0 0.0
    %959 = vmatprep.subr.mxu0 0.0
    %960 = vmatpush1.msra.mxu0 0.0
    %961 = vmatprep.subr.mxu0 0.0
    %962 = vmatpush1.msra.mxu0 0.0
    %963 = vmatprep.subr.mxu0 0.0
    %964 = vmatpush1.msra.mxu0 0.0
    %965 = vmatprep.subr.mxu0 0.0
    %966 = vmatpush1.msra.mxu0 0.0
    %967 = vmatprep.subr.mxu0 0.0
    %968 = vmatpush1.msra.mxu0 0.0
    %969 = vmatprep.subr.mxu0 0.0
    %970 = vmatpush1.msra.mxu0 0.0
    %971 = vmatprep.subr.mxu0 0.0
    %972 = vmatpush1.msra.mxu0 0.0
    %973 = vmatprep.subr.mxu0 0.0
    %974 = vmatpush1.msra.mxu0 0.0
    %975 = vmatprep.subr.mxu0 0.0
    %976 = vmatpush1.msra.mxu0 0.0
    %977 = vmatprep.subr.mxu0 0.0
    %978 = vmatpush1.msra.mxu0 0.0
    %979 = vmatprep.subr.mxu0 0.0
    %980 = vmatpush1.msra.mxu0 0.0
    %981 = vmatprep.subr.mxu0 0.0
    %982 = vmatpush1.msra.mxu0 0.0
    %983 = vmatprep.subr.mxu0 0.0
    %984 = vmatpush1.msra.mxu0 0.0
    %985 = vmatprep.subr.mxu0 0.0
    %986 = vmatpush1.msra.mxu0 0.0
    %987 = vmatprep.mubr.f32.mxu0 0.0
    %988 = vmatmul.mubr.f32.gmra.mrb[0].mxu0 %v873
    %v989 = vpop.f32.mrb[0].mxu0
    %v990 = vadd.f32 %v794, %v989
    %v991 = vpop.f32.mrb[0].mxu0
    %992 = vmatprep.mubr.f32.mxu0 0.0
    %993 = vmatmul.mubr.f32.gmra.mrb[0].mxu0 %v876
    %v994 = vpop.f32.mrb[0].mxu0
    %v995 = vadd.f32 %v799, %v994
    %v996 = vpop.f32.mrb[0].mxu0
    %997 = vmatprep.mubr.f32.mxu0 0.0
    %998 = vmatmul.mubr.f32.gmra.mrb[0].mxu0 %v879
    %v999 = vpop.f32.mrb[0].mxu0
    %v1000 = vadd.f32 %v804, %v999
    %v1001 = vpop.f32.mrb[0].mxu0
    %1002 = vmatprep.mubr.f32.mxu0 0.0
    %1003 = vmatmul.mubr.f32.gmra.mrb[0].mxu0 %v882
    %v1004 = vpop.f32.mrb[0].mxu0
    %v1005 = vadd.f32 %v809, %v1004
    %v1006 = vpop.f32.mrb[0].mxu0
    %1007 = vmatprep.mubr.f32.mxu0 0.0
    %1008 = vmatmul.mubr.f32.gmra.mrb[0].mxu0 %v885
    %v1009 = vpop.f32.mrb[0].mxu0
    %v1010 = vadd.f32 %v814, %v1009
    %v1011 = vpop.f32.mrb[0].mxu0
    %1012 = vmatprep.mubr.f32.mxu0 0.0
    %1013 = vmatmul.mubr.f32.gmra.mrb[0].mxu0 %v888
    %v1014 = vpop.f32.mrb[0].mxu0
    %v1015 = vadd.f32 %v819, %v1014
    %v1016 = vpop.f32.mrb[0].mxu0
    %1017 = vmatprep.mubr.f32.mxu0 0.0
    %1018 = vmatmul.mubr.f32.gmra.mrb[0].mxu0 %v891
    %v1019 = vpop.f32.mrb[0].mxu0
    %v1020 = vadd.f32 %v824, %v1019
    %v1021 = vpop.f32.mrb[0].mxu0
    %1022 = vmatprep.mubr.f32.mxu0 0.0
    %1023 = vmatmul.mubr.f32.gmra.mrb[0].mxu0 %v894
    %v1024 = vpop.f32.mrb[0].mxu0
    %v1025 = vadd.f32 %v829, %v1024
    %v1026 = vpop.f32.mrb[0].mxu0
    %1027 = vmatprep.mubr.f32.mxu0 0.0
    %1028 = vmatmul.mubr.f32.gmra.mrb[0].mxu0 %v897
    %v1029 = vpop.f32.mrb[0].mxu0
    %v1030 = vadd.f32 %v834, %v1029
    %v1031 = vpop.f32.mrb[0].mxu0
    %1032 = vmatprep.mubr.f32.mxu0 0.0
    %1033 = vmatmul.mubr.f32.gmra.mrb[0].mxu0 %v900
    %v1034 = vpop.f32.mrb[0].mxu0
    %v1035 = vadd.f32 %v839, %v1034
    %v1036 = vpop.f32.mrb[0].mxu0
    %1037 = vmatprep.mubr.f32.mxu0 0.0
    %1038 = vmatmul.mubr.f32.gmra.mrb[0].mxu0 %v903
    %v1039 = vpop.f32.mrb[0].mxu0
    %v1040 = vadd.f32 %v844, %v1039
    %v1041 = vpop.f32.mrb[0].mxu0
    %1042 = vmatprep.mubr.f32.mxu0 0.0
    %1043 = vmatmul.mubr.f32.gmra.mrb[0].mxu0 %v906
    %v1044 = vpop.f32.mrb[0].mxu0
    %v1045 = vadd.f32 %v849, %v1044
    %v1046 = vpop.f32.mrb[0].mxu0
    %1047 = vmatprep.mubr.f32.mxu0 0.0
    %1048 = vmatmul.mubr.f32.gmra.mrb[0].mxu0 %v909
    %v1049 = vpop.f32.mrb[0].mxu0
    %v1050 = vadd.f32 %v854, %v1049
    %v1051 = vpop.f32.mrb[0].mxu0
    %1052 = vmatprep.mubr.f32.mxu0 0.0
    %1053 = vmatmul.mubr.f32.gmra.mrb[0].mxu0 %v912
    %v1054 = vpop.f32.mrb[0].mxu0
    %v1055 = vadd.f32 %v859, %v1054
    %v1056 = vpop.f32.mrb[0].mxu0
    %1057 = vmatprep.mubr.f32.mxu0 0.0
    %1058 = vmatmul.mubr.f32.gmra.mrb[0].mxu0 %v915
    %v1059 = vpop.f32.mrb[0].mxu0
    %v1060 = vadd.f32 %v864, %v1059
    %v1061 = vpop.f32.mrb[0].mxu0
    %1062 = vmatprep.mubr.f32.mxu0 0.0
    %1063 = vmatmul.mubr.f32.gmra.mrb[0].mxu0 %v918
    %v1064 = vpop.f32.mrb[0].mxu0
    %v1065 = vadd.f32 %v869, %v1064
    %v1066 = vpop.f32.mrb[0].mxu0
    %1067 = vdwg.mxu0
    %v1068 = vld [vmem:[#allocation2 + $0x2] sm:$0xff]
    %v1069 = vld [vmem:[#allocation2 + $0x12] sm:$0xff]
    %v1070 = vld [vmem:[#allocation2 + $0x22] sm:$0xff]
    %v1071 = vld [vmem:[#allocation2 + $0x32] sm:$0xff]
    %v1072 = vld [vmem:[#allocation2 + $0x42] sm:$0xff]
    %v1073 = vld [vmem:[#allocation2 + $0x52] sm:$0xff]
    %v1074 = vld [vmem:[#allocation2 + $0x62] sm:$0xff]
    %v1075 = vld [vmem:[#allocation2 + $0x72] sm:$0xff]
    %v1076 = vld [vmem:[#allocation2 + $0xa2] sm:$0xff]
    %v1077 = vld [vmem:[#allocation2 + $0xb2] sm:$0xff]
    %v1078 = vld [vmem:[#allocation2 + $0xc2] sm:$0xff]
    %v1079 = vld [vmem:[#allocation2 + $0xd2] sm:$0xff]
    %v1080 = vld [vmem:[#allocation2 + $0xe2] sm:$0xff]
    %v1081 = vld [vmem:[#allocation2 + $0xf2] sm:$0xff]
    %v1082 = vld [vmem:[#allocation2 + $0x102] sm:$0xff]
    %v1083 = vld [vmem:[#allocation2 + $0x112] sm:$0xff]
    %v1084 = vld [vmem:[%s1 + $0x18] sm:$0xf]
    %v1086 = vsel %vm387, %v1068, 0
    %v1089 = vsel %vm387, %v1069, 0
    %v1092 = vsel %vm387, %v1070, 0
    %v1095 = vsel %vm387, %v1071, 0
    %v1098 = vsel %vm387, %v1072, 0
    %v1101 = vsel %vm387, %v1073, 0
    %v1104 = vsel %vm387, %v1074, 0
    %v1107 = vsel %vm387, %v1075, 0
    %v1110 = vsel %vm387, %v1076, 0
    %v1113 = vsel %vm387, %v1077, 0
    %v1116 = vsel %vm387, %v1078, 0
    %v1119 = vsel %vm387, %v1079, 0
    %v1122 = vsel %vm387, %v1080, 0
    %v1125 = vsel %vm387, %v1081, 0
    %v1128 = vsel %vm387, %v1082, 0
    %v1131 = vsel %vm387, %v1083, 0
    %v1134 = vsel %vm723, %v1084, 0
    %1136 = vmatprep.subr.mxu0 0.0
    %1137 = vmatpush1.msra.mxu0 %v1134
    %1138 = vmatprep.subr.mxu0 0.0
    %1139 = vmatpush1.msra.mxu0 0.0
    %1140 = vmatprep.subr.mxu0 0.0
    %1141 = vmatpush1.msra.mxu0 0.0
    %1142 = vmatprep.subr.mxu0 0.0
    %1143 = vmatpush1.msra.mxu0 0.0
    %1144 = vmatprep.subr.mxu0 0.0
    %1145 = vmatpush1.msra.mxu0 0.0
    %1146 = vmatprep.subr.mxu0 0.0
    %1147 = vmatpush1.msra.mxu0 0.0
    %1148 = vmatprep.subr.mxu0 0.0
    %1149 = vmatpush1.msra.mxu0 0.0
    %1150 = vmatprep.subr.mxu0 0.0
    %1151 = vmatpush1.msra.mxu0 0.0
    %1152 = vmatprep.subr.mxu0 0.0
    %1153 = vmatpush1.msra.mxu0 0.0
    %1154 = vmatprep.subr.mxu0 0.0
    %1155 = vmatpush1.msra.mxu0 0.0
    %1156 = vmatprep.subr.mxu0 0.0
    %1157 = vmatpush1.msra.mxu0 0.0
    %1158 = vmatprep.subr.mxu0 0.0
    %1159 = vmatpush1.msra.mxu0 0.0
    %1160 = vmatprep.subr.mxu0 0.0
    %1161 = vmatpush1.msra.mxu0 0.0
    %1162 = vmatprep.subr.mxu0 0.0
    %1163 = vmatpush1.msra.mxu0 0.0
    %1164 = vmatprep.subr.mxu0 0.0
    %1165 = vmatpush1.msra.mxu0 0.0
    %1166 = vmatprep.subr.mxu0 0.0
    %1167 = vmatpush1.msra.mxu0 0.0
    %1168 = vmatprep.subr.mxu0 0.0
    %1169 = vmatpush1.msra.mxu0 0.0
    %1170 = vmatprep.subr.mxu0 0.0
    %1171 = vmatpush1.msra.mxu0 0.0
    %1172 = vmatprep.subr.mxu0 0.0
    %1173 = vmatpush1.msra.mxu0 0.0
    %1174 = vmatprep.subr.mxu0 0.0
    %1175 = vmatpush1.msra.mxu0 0.0
    %1176 = vmatprep.subr.mxu0 0.0
    %1177 = vmatpush1.msra.mxu0 0.0
    %1178 = vmatprep.subr.mxu0 0.0
    %1179 = vmatpush1.msra.mxu0 0.0
    %1180 = vmatprep.subr.mxu0 0.0
    %1181 = vmatpush1.msra.mxu0 0.0
    %1182 = vmatprep.subr.mxu0 0.0
    %1183 = vmatpush1.msra.mxu0 0.0
    %1184 = vmatprep.subr.mxu0 0.0
    %1185 = vmatpush1.msra.mxu0 0.0
    %1186 = vmatprep.subr.mxu0 0.0
    %1187 = vmatpush1.msra.mxu0 0.0
    %1188 = vmatprep.subr.mxu0 0.0
    %1189 = vmatpush1.msra.mxu0 0.0
    %1190 = vmatprep.subr.mxu0 0.0
    %1191 = vmatpush1.msra.mxu0 0.0
    %1192 = vmatprep.subr.mxu0 0.0
    %1193 = vmatpush1.msra.mxu0 0.0
    %1194 = vmatprep.subr.mxu0 0.0
    %1195 = vmatpush1.msra.mxu0 0.0
    %1196 = vmatprep.subr.mxu0 0.0
    %1197 = vmatpush1.msra.mxu0 0.0
    %1198 = vmatprep.subr.mxu0 0.0
    %1199 = vmatpush1.msra.mxu0 0.0
    %1200 = vmatprep.mubr.f32.mxu0 0.0
    %1201 = vmatmul.mubr.f32.gmra.mrb[0].mxu0 %v1086
    %v1202 = vpop.f32.mrb[0].mxu0
    %v1203 = vadd.f32 0.0, %v1202
    %v1204 = vpop.f32.mrb[0].mxu0
    %1205 = vmatprep.mubr.f32.mxu0 0.0
    %1206 = vmatmul.mubr.f32.gmra.mrb[0].mxu0 %v1089
    %v1207 = vpop.f32.mrb[0].mxu0
    %v1208 = vadd.f32 0.0, %v1207
    %v1209 = vpop.f32.mrb[0].mxu0
    %1210 = vmatprep.mubr.f32.mxu0 0.0
    %1211 = vmatmul.mubr.f32.gmra.mrb[0].mxu0 %v1092
    %v1212 = vpop.f32.mrb[0].mxu0
    %v1213 = vadd.f32 0.0, %v1212
    %v1214 = vpop.f32.mrb[0].mxu0
    %1215 = vmatprep.mubr.f32.mxu0 0.0
    %1216 = vmatmul.mubr.f32.gmra.mrb[0].mxu0 %v1095
    %v1217 = vpop.f32.mrb[0].mxu0
    %v1218 = vadd.f32 0.0, %v1217
    %v1219 = vpop.f32.mrb[0].mxu0
    %1220 = vmatprep.mubr.f32.mxu0 0.0
    %1221 = vmatmul.mubr.f32.gmra.mrb[0].mxu0 %v1098
    %v1222 = vpop.f32.mrb[0].mxu0
    %v1223 = vadd.f32 0.0, %v1222
    %v1224 = vpop.f32.mrb[0].mxu0
    %1225 = vmatprep.mubr.f32.mxu0 0.0
    %1226 = vmatmul.mubr.f32.gmra.mrb[0].mxu0 %v1101
    %v1227 = vpop.f32.mrb[0].mxu0
    %v1228 = vadd.f32 0.0, %v1227
    %v1229 = vpop.f32.mrb[0].mxu0
    %1230 = vmatprep.mubr.f32.mxu0 0.0
    %1231 = vmatmul.mubr.f32.gmra.mrb[0].mxu0 %v1104
    %v1232 = vpop.f32.mrb[0].mxu0
    %v1233 = vadd.f32 0.0, %v1232
    %v1234 = vpop.f32.mrb[0].mxu0
    %1235 = vmatprep.mubr.f32.mxu0 0.0
    %1236 = vmatmul.mubr.f32.gmra.mrb[0].mxu0 %v1107
    %v1237 = vpop.f32.mrb[0].mxu0
    %v1238 = vadd.f32 0.0, %v1237
    %v1239 = vpop.f32.mrb[0].mxu0
    %1240 = vmatprep.mubr.f32.mxu0 0.0
    %1241 = vmatmul.mubr.f32.gmra.mrb[0].mxu0 %v1110
    %v1242 = vpop.f32.mrb[0].mxu0
    %v1243 = vadd.f32 0.0, %v1242
    %v1244 = vpop.f32.mrb[0].mxu0
    %1245 = vmatprep.mubr.f32.mxu0 0.0
    %1246 = vmatmul.mubr.f32.gmra.mrb[0].mxu0 %v1113
    %v1247 = vpop.f32.mrb[0].mxu0
    %v1248 = vadd.f32 0.0, %v1247
    %v1249 = vpop.f32.mrb[0].mxu0
    %1250 = vmatprep.mubr.f32.mxu0 0.0
    %1251 = vmatmul.mubr.f32.gmra.mrb[0].mxu0 %v1116
    %v1252 = vpop.f32.mrb[0].mxu0
    %v1253 = vadd.f32 0.0, %v1252
    %v1254 = vpop.f32.mrb[0].mxu0
    %1255 = vmatprep.mubr.f32.mxu0 0.0
    %1256 = vmatmul.mubr.f32.gmra.mrb[0].mxu0 %v1119
    %v1257 = vpop.f32.mrb[0].mxu0
    %v1258 = vadd.f32 0.0, %v1257
    %v1259 = vpop.f32.mrb[0].mxu0
    %1260 = vmatprep.mubr.f32.mxu0 0.0
    %1261 = vmatmul.mubr.f32.gmra.mrb[0].mxu0 %v1122
    %v1262 = vpop.f32.mrb[0].mxu0
    %v1263 = vadd.f32 0.0, %v1262
    %v1264 = vpop.f32.mrb[0].mxu0
    %1265 = vmatprep.mubr.f32.mxu0 0.0
    %1266 = vmatmul.mubr.f32.gmra.mrb[0].mxu0 %v1125
    %v1267 = vpop.f32.mrb[0].mxu0
    %v1268 = vadd.f32 0.0, %v1267
    %v1269 = vpop.f32.mrb[0].mxu0
    %1270 = vmatprep.mubr.f32.mxu0 0.0
    %1271 = vmatmul.mubr.f32.gmra.mrb[0].mxu0 %v1128
    %v1272 = vpop.f32.mrb[0].mxu0
    %v1273 = vadd.f32 0.0, %v1272
    %v1274 = vpop.f32.mrb[0].mxu0
    %1275 = vmatprep.mubr.f32.mxu0 0.0
    %1276 = vmatmul.mubr.f32.gmra.mrb[0].mxu0 %v1131
    %v1277 = vpop.f32.mrb[0].mxu0
    %v1278 = vadd.f32 0.0, %v1277
    %v1279 = vpop.f32.mrb[0].mxu0
    %1280 = vdwg.mxu0
    %v1281 = vadd.f32 %v990, %v1203
    %v1282 = vadd.f32 %v995, %v1208
    %v1283 = vadd.f32 %v1000, %v1213
    %v1284 = vadd.f32 %v1005, %v1218
    %v1285 = vadd.f32 %v1010, %v1223
    %v1286 = vadd.f32 %v1015, %v1228
    %v1287 = vadd.f32 %v1020, %v1233
    %v1288 = vadd.f32 %v1025, %v1238
    %v1289 = vadd.f32 %v1030, %v1243
    %v1290 = vadd.f32 %v1035, %v1248
    %v1291 = vadd.f32 %v1040, %v1253
    %v1292 = vadd.f32 %v1045, %v1258
    %v1293 = vadd.f32 %v1050, %v1263
    %v1294 = vadd.f32 %v1055, %v1268
    %v1295 = vadd.f32 %v1060, %v1273
    %v1296 = vadd.f32 %v1065, %v1278
    %v1297 = vld [vmem:[%s624] sm:$0xff]
    %v1298 = vld [vmem:[%s624 + $0x10] sm:$0xff]
    %v1299 = vld [vmem:[%s624 + $0x20] sm:$0xff]
    %v1300 = vld [vmem:[%s624 + $0x30] sm:$0xff]
    %v1301 = vld [vmem:[%s624 + $0x40] sm:$0xff]
    %v1302 = vld [vmem:[%s624 + $0x50] sm:$0xff]
    %v1303 = vld [vmem:[%s624 + $0x60] sm:$0xff]
    %v1304 = vld [vmem:[%s624 + $0x70] sm:$0xff]
    %v1305 = vld [vmem:[%s624 + $0xa0] sm:$0xff]
    %v1306 = vld [vmem:[%s624 + $0xb0] sm:$0xff]
    %v1307 = vld [vmem:[%s624 + $0xc0] sm:$0xff]
    %v1308 = vld [vmem:[%s624 + $0xd0] sm:$0xff]
    %v1309 = vld [vmem:[%s624 + $0xe0] sm:$0xff]
    %v1310 = vld [vmem:[%s624 + $0xf0] sm:$0xff]
    %v1311 = vld [vmem:[%s624 + $0x100] sm:$0xff]
    %v1312 = vld [vmem:[%s624 + $0x110] sm:$0xff]
    %v1313 = vld [vmem:[%s1 + $0x20] sm:$0xf]
    %v1315 = vsel %vm387, %v1297, 0
    %v1318 = vsel %vm387, %v1298, 0
    %v1321 = vsel %vm387, %v1299, 0
    %v1324 = vsel %vm387, %v1300, 0
    %v1327 = vsel %vm387, %v1301, 0
    %v1330 = vsel %vm387, %v1302, 0
    %v1333 = vsel %vm387, %v1303, 0
    %v1336 = vsel %vm387, %v1304, 0
    %v1339 = vsel %vm387, %v1305, 0
    %v1342 = vsel %vm387, %v1306, 0
    %v1345 = vsel %vm387, %v1307, 0
    %v1348 = vsel %vm387, %v1308, 0
    %v1351 = vsel %vm387, %v1309, 0
    %v1354 = vsel %vm387, %v1310, 0
    %v1357 = vsel %vm387, %v1311, 0
    %v1360 = vsel %vm387, %v1312, 0
    %v1363 = vsel %vm723, %v1313, 0
    %1365 = vmatprep.subr.mxu0 0.0
    %1366 = vmatpush1.msra.mxu0 %v1363
    %1367 = vmatprep.subr.mxu0 0.0
    %1368 = vmatpush1.msra.mxu0 0.0
    %1369 = vmatprep.subr.mxu0 0.0
    %1370 = vmatpush1.msra.mxu0 0.0
    %1371 = vmatprep.subr.mxu0 0.0
    %1372 = vmatpush1.msra.mxu0 0.0
    %1373 = vmatprep.subr.mxu0 0.0
    %1374 = vmatpush1.msra.mxu0 0.0
    %1375 = vmatprep.subr.mxu0 0.0
    %1376 = vmatpush1.msra.mxu0 0.0
    %1377 = vmatprep.subr.mxu0 0.0
    %1378 = vmatpush1.msra.mxu0 0.0
    %1379 = vmatprep.subr.mxu0 0.0
    %1380 = vmatpush1.msra.mxu0 0.0
    %1381 = vmatprep.subr.mxu0 0.0
    %1382 = vmatpush1.msra.mxu0 0.0
    %1383 = vmatprep.subr.mxu0 0.0
    %1384 = vmatpush1.msra.mxu0 0.0
    %1385 = vmatprep.subr.mxu0 0.0
    %1386 = vmatpush1.msra.mxu0 0.0
    %1387 = vmatprep.subr.mxu0 0.0
    %1388 = vmatpush1.msra.mxu0 0.0
    %1389 = vmatprep.subr.mxu0 0.0
    %1390 = vmatpush1.msra.mxu0 0.0
    %1391 = vmatprep.subr.mxu0 0.0
    %1392 = vmatpush1.msra.mxu0 0.0
    %1393 = vmatprep.subr.mxu0 0.0
    %1394 = vmatpush1.msra.mxu0 0.0
    %1395 = vmatprep.subr.mxu0 0.0
    %1396 = vmatpush1.msra.mxu0 0.0
    %1397 = vmatprep.subr.mxu0 0.0
    %1398 = vmatpush1.msra.mxu0 0.0
    %1399 = vmatprep.subr.mxu0 0.0
    %1400 = vmatpush1.msra.mxu0 0.0
    %1401 = vmatprep.subr.mxu0 0.0
    %1402 = vmatpush1.msra.mxu0 0.0
    %1403 = vmatprep.subr.mxu0 0.0
    %1404 = vmatpush1.msra.mxu0 0.0
    %1405 = vmatprep.subr.mxu0 0.0
    %1406 = vmatpush1.msra.mxu0 0.0
    %1407 = vmatprep.subr.mxu0 0.0
    %1408 = vmatpush1.msra.mxu0 0.0
    %1409 = vmatprep.subr.mxu0 0.0
    %1410 = vmatpush1.msra.mxu0 0.0
    %1411 = vmatprep.subr.mxu0 0.0
    %1412 = vmatpush1.msra.mxu0 0.0
    %1413 = vmatprep.subr.mxu0 0.0
    %1414 = vmatpush1.msra.mxu0 0.0
    %1415 = vmatprep.subr.mxu0 0.0
    %1416 = vmatpush1.msra.mxu0 0.0
    %1417 = vmatprep.subr.mxu0 0.0
    %1418 = vmatpush1.msra.mxu0 0.0
    %1419 = vmatprep.subr.mxu0 0.0
    %1420 = vmatpush1.msra.mxu0 0.0
    %1421 = vmatprep.subr.mxu0 0.0
    %1422 = vmatpush1.msra.mxu0 0.0
    %1423 = vmatprep.subr.mxu0 0.0
    %1424 = vmatpush1.msra.mxu0 0.0
    %1425 = vmatprep.subr.mxu0 0.0
    %1426 = vmatpush1.msra.mxu0 0.0
    %1427 = vmatprep.subr.mxu0 0.0
    %1428 = vmatpush1.msra.mxu0 0.0
    %1429 = vmatprep.mubr.f32.mxu0 0.0
    %1430 = vmatmul.mubr.f32.gmra.mrb[0].mxu0 %v1315
    %v1431 = vpop.f32.mrb[0].mxu0
    %v1432 = vadd.f32 0.0, %v1431
    %v1433 = vpop.f32.mrb[0].mxu0
    %1434 = vmatprep.mubr.f32.mxu0 0.0
    %1435 = vmatmul.mubr.f32.gmra.mrb[0].mxu0 %v1318
    %v1436 = vpop.f32.mrb[0].mxu0
    %v1437 = vadd.f32 0.0, %v1436
    %v1438 = vpop.f32.mrb[0].mxu0
    %1439 = vmatprep.mubr.f32.mxu0 0.0
    %1440 = vmatmul.mubr.f32.gmra.mrb[0].mxu0 %v1321
    %v1441 = vpop.f32.mrb[0].mxu0
    %v1442 = vadd.f32 0.0, %v1441
    %v1443 = vpop.f32.mrb[0].mxu0
    %1444 = vmatprep.mubr.f32.mxu0 0.0
    %1445 = vmatmul.mubr.f32.gmra.mrb[0].mxu0 %v1324
    %v1446 = vpop.f32.mrb[0].mxu0
    %v1447 = vadd.f32 0.0, %v1446
    %v1448 = vpop.f32.mrb[0].mxu0
    %1449 = vmatprep.mubr.f32.mxu0 0.0
    %1450 = vmatmul.mubr.f32.gmra.mrb[0].mxu0 %v1327
    %v1451 = vpop.f32.mrb[0].mxu0
    %v1452 = vadd.f32 0.0, %v1451
    %v1453 = vpop.f32.mrb[0].mxu0
    %1454 = vmatprep.mubr.f32.mxu0 0.0
    %1455 = vmatmul.mubr.f32.gmra.mrb[0].mxu0 %v1330
    %v1456 = vpop.f32.mrb[0].mxu0
    %v1457 = vadd.f32 0.0, %v1456
    %v1458 = vpop.f32.mrb[0].mxu0
    %1459 = vmatprep.mubr.f32.mxu0 0.0
    %1460 = vmatmul.mubr.f32.gmra.mrb[0].mxu0 %v1333
    %v1461 = vpop.f32.mrb[0].mxu0
    %v1462 = vadd.f32 0.0, %v1461
    %v1463 = vpop.f32.mrb[0].mxu0
    %1464 = vmatprep.mubr.f32.mxu0 0.0
    %1465 = vmatmul.mubr.f32.gmra.mrb[0].mxu0 %v1336
    %v1466 = vpop.f32.mrb[0].mxu0
    %v1467 = vadd.f32 0.0, %v1466
    %v1468 = vpop.f32.mrb[0].mxu0
    %1469 = vmatprep.mubr.f32.mxu0 0.0
    %1470 = vmatmul.mubr.f32.gmra.mrb[0].mxu0 %v1339
    %v1471 = vpop.f32.mrb[0].mxu0
    %v1472 = vadd.f32 0.0, %v1471
    %v1473 = vpop.f32.mrb[0].mxu0
    %1474 = vmatprep.mubr.f32.mxu0 0.0
    %1475 = vmatmul.mubr.f32.gmra.mrb[0].mxu0 %v1342
    %v1476 = vpop.f32.mrb[0].mxu0
    %v1477 = vadd.f32 0.0, %v1476
    %v1478 = vpop.f32.mrb[0].mxu0
    %1479 = vmatprep.mubr.f32.mxu0 0.0
    %1480 = vmatmul.mubr.f32.gmra.mrb[0].mxu0 %v1345
    %v1481 = vpop.f32.mrb[0].mxu0
    %v1482 = vadd.f32 0.0, %v1481
    %v1483 = vpop.f32.mrb[0].mxu0
    %1484 = vmatprep.mubr.f32.mxu0 0.0
    %1485 = vmatmul.mubr.f32.gmra.mrb[0].mxu0 %v1348
    %v1486 = vpop.f32.mrb[0].mxu0
    %v1487 = vadd.f32 0.0, %v1486
    %v1488 = vpop.f32.mrb[0].mxu0
    %1489 = vmatprep.mubr.f32.mxu0 0.0
    %1490 = vmatmul.mubr.f32.gmra.mrb[0].mxu0 %v1351
    %v1491 = vpop.f32.mrb[0].mxu0
    %v1492 = vadd.f32 0.0, %v1491
    %v1493 = vpop.f32.mrb[0].mxu0
    %1494 = vmatprep.mubr.f32.mxu0 0.0
    %1495 = vmatmul.mubr.f32.gmra.mrb[0].mxu0 %v1354
    %v1496 = vpop.f32.mrb[0].mxu0
    %v1497 = vadd.f32 0.0, %v1496
    %v1498 = vpop.f32.mrb[0].mxu0
    %1499 = vmatprep.mubr.f32.mxu0 0.0
    %1500 = vmatmul.mubr.f32.gmra.mrb[0].mxu0 %v1357
    %v1501 = vpop.f32.mrb[0].mxu0
    %v1502 = vadd.f32 0.0, %v1501
    %v1503 = vpop.f32.mrb[0].mxu0
    %1504 = vmatprep.mubr.f32.mxu0 0.0
    %1505 = vmatmul.mubr.f32.gmra.mrb[0].mxu0 %v1360
    %v1506 = vpop.f32.mrb[0].mxu0
    %v1507 = vadd.f32 0.0, %v1506
    %v1508 = vpop.f32.mrb[0].mxu0
    %1509 = vdwg.mxu0
    %v1510 = vadd.f32 %v1281, %v1432
    %v1511 = vadd.f32 %v1282, %v1437
    %v1512 = vadd.f32 %v1283, %v1442
    %v1513 = vadd.f32 %v1284, %v1447
    %v1514 = vadd.f32 %v1285, %v1452
    %v1515 = vadd.f32 %v1286, %v1457
    %v1516 = vadd.f32 %v1287, %v1462
    %v1517 = vadd.f32 %v1288, %v1467
    %v1518 = vadd.f32 %v1289, %v1472
    %v1519 = vadd.f32 %v1290, %v1477
    %v1520 = vadd.f32 %v1291, %v1482
    %v1521 = vadd.f32 %v1292, %v1487
    %v1522 = vadd.f32 %v1293, %v1492
    %v1523 = vadd.f32 %v1294, %v1497
    %v1524 = vadd.f32 %v1295, %v1502
    %v1525 = vadd.f32 %v1296, %v1507
    %v1526 = vld [vmem:[%s624 + $0x1] sm:$0xff]
    %v1527 = vld [vmem:[%s624 + $0x11] sm:$0xff]
    %v1528 = vld [vmem:[%s624 + $0x21] sm:$0xff]
    %v1529 = vld [vmem:[%s624 + $0x31] sm:$0xff]
    %v1530 = vld [vmem:[%s624 + $0x41] sm:$0xff]
    %v1531 = vld [vmem:[%s624 + $0x51] sm:$0xff]
    %v1532 = vld [vmem:[%s624 + $0x61] sm:$0xff]
    %v1533 = vld [vmem:[%s624 + $0x71] sm:$0xff]
    %v1534 = vld [vmem:[%s624 + $0xa1] sm:$0xff]
    %v1535 = vld [vmem:[%s624 + $0xb1] sm:$0xff]
    %v1536 = vld [vmem:[%s624 + $0xc1] sm:$0xff]
    %v1537 = vld [vmem:[%s624 + $0xd1] sm:$0xff]
    %v1538 = vld [vmem:[%s624 + $0xe1] sm:$0xff]
    %v1539 = vld [vmem:[%s624 + $0xf1] sm:$0xff]
    %v1540 = vld [vmem:[%s624 + $0x101] sm:$0xff]
    %v1541 = vld [vmem:[%s624 + $0x111] sm:$0xff]
    %v1542 = vld [vmem:[%s1 + $0x28] sm:$0xf]
    %v1544 = vsel %vm387, %v1526, 0
    %v1547 = vsel %vm387, %v1527, 0
    %v1550 = vsel %vm387, %v1528, 0
    %v1553 = vsel %vm387, %v1529, 0
    %v1556 = vsel %vm387, %v1530, 0
    %v1559 = vsel %vm387, %v1531, 0
    %v1562 = vsel %vm387, %v1532, 0
    %v1565 = vsel %vm387, %v1533, 0
    %v1568 = vsel %vm387, %v1534, 0
    %v1571 = vsel %vm387, %v1535, 0
    %v1574 = vsel %vm387, %v1536, 0
    %v1577 = vsel %vm387, %v1537, 0
    %v1580 = vsel %vm387, %v1538, 0
    %v1583 = vsel %vm387, %v1539, 0
    %v1586 = vsel %vm387, %v1540, 0
    %v1589 = vsel %vm387, %v1541, 0
    %v1592 = vsel %vm723, %v1542, 0
    %1594 = vmatprep.subr.mxu0 0.0
    %1595 = vmatpush1.msra.mxu0 %v1592
    %1596 = vmatprep.subr.mxu0 0.0
    %1597 = vmatpush1.msra.mxu0 0.0
    %1598 = vmatprep.subr.mxu0 0.0
    %1599 = vmatpush1.msra.mxu0 0.0
    %1600 = vmatprep.subr.mxu0 0.0
    %1601 = vmatpush1.msra.mxu0 0.0
    %1602 = vmatprep.subr.mxu0 0.0
    %1603 = vmatpush1.msra.mxu0 0.0
    %1604 = vmatprep.subr.mxu0 0.0
    %1605 = vmatpush1.msra.mxu0 0.0
    %1606 = vmatprep.subr.mxu0 0.0
    %1607 = vmatpush1.msra.mxu0 0.0
    %1608 = vmatprep.subr.mxu0 0.0
    %1609 = vmatpush1.msra.mxu0 0.0
    %1610 = vmatprep.subr.mxu0 0.0
    %1611 = vmatpush1.msra.mxu0 0.0
    %1612 = vmatprep.subr.mxu0 0.0
    %1613 = vmatpush1.msra.mxu0 0.0
    %1614 = vmatprep.subr.mxu0 0.0
    %1615 = vmatpush1.msra.mxu0 0.0
    %1616 = vmatprep.subr.mxu0 0.0
    %1617 = vmatpush1.msra.mxu0 0.0
    %1618 = vmatprep.subr.mxu0 0.0
    %1619 = vmatpush1.msra.mxu0 0.0
    %1620 = vmatprep.subr.mxu0 0.0
    %1621 = vmatpush1.msra.mxu0 0.0
    %1622 = vmatprep.subr.mxu0 0.0
    %1623 = vmatpush1.msra.mxu0 0.0
    %1624 = vmatprep.subr.mxu0 0.0
    %1625 = vmatpush1.msra.mxu0 0.0
    %1626 = vmatprep.subr.mxu0 0.0
    %1627 = vmatpush1.msra.mxu0 0.0
    %1628 = vmatprep.subr.mxu0 0.0
    %1629 = vmatpush1.msra.mxu0 0.0
    %1630 = vmatprep.subr.mxu0 0.0
    %1631 = vmatpush1.msra.mxu0 0.0
    %1632 = vmatprep.subr.mxu0 0.0
    %1633 = vmatpush1.msra.mxu0 0.0
    %1634 = vmatprep.subr.mxu0 0.0
    %1635 = vmatpush1.msra.mxu0 0.0
    %1636 = vmatprep.subr.mxu0 0.0
    %1637 = vmatpush1.msra.mxu0 0.0
    %1638 = vmatprep.subr.mxu0 0.0
    %1639 = vmatpush1.msra.mxu0 0.0
    %1640 = vmatprep.subr.mxu0 0.0
    %1641 = vmatpush1.msra.mxu0 0.0
    %1642 = vmatprep.subr.mxu0 0.0
    %1643 = vmatpush1.msra.mxu0 0.0
    %1644 = vmatprep.subr.mxu0 0.0
    %1645 = vmatpush1.msra.mxu0 0.0
    %1646 = vmatprep.subr.mxu0 0.0
    %1647 = vmatpush1.msra.mxu0 0.0
    %1648 = vmatprep.subr.mxu0 0.0
    %1649 = vmatpush1.msra.mxu0 0.0
    %1650 = vmatprep.subr.mxu0 0.0
    %1651 = vmatpush1.msra.mxu0 0.0
    %1652 = vmatprep.subr.mxu0 0.0
    %1653 = vmatpush1.msra.mxu0 0.0
    %1654 = vmatprep.subr.mxu0 0.0
    %1655 = vmatpush1.msra.mxu0 0.0
    %1656 = vmatprep.subr.mxu0 0.0
    %1657 = vmatpush1.msra.mxu0 0.0
    %1658 = vmatprep.mubr.f32.mxu0 0.0
    %1659 = vmatmul.mubr.f32.gmra.mrb[0].mxu0 %v1544
    %v1660 = vpop.f32.mrb[0].mxu0
    %v1661 = vadd.f32 0.0, %v1660
    %v1662 = vpop.f32.mrb[0].mxu0
    %1663 = vmatprep.mubr.f32.mxu0 0.0
    %1664 = vmatmul.mubr.f32.gmra.mrb[0].mxu0 %v1547
    %v1665 = vpop.f32.mrb[0].mxu0
    %v1666 = vadd.f32 0.0, %v1665
    %v1667 = vpop.f32.mrb[0].mxu0
    %1668 = vmatprep.mubr.f32.mxu0 0.0
    %1669 = vmatmul.mubr.f32.gmra.mrb[0].mxu0 %v1550
    %v1670 = vpop.f32.mrb[0].mxu0
    %v1671 = vadd.f32 0.0, %v1670
    %v1672 = vpop.f32.mrb[0].mxu0
    %1673 = vmatprep.mubr.f32.mxu0 0.0
    %1674 = vmatmul.mubr.f32.gmra.mrb[0].mxu0 %v1553
    %v1675 = vpop.f32.mrb[0].mxu0
    %v1676 = vadd.f32 0.0, %v1675
    %v1677 = vpop.f32.mrb[0].mxu0
    %1678 = vmatprep.mubr.f32.mxu0 0.0
    %1679 = vmatmul.mubr.f32.gmra.mrb[0].mxu0 %v1556
    %v1680 = vpop.f32.mrb[0].mxu0
    %v1681 = vadd.f32 0.0, %v1680
    %v1682 = vpop.f32.mrb[0].mxu0
    %1683 = vmatprep.mubr.f32.mxu0 0.0
    %1684 = vmatmul.mubr.f32.gmra.mrb[0].mxu0 %v1559
    %v1685 = vpop.f32.mrb[0].mxu0
    %v1686 = vadd.f32 0.0, %v1685
    %v1687 = vpop.f32.mrb[0].mxu0
    %1688 = vmatprep.mubr.f32.mxu0 0.0
    %1689 = vmatmul.mubr.f32.gmra.mrb[0].mxu0 %v1562
    %v1690 = vpop.f32.mrb[0].mxu0
    %v1691 = vadd.f32 0.0, %v1690
    %v1692 = vpop.f32.mrb[0].mxu0
    %1693 = vmatprep.mubr.f32.mxu0 0.0
    %1694 = vmatmul.mubr.f32.gmra.mrb[0].mxu0 %v1565
    %v1695 = vpop.f32.mrb[0].mxu0
    %v1696 = vadd.f32 0.0, %v1695
    %v1697 = vpop.f32.mrb[0].mxu0
    %1698 = vmatprep.mubr.f32.mxu0 0.0
    %1699 = vmatmul.mubr.f32.gmra.mrb[0].mxu0 %v1568
    %v1700 = vpop.f32.mrb[0].mxu0
    %v1701 = vadd.f32 0.0, %v1700
    %v1702 = vpop.f32.mrb[0].mxu0
    %1703 = vmatprep.mubr.f32.mxu0 0.0
    %1704 = vmatmul.mubr.f32.gmra.mrb[0].mxu0 %v1571
    %v1705 = vpop.f32.mrb[0].mxu0
    %v1706 = vadd.f32 0.0, %v1705
    %v1707 = vpop.f32.mrb[0].mxu0
    %1708 = vmatprep.mubr.f32.mxu0 0.0
    %1709 = vmatmul.mubr.f32.gmra.mrb[0].mxu0 %v1574
    %v1710 = vpop.f32.mrb[0].mxu0
    %v1711 = vadd.f32 0.0, %v1710
    %v1712 = vpop.f32.mrb[0].mxu0
    %1713 = vmatprep.mubr.f32.mxu0 0.0
    %1714 = vmatmul.mubr.f32.gmra.mrb[0].mxu0 %v1577
    %v1715 = vpop.f32.mrb[0].mxu0
    %v1716 = vadd.f32 0.0, %v1715
    %v1717 = vpop.f32.mrb[0].mxu0
    %1718 = vmatprep.mubr.f32.mxu0 0.0
    %1719 = vmatmul.mubr.f32.gmra.mrb[0].mxu0 %v1580
    %v1720 = vpop.f32.mrb[0].mxu0
    %v1721 = vadd.f32 0.0, %v1720
    %v1722 = vpop.f32.mrb[0].mxu0
    %1723 = vmatprep.mubr.f32.mxu0 0.0
    %1724 = vmatmul.mubr.f32.gmra.mrb[0].mxu0 %v1583
    %v1725 = vpop.f32.mrb[0].mxu0
    %v1726 = vadd.f32 0.0, %v1725
    %v1727 = vpop.f32.mrb[0].mxu0
    %1728 = vmatprep.mubr.f32.mxu0 0.0
    %1729 = vmatmul.mubr.f32.gmra.mrb[0].mxu0 %v1586
    %v1730 = vpop.f32.mrb[0].mxu0
    %v1731 = vadd.f32 0.0, %v1730
    %v1732 = vpop.f32.mrb[0].mxu0
    %1733 = vmatprep.mubr.f32.mxu0 0.0
    %1734 = vmatmul.mubr.f32.gmra.mrb[0].mxu0 %v1589
    %v1735 = vpop.f32.mrb[0].mxu0
    %v1736 = vadd.f32 0.0, %v1735
    %v1737 = vpop.f32.mrb[0].mxu0
    %1738 = vdwg.mxu0
    %v1739 = vadd.f32 %v1510, %v1661
    %v1740 = vadd.f32 %v1511, %v1666
    %v1741 = vadd.f32 %v1512, %v1671
    %v1742 = vadd.f32 %v1513, %v1676
    %v1743 = vadd.f32 %v1514, %v1681
    %v1744 = vadd.f32 %v1515, %v1686
    %v1745 = vadd.f32 %v1516, %v1691
    %v1746 = vadd.f32 %v1517, %v1696
    %v1747 = vadd.f32 %v1518, %v1701
    %v1748 = vadd.f32 %v1519, %v1706
    %v1749 = vadd.f32 %v1520, %v1711
    %v1750 = vadd.f32 %v1521, %v1716
    %v1751 = vadd.f32 %v1522, %v1721
    %v1752 = vadd.f32 %v1523, %v1726
    %v1753 = vadd.f32 %v1524, %v1731
    %v1754 = vadd.f32 %v1525, %v1736
    %v1755 = vld [vmem:[%s624 + $0x2] sm:$0xff]
    %v1756 = vld [vmem:[%s624 + $0x12] sm:$0xff]
    %v1757 = vld [vmem:[%s624 + $0x22] sm:$0xff]
    %v1758 = vld [vmem:[%s624 + $0x32] sm:$0xff]
    %v1759 = vld [vmem:[%s624 + $0x42] sm:$0xff]
    %v1760 = vld [vmem:[%s624 + $0x52] sm:$0xff]
    %v1761 = vld [vmem:[%s624 + $0x62] sm:$0xff]
    %v1762 = vld [vmem:[%s624 + $0x72] sm:$0xff]
    %v1763 = vld [vmem:[%s624 + $0xa2] sm:$0xff]
    %v1764 = vld [vmem:[%s624 + $0xb2] sm:$0xff]
    %v1765 = vld [vmem:[%s624 + $0xc2] sm:$0xff]
    %v1766 = vld [vmem:[%s624 + $0xd2] sm:$0xff]
    %v1767 = vld [vmem:[%s624 + $0xe2] sm:$0xff]
    %v1768 = vld [vmem:[%s624 + $0xf2] sm:$0xff]
    %v1769 = vld [vmem:[%s624 + $0x102] sm:$0xff]
    %v1770 = vld [vmem:[%s624 + $0x112] sm:$0xff]
    %v1771 = vld [vmem:[%s1 + $0x30] sm:$0xf]
    %v1773 = vsel %vm387, %v1755, 0
    %v1776 = vsel %vm387, %v1756, 0
    %v1779 = vsel %vm387, %v1757, 0
    %v1782 = vsel %vm387, %v1758, 0
    %v1785 = vsel %vm387, %v1759, 0
    %v1788 = vsel %vm387, %v1760, 0
    %v1791 = vsel %vm387, %v1761, 0
    %v1794 = vsel %vm387, %v1762, 0
    %v1797 = vsel %vm387, %v1763, 0
    %v1800 = vsel %vm387, %v1764, 0
    %v1803 = vsel %vm387, %v1765, 0
    %v1806 = vsel %vm387, %v1766, 0
    %v1809 = vsel %vm387, %v1767, 0
    %v1812 = vsel %vm387, %v1768, 0
    %v1815 = vsel %vm387, %v1769, 0
    %v1818 = vsel %vm387, %v1770, 0
    %v1821 = vsel %vm723, %v1771, 0
    %1823 = vmatprep.subr.mxu0 0.0
    %1824 = vmatpush1.msra.mxu0 %v1821
    %1825 = vmatprep.subr.mxu0 0.0
    %1826 = vmatpush1.msra.mxu0 0.0
    %1827 = vmatprep.subr.mxu0 0.0
    %1828 = vmatpush1.msra.mxu0 0.0
    %1829 = vmatprep.subr.mxu0 0.0
    %1830 = vmatpush1.msra.mxu0 0.0
    %1831 = vmatprep.subr.mxu0 0.0
    %1832 = vmatpush1.msra.mxu0 0.0
    %1833 = vmatprep.subr.mxu0 0.0
    %1834 = vmatpush1.msra.mxu0 0.0
    %1835 = vmatprep.subr.mxu0 0.0
    %1836 = vmatpush1.msra.mxu0 0.0
    %1837 = vmatprep.subr.mxu0 0.0
    %1838 = vmatpush1.msra.mxu0 0.0
    %1839 = vmatprep.subr.mxu0 0.0
    %1840 = vmatpush1.msra.mxu0 0.0
    %1841 = vmatprep.subr.mxu0 0.0
    %1842 = vmatpush1.msra.mxu0 0.0
    %1843 = vmatprep.subr.mxu0 0.0
    %1844 = vmatpush1.msra.mxu0 0.0
    %1845 = vmatprep.subr.mxu0 0.0
    %1846 = vmatpush1.msra.mxu0 0.0
    %1847 = vmatprep.subr.mxu0 0.0
    %1848 = vmatpush1.msra.mxu0 0.0
    %1849 = vmatprep.subr.mxu0 0.0
    %1850 = vmatpush1.msra.mxu0 0.0
    %1851 = vmatprep.subr.mxu0 0.0
    %1852 = vmatpush1.msra.mxu0 0.0
    %1853 = vmatprep.subr.mxu0 0.0
    %1854 = vmatpush1.msra.mxu0 0.0
    %1855 = vmatprep.subr.mxu0 0.0
    %1856 = vmatpush1.msra.mxu0 0.0
    %1857 = vmatprep.subr.mxu0 0.0
    %1858 = vmatpush1.msra.mxu0 0.0
    %1859 = vmatprep.subr.mxu0 0.0
    %1860 = vmatpush1.msra.mxu0 0.0
    %1861 = vmatprep.subr.mxu0 0.0
    %1862 = vmatpush1.msra.mxu0 0.0
    %1863 = vmatprep.subr.mxu0 0.0
    %1864 = vmatpush1.msra.mxu0 0.0
    %1865 = vmatprep.subr.mxu0 0.0
    %1866 = vmatpush1.msra.mxu0 0.0
    %1867 = vmatprep.subr.mxu0 0.0
    %1868 = vmatpush1.msra.mxu0 0.0
    %1869 = vmatprep.subr.mxu0 0.0
    %1870 = vmatpush1.msra.mxu0 0.0
    %1871 = vmatprep.subr.mxu0 0.0
    %1872 = vmatpush1.msra.mxu0 0.0
    %1873 = vmatprep.subr.mxu0 0.0
    %1874 = vmatpush1.msra.mxu0 0.0
    %1875 = vmatprep.subr.mxu0 0.0
    %1876 = vmatpush1.msra.mxu0 0.0
    %1877 = vmatprep.subr.mxu0 0.0
    %1878 = vmatpush1.msra.mxu0 0.0
    %1879 = vmatprep.subr.mxu0 0.0
    %1880 = vmatpush1.msra.mxu0 0.0
    %1881 = vmatprep.subr.mxu0 0.0
    %1882 = vmatpush1.msra.mxu0 0.0
    %1883 = vmatprep.subr.mxu0 0.0
    %1884 = vmatpush1.msra.mxu0 0.0
    %1885 = vmatprep.subr.mxu0 0.0
    %1886 = vmatpush1.msra.mxu0 0.0
    %1887 = vmatprep.mubr.f32.mxu0 0.0
    %1888 = vmatmul.mubr.f32.gmra.mrb[0].mxu0 %v1773
    %v1889 = vpop.f32.mrb[0].mxu0
    %v1890 = vadd.f32 0.0, %v1889
    %v1891 = vpop.f32.mrb[0].mxu0
    %1892 = vmatprep.mubr.f32.mxu0 0.0
    %1893 = vmatmul.mubr.f32.gmra.mrb[0].mxu0 %v1776
    %v1894 = vpop.f32.mrb[0].mxu0
    %v1895 = vadd.f32 0.0, %v1894
    %v1896 = vpop.f32.mrb[0].mxu0
    %1897 = vmatprep.mubr.f32.mxu0 0.0
    %1898 = vmatmul.mubr.f32.gmra.mrb[0].mxu0 %v1779
    %v1899 = vpop.f32.mrb[0].mxu0
    %v1900 = vadd.f32 0.0, %v1899
    %v1901 = vpop.f32.mrb[0].mxu0
    %1902 = vmatprep.mubr.f32.mxu0 0.0
    %1903 = vmatmul.mubr.f32.gmra.mrb[0].mxu0 %v1782
    %v1904 = vpop.f32.mrb[0].mxu0
    %v1905 = vadd.f32 0.0, %v1904
    %v1906 = vpop.f32.mrb[0].mxu0
    %1907 = vmatprep.mubr.f32.mxu0 0.0
    %1908 = vmatmul.mubr.f32.gmra.mrb[0].mxu0 %v1785
    %v1909 = vpop.f32.mrb[0].mxu0
    %v1910 = vadd.f32 0.0, %v1909
    %v1911 = vpop.f32.mrb[0].mxu0
    %1912 = vmatprep.mubr.f32.mxu0 0.0
    %1913 = vmatmul.mubr.f32.gmra.mrb[0].mxu0 %v1788
    %v1914 = vpop.f32.mrb[0].mxu0
    %v1915 = vadd.f32 0.0, %v1914
    %v1916 = vpop.f32.mrb[0].mxu0
    %1917 = vmatprep.mubr.f32.mxu0 0.0
    %1918 = vmatmul.mubr.f32.gmra.mrb[0].mxu0 %v1791
    %v1919 = vpop.f32.mrb[0].mxu0
    %v1920 = vadd.f32 0.0, %v1919
    %v1921 = vpop.f32.mrb[0].mxu0
    %1922 = vmatprep.mubr.f32.mxu0 0.0
    %1923 = vmatmul.mubr.f32.gmra.mrb[0].mxu0 %v1794
    %v1924 = vpop.f32.mrb[0].mxu0
    %v1925 = vadd.f32 0.0, %v1924
    %v1926 = vpop.f32.mrb[0].mxu0
    %1927 = vmatprep.mubr.f32.mxu0 0.0
    %1928 = vmatmul.mubr.f32.gmra.mrb[0].mxu0 %v1797
    %v1929 = vpop.f32.mrb[0].mxu0
    %v1930 = vadd.f32 0.0, %v1929
    %v1931 = vpop.f32.mrb[0].mxu0
    %1932 = vmatprep.mubr.f32.mxu0 0.0
    %1933 = vmatmul.mubr.f32.gmra.mrb[0].mxu0 %v1800
    %v1934 = vpop.f32.mrb[0].mxu0
    %v1935 = vadd.f32 0.0, %v1934
    %v1936 = vpop.f32.mrb[0].mxu0
    %1937 = vmatprep.mubr.f32.mxu0 0.0
    %1938 = vmatmul.mubr.f32.gmra.mrb[0].mxu0 %v1803
    %v1939 = vpop.f32.mrb[0].mxu0
    %v1940 = vadd.f32 0.0, %v1939
    %v1941 = vpop.f32.mrb[0].mxu0
    %1942 = vmatprep.mubr.f32.mxu0 0.0
    %1943 = vmatmul.mubr.f32.gmra.mrb[0].mxu0 %v1806
    %v1944 = vpop.f32.mrb[0].mxu0
    %v1945 = vadd.f32 0.0, %v1944
    %v1946 = vpop.f32.mrb[0].mxu0
    %1947 = vmatprep.mubr.f32.mxu0 0.0
    %1948 = vmatmul.mubr.f32.gmra.mrb[0].mxu0 %v1809
    %v1949 = vpop.f32.mrb[0].mxu0
    %v1950 = vadd.f32 0.0, %v1949
    %v1951 = vpop.f32.mrb[0].mxu0
    %1952 = vmatprep.mubr.f32.mxu0 0.0
    %1953 = vmatmul.mubr.f32.gmra.mrb[0].mxu0 %v1812
    %v1954 = vpop.f32.mrb[0].mxu0
    %v1955 = vadd.f32 0.0, %v1954
    %v1956 = vpop.f32.mrb[0].mxu0
    %1957 = vmatprep.mubr.f32.mxu0 0.0
    %1958 = vmatmul.mubr.f32.gmra.mrb[0].mxu0 %v1815
    %v1959 = vpop.f32.mrb[0].mxu0
    %v1960 = vadd.f32 0.0, %v1959
    %v1961 = vpop.f32.mrb[0].mxu0
    %1962 = vmatprep.mubr.f32.mxu0 0.0
    %1963 = vmatmul.mubr.f32.gmra.mrb[0].mxu0 %v1818
    %v1964 = vpop.f32.mrb[0].mxu0
    %v1965 = vadd.f32 0.0, %v1964
    %v1966 = vpop.f32.mrb[0].mxu0
    %1967 = vdwg.mxu0
    %v1968 = vadd.f32 %v1739, %v1890
    %v1969 = vadd.f32 %v1740, %v1895
    %v1970 = vadd.f32 %v1741, %v1900
    %v1971 = vadd.f32 %v1742, %v1905
    %v1972 = vadd.f32 %v1743, %v1910
    %v1973 = vadd.f32 %v1744, %v1915
    %v1974 = vadd.f32 %v1745, %v1920
    %v1975 = vadd.f32 %v1746, %v1925
    %v1976 = vadd.f32 %v1747, %v1930
    %v1977 = vadd.f32 %v1748, %v1935
    %v1978 = vadd.f32 %v1749, %v1940
    %v1979 = vadd.f32 %v1750, %v1945
    %v1980 = vadd.f32 %v1751, %v1950
    %v1981 = vadd.f32 %v1752, %v1955
    %v1982 = vadd.f32 %v1753, %v1960
    %v1983 = vadd.f32 %v1754, %v1965
    %s1984 = scalar_lea.vmem [#allocation2], 32
    %v1985 = vld [vmem:[%s1984] sm:$0xff]
    %v1986 = vld [vmem:[%s1984 + $0x10] sm:$0xff]
    %v1987 = vld [vmem:[%s1984 + $0x20] sm:$0xff]
    %v1988 = vld [vmem:[%s1984 + $0x30] sm:$0xff]
    %v1989 = vld [vmem:[%s1984 + $0x40] sm:$0xff]
    %v1990 = vld [vmem:[%s1984 + $0x50] sm:$0xff]
    %v1991 = vld [vmem:[%s1984 + $0x60] sm:$0xff]
    %v1992 = vld [vmem:[%s1984 + $0x70] sm:$0xff]
    %v1993 = vld [vmem:[%s1984 + $0xa0] sm:$0xff]
    %v1994 = vld [vmem:[%s1984 + $0xb0] sm:$0xff]
    %v1995 = vld [vmem:[%s1984 + $0xc0] sm:$0xff]
    %v1996 = vld [vmem:[%s1984 + $0xd0] sm:$0xff]
    %v1997 = vld [vmem:[%s1984 + $0xe0] sm:$0xff]
    %v1998 = vld [vmem:[%s1984 + $0xf0] sm:$0xff]
    %v1999 = vld [vmem:[%s1984 + $0x100] sm:$0xff]
    %v2000 = vld [vmem:[%s1984 + $0x110] sm:$0xff]
    %v2001 = vld [vmem:[%s1 + $0x38] sm:$0xf]
    %v2003 = vsel %vm387, %v1985, 0
    %v2006 = vsel %vm387, %v1986, 0
    %v2009 = vsel %vm387, %v1987, 0
    %v2012 = vsel %vm387, %v1988, 0
    %v2015 = vsel %vm387, %v1989, 0
    %v2018 = vsel %vm387, %v1990, 0
    %v2021 = vsel %vm387, %v1991, 0
    %v2024 = vsel %vm387, %v1992, 0
    %v2027 = vsel %vm387, %v1993, 0
    %v2030 = vsel %vm387, %v1994, 0
    %v2033 = vsel %vm387, %v1995, 0
    %v2036 = vsel %vm387, %v1996, 0
    %v2039 = vsel %vm387, %v1997, 0
    %v2042 = vsel %vm387, %v1998, 0
    %v2045 = vsel %vm387, %v1999, 0
    %v2048 = vsel %vm387, %v2000, 0
    %v2051 = vsel %vm723, %v2001, 0
    %2053 = vmatprep.subr.mxu0 0.0
    %2054 = vmatpush1.msra.mxu0 %v2051
    %2055 = vmatprep.subr.mxu0 0.0
    %2056 = vmatpush1.msra.mxu0 0.0
    %2057 = vmatprep.subr.mxu0 0.0
    %2058 = vmatpush1.msra.mxu0 0.0
    %2059 = vmatprep.subr.mxu0 0.0
    %2060 = vmatpush1.msra.mxu0 0.0
    %2061 = vmatprep.subr.mxu0 0.0
    %2062 = vmatpush1.msra.mxu0 0.0
    %2063 = vmatprep.subr.mxu0 0.0
    %2064 = vmatpush1.msra.mxu0 0.0
    %2065 = vmatprep.subr.mxu0 0.0
    %2066 = vmatpush1.msra.mxu0 0.0
    %2067 = vmatprep.subr.mxu0 0.0
    %2068 = vmatpush1.msra.mxu0 0.0
    %2069 = vmatprep.subr.mxu0 0.0
    %2070 = vmatpush1.msra.mxu0 0.0
    %2071 = vmatprep.subr.mxu0 0.0
    %2072 = vmatpush1.msra.mxu0 0.0
    %2073 = vmatprep.subr.mxu0 0.0
    %2074 = vmatpush1.msra.mxu0 0.0
    %2075 = vmatprep.subr.mxu0 0.0
    %2076 = vmatpush1.msra.mxu0 0.0
    %2077 = vmatprep.subr.mxu0 0.0
    %2078 = vmatpush1.msra.mxu0 0.0
    %2079 = vmatprep.subr.mxu0 0.0
    %2080 = vmatpush1.msra.mxu0 0.0
    %2081 = vmatprep.subr.mxu0 0.0
    %2082 = vmatpush1.msra.mxu0 0.0
    %2083 = vmatprep.subr.mxu0 0.0
    %2084 = vmatpush1.msra.mxu0 0.0
    %2085 = vmatprep.subr.mxu0 0.0
    %2086 = vmatpush1.msra.mxu0 0.0
    %2087 = vmatprep.subr.mxu0 0.0
    %2088 = vmatpush1.msra.mxu0 0.0
    %2089 = vmatprep.subr.mxu0 0.0
    %2090 = vmatpush1.msra.mxu0 0.0
    %2091 = vmatprep.subr.mxu0 0.0
    %2092 = vmatpush1.msra.mxu0 0.0
    %2093 = vmatprep.subr.mxu0 0.0
    %2094 = vmatpush1.msra.mxu0 0.0
    %2095 = vmatprep.subr.mxu0 0.0
    %2096 = vmatpush1.msra.mxu0 0.0
    %2097 = vmatprep.subr.mxu0 0.0
    %2098 = vmatpush1.msra.mxu0 0.0
    %2099 = vmatprep.subr.mxu0 0.0
    %2100 = vmatpush1.msra.mxu0 0.0
    %2101 = vmatprep.subr.mxu0 0.0
    %2102 = vmatpush1.msra.mxu0 0.0
    %2103 = vmatprep.subr.mxu0 0.0
    %2104 = vmatpush1.msra.mxu0 0.0
    %2105 = vmatprep.subr.mxu0 0.0
    %2106 = vmatpush1.msra.mxu0 0.0
    %2107 = vmatprep.subr.mxu0 0.0
    %2108 = vmatpush1.msra.mxu0 0.0
    %2109 = vmatprep.subr.mxu0 0.0
    %2110 = vmatpush1.msra.mxu0 0.0
    %2111 = vmatprep.subr.mxu0 0.0
    %2112 = vmatpush1.msra.mxu0 0.0
    %2113 = vmatprep.subr.mxu0 0.0
    %2114 = vmatpush1.msra.mxu0 0.0
    %2115 = vmatprep.subr.mxu0 0.0
    %2116 = vmatpush1.msra.mxu0 0.0
    %2117 = vmatprep.mubr.f32.mxu0 0.0
    %2118 = vmatmul.mubr.f32.gmra.mrb[0].mxu0 %v2003
    %v2119 = vpop.f32.mrb[0].mxu0
    %v2120 = vadd.f32 0.0, %v2119
    %v2121 = vpop.f32.mrb[0].mxu0
    %2122 = vmatprep.mubr.f32.mxu0 0.0
    %2123 = vmatmul.mubr.f32.gmra.mrb[0].mxu0 %v2006
    %v2124 = vpop.f32.mrb[0].mxu0
    %v2125 = vadd.f32 0.0, %v2124
    %v2126 = vpop.f32.mrb[0].mxu0
    %2127 = vmatprep.mubr.f32.mxu0 0.0
    %2128 = vmatmul.mubr.f32.gmra.mrb[0].mxu0 %v2009
    %v2129 = vpop.f32.mrb[0].mxu0
    %v2130 = vadd.f32 0.0, %v2129
    %v2131 = vpop.f32.mrb[0].mxu0
    %2132 = vmatprep.mubr.f32.mxu0 0.0
    %2133 = vmatmul.mubr.f32.gmra.mrb[0].mxu0 %v2012
    %v2134 = vpop.f32.mrb[0].mxu0
    %v2135 = vadd.f32 0.0, %v2134
    %v2136 = vpop.f32.mrb[0].mxu0
    %2137 = vmatprep.mubr.f32.mxu0 0.0
    %2138 = vmatmul.mubr.f32.gmra.mrb[0].mxu0 %v2015
    %v2139 = vpop.f32.mrb[0].mxu0
    %v2140 = vadd.f32 0.0, %v2139
    %v2141 = vpop.f32.mrb[0].mxu0
    %2142 = vmatprep.mubr.f32.mxu0 0.0
    %2143 = vmatmul.mubr.f32.gmra.mrb[0].mxu0 %v2018
    %v2144 = vpop.f32.mrb[0].mxu0
    %v2145 = vadd.f32 0.0, %v2144
    %v2146 = vpop.f32.mrb[0].mxu0
    %2147 = vmatprep.mubr.f32.mxu0 0.0
    %2148 = vmatmul.mubr.f32.gmra.mrb[0].mxu0 %v2021
    %v2149 = vpop.f32.mrb[0].mxu0
    %v2150 = vadd.f32 0.0, %v2149
    %v2151 = vpop.f32.mrb[0].mxu0
    %2152 = vmatprep.mubr.f32.mxu0 0.0
    %2153 = vmatmul.mubr.f32.gmra.mrb[0].mxu0 %v2024
    %v2154 = vpop.f32.mrb[0].mxu0
    %v2155 = vadd.f32 0.0, %v2154
    %v2156 = vpop.f32.mrb[0].mxu0
    %2157 = vmatprep.mubr.f32.mxu0 0.0
    %2158 = vmatmul.mubr.f32.gmra.mrb[0].mxu0 %v2027
    %v2159 = vpop.f32.mrb[0].mxu0
    %v2160 = vadd.f32 0.0, %v2159
    %v2161 = vpop.f32.mrb[0].mxu0
    %2162 = vmatprep.mubr.f32.mxu0 0.0
    %2163 = vmatmul.mubr.f32.gmra.mrb[0].mxu0 %v2030
    %v2164 = vpop.f32.mrb[0].mxu0
    %v2165 = vadd.f32 0.0, %v2164
    %v2166 = vpop.f32.mrb[0].mxu0
    %2167 = vmatprep.mubr.f32.mxu0 0.0
    %2168 = vmatmul.mubr.f32.gmra.mrb[0].mxu0 %v2033
    %v2169 = vpop.f32.mrb[0].mxu0
    %v2170 = vadd.f32 0.0, %v2169
    %v2171 = vpop.f32.mrb[0].mxu0
    %2172 = vmatprep.mubr.f32.mxu0 0.0
    %2173 = vmatmul.mubr.f32.gmra.mrb[0].mxu0 %v2036
    %v2174 = vpop.f32.mrb[0].mxu0
    %v2175 = vadd.f32 0.0, %v2174
    %v2176 = vpop.f32.mrb[0].mxu0
    %2177 = vmatprep.mubr.f32.mxu0 0.0
    %2178 = vmatmul.mubr.f32.gmra.mrb[0].mxu0 %v2039
    %v2179 = vpop.f32.mrb[0].mxu0
    %v2180 = vadd.f32 0.0, %v2179
    %v2181 = vpop.f32.mrb[0].mxu0
    %2182 = vmatprep.mubr.f32.mxu0 0.0
    %2183 = vmatmul.mubr.f32.gmra.mrb[0].mxu0 %v2042
    %v2184 = vpop.f32.mrb[0].mxu0
    %v2185 = vadd.f32 0.0, %v2184
    %v2186 = vpop.f32.mrb[0].mxu0
    %2187 = vmatprep.mubr.f32.mxu0 0.0
    %2188 = vmatmul.mubr.f32.gmra.mrb[0].mxu0 %v2045
    %v2189 = vpop.f32.mrb[0].mxu0
    %v2190 = vadd.f32 0.0, %v2189
    %v2191 = vpop.f32.mrb[0].mxu0
    %2192 = vmatprep.mubr.f32.mxu0 0.0
    %2193 = vmatmul.mubr.f32.gmra.mrb[0].mxu0 %v2048
    %v2194 = vpop.f32.mrb[0].mxu0
    %v2195 = vadd.f32 0.0, %v2194
    %v2196 = vpop.f32.mrb[0].mxu0
    %2197 = vdwg.mxu0
    %v2198 = vadd.f32 %v1968, %v2120
    %v2199 = vadd.f32 %v1969, %v2125
    %v2200 = vadd.f32 %v1970, %v2130
    %v2201 = vadd.f32 %v1971, %v2135
    %v2202 = vadd.f32 %v1972, %v2140
    %v2203 = vadd.f32 %v1973, %v2145
    %v2204 = vadd.f32 %v1974, %v2150
    %v2205 = vadd.f32 %v1975, %v2155
    %v2206 = vadd.f32 %v1976, %v2160
    %v2207 = vadd.f32 %v1977, %v2165
    %v2208 = vadd.f32 %v1978, %v2170
    %v2209 = vadd.f32 %v1979, %v2175
    %v2210 = vadd.f32 %v1980, %v2180
    %v2211 = vadd.f32 %v1981, %v2185
    %v2212 = vadd.f32 %v1982, %v2190
    %v2213 = vadd.f32 %v1983, %v2195
    %v2214 = vld [vmem:[%s1984 + $0x1] sm:$0xff]
    %v2215 = vld [vmem:[%s1984 + $0x11] sm:$0xff]
    %v2216 = vld [vmem:[%s1984 + $0x21] sm:$0xff]
    %v2217 = vld [vmem:[%s1984 + $0x31] sm:$0xff]
    %v2218 = vld [vmem:[%s1984 + $0x41] sm:$0xff]
    %v2219 = vld [vmem:[%s1984 + $0x51] sm:$0xff]
    %v2220 = vld [vmem:[%s1984 + $0x61] sm:$0xff]
    %v2221 = vld [vmem:[%s1984 + $0x71] sm:$0xff]
    %v2222 = vld [vmem:[%s1984 + $0xa1] sm:$0xff]
    %v2223 = vld [vmem:[%s1984 + $0xb1] sm:$0xff]
    %v2224 = vld [vmem:[%s1984 + $0xc1] sm:$0xff]
    %v2225 = vld [vmem:[%s1984 + $0xd1] sm:$0xff]
    %v2226 = vld [vmem:[%s1984 + $0xe1] sm:$0xff]
    %v2227 = vld [vmem:[%s1984 + $0xf1] sm:$0xff]
    %v2228 = vld [vmem:[%s1984 + $0x101] sm:$0xff]
    %v2229 = vld [vmem:[%s1984 + $0x111] sm:$0xff]
    %v2230 = vld [vmem:[%s1 + $0x40] sm:$0xf]
    %v2232 = vsel %vm387, %v2214, 0
    %v2235 = vsel %vm387, %v2215, 0
    %v2238 = vsel %vm387, %v2216, 0
    %v2241 = vsel %vm387, %v2217, 0
    %v2244 = vsel %vm387, %v2218, 0
    %v2247 = vsel %vm387, %v2219, 0
    %v2250 = vsel %vm387, %v2220, 0
    %v2253 = vsel %vm387, %v2221, 0
    %v2256 = vsel %vm387, %v2222, 0
    %v2259 = vsel %vm387, %v2223, 0
    %v2262 = vsel %vm387, %v2224, 0
    %v2265 = vsel %vm387, %v2225, 0
    %v2268 = vsel %vm387, %v2226, 0
    %v2271 = vsel %vm387, %v2227, 0
    %v2274 = vsel %vm387, %v2228, 0
    %v2277 = vsel %vm387, %v2229, 0
    %v2280 = vsel %vm723, %v2230, 0
    %2282 = vmatprep.subr.mxu0 0.0
    %2283 = vmatpush1.msra.mxu0 %v2280
    %2284 = vmatprep.subr.mxu0 0.0
    %2285 = vmatpush1.msra.mxu0 0.0
    %2286 = vmatprep.subr.mxu0 0.0
    %2287 = vmatpush1.msra.mxu0 0.0
    %2288 = vmatprep.subr.mxu0 0.0
    %2289 = vmatpush1.msra.mxu0 0.0
    %2290 = vmatprep.subr.mxu0 0.0
    %2291 = vmatpush1.msra.mxu0 0.0
    %2292 = vmatprep.subr.mxu0 0.0
    %2293 = vmatpush1.msra.mxu0 0.0
    %2294 = vmatprep.subr.mxu0 0.0
    %2295 = vmatpush1.msra.mxu0 0.0
    %2296 = vmatprep.subr.mxu0 0.0
    %2297 = vmatpush1.msra.mxu0 0.0
    %2298 = vmatprep.subr.mxu0 0.0
    %2299 = vmatpush1.msra.mxu0 0.0
    %2300 = vmatprep.subr.mxu0 0.0
    %2301 = vmatpush1.msra.mxu0 0.0
    %2302 = vmatprep.subr.mxu0 0.0
    %2303 = vmatpush1.msra.mxu0 0.0
    %2304 = vmatprep.subr.mxu0 0.0
    %2305 = vmatpush1.msra.mxu0 0.0
    %2306 = vmatprep.subr.mxu0 0.0
    %2307 = vmatpush1.msra.mxu0 0.0
    %2308 = vmatprep.subr.mxu0 0.0
    %2309 = vmatpush1.msra.mxu0 0.0
    %2310 = vmatprep.subr.mxu0 0.0
    %2311 = vmatpush1.msra.mxu0 0.0
    %2312 = vmatprep.subr.mxu0 0.0
    %2313 = vmatpush1.msra.mxu0 0.0
    %2314 = vmatprep.subr.mxu0 0.0
    %2315 = vmatpush1.msra.mxu0 0.0
    %2316 = vmatprep.subr.mxu0 0.0
    %2317 = vmatpush1.msra.mxu0 0.0
    %2318 = vmatprep.subr.mxu0 0.0
    %2319 = vmatpush1.msra.mxu0 0.0
    %2320 = vmatprep.subr.mxu0 0.0
    %2321 = vmatpush1.msra.mxu0 0.0
    %2322 = vmatprep.subr.mxu0 0.0
    %2323 = vmatpush1.msra.mxu0 0.0
    %2324 = vmatprep.subr.mxu0 0.0
    %2325 = vmatpush1.msra.mxu0 0.0
    %2326 = vmatprep.subr.mxu0 0.0
    %2327 = vmatpush1.msra.mxu0 0.0
    %2328 = vmatprep.subr.mxu0 0.0
    %2329 = vmatpush1.msra.mxu0 0.0
    %2330 = vmatprep.subr.mxu0 0.0
    %2331 = vmatpush1.msra.mxu0 0.0
    %2332 = vmatprep.subr.mxu0 0.0
    %2333 = vmatpush1.msra.mxu0 0.0
    %2334 = vmatprep.subr.mxu0 0.0
    %2335 = vmatpush1.msra.mxu0 0.0
    %2336 = vmatprep.subr.mxu0 0.0
    %2337 = vmatpush1.msra.mxu0 0.0
    %2338 = vmatprep.subr.mxu0 0.0
    %2339 = vmatpush1.msra.mxu0 0.0
    %2340 = vmatprep.subr.mxu0 0.0
    %2341 = vmatpush1.msra.mxu0 0.0
    %2342 = vmatprep.subr.mxu0 0.0
    %2343 = vmatpush1.msra.mxu0 0.0
    %2344 = vmatprep.subr.mxu0 0.0
    %2345 = vmatpush1.msra.mxu0 0.0
    %2346 = vmatprep.mubr.f32.mxu0 0.0
    %2347 = vmatmul.mubr.f32.gmra.mrb[0].mxu0 %v2232
    %v2348 = vpop.f32.mrb[0].mxu0
    %v2349 = vadd.f32 0.0, %v2348
    %v2350 = vpop.f32.mrb[0].mxu0
    %2351 = vmatprep.mubr.f32.mxu0 0.0
    %2352 = vmatmul.mubr.f32.gmra.mrb[0].mxu0 %v2235
    %v2353 = vpop.f32.mrb[0].mxu0
    %v2354 = vadd.f32 0.0, %v2353
    %v2355 = vpop.f32.mrb[0].mxu0
    %2356 = vmatprep.mubr.f32.mxu0 0.0
    %2357 = vmatmul.mubr.f32.gmra.mrb[0].mxu0 %v2238
    %v2358 = vpop.f32.mrb[0].mxu0
    %v2359 = vadd.f32 0.0, %v2358
    %v2360 = vpop.f32.mrb[0].mxu0
    %2361 = vmatprep.mubr.f32.mxu0 0.0
    %2362 = vmatmul.mubr.f32.gmra.mrb[0].mxu0 %v2241
    %v2363 = vpop.f32.mrb[0].mxu0
    %v2364 = vadd.f32 0.0, %v2363
    %v2365 = vpop.f32.mrb[0].mxu0
    %2366 = vmatprep.mubr.f32.mxu0 0.0
    %2367 = vmatmul.mubr.f32.gmra.mrb[0].mxu0 %v2244
    %v2368 = vpop.f32.mrb[0].mxu0
    %v2369 = vadd.f32 0.0, %v2368
    %v2370 = vpop.f32.mrb[0].mxu0
    %2371 = vmatprep.mubr.f32.mxu0 0.0
    %2372 = vmatmul.mubr.f32.gmra.mrb[0].mxu0 %v2247
    %v2373 = vpop.f32.mrb[0].mxu0
    %v2374 = vadd.f32 0.0, %v2373
    %v2375 = vpop.f32.mrb[0].mxu0
    %2376 = vmatprep.mubr.f32.mxu0 0.0
    %2377 = vmatmul.mubr.f32.gmra.mrb[0].mxu0 %v2250
    %v2378 = vpop.f32.mrb[0].mxu0
    %v2379 = vadd.f32 0.0, %v2378
    %v2380 = vpop.f32.mrb[0].mxu0
    %2381 = vmatprep.mubr.f32.mxu0 0.0
    %2382 = vmatmul.mubr.f32.gmra.mrb[0].mxu0 %v2253
    %v2383 = vpop.f32.mrb[0].mxu0
    %v2384 = vadd.f32 0.0, %v2383
    %v2385 = vpop.f32.mrb[0].mxu0
    %2386 = vmatprep.mubr.f32.mxu0 0.0
    %2387 = vmatmul.mubr.f32.gmra.mrb[0].mxu0 %v2256
    %v2388 = vpop.f32.mrb[0].mxu0
    %v2389 = vadd.f32 0.0, %v2388
    %v2390 = vpop.f32.mrb[0].mxu0
    %2391 = vmatprep.mubr.f32.mxu0 0.0
    %2392 = vmatmul.mubr.f32.gmra.mrb[0].mxu0 %v2259
    %v2393 = vpop.f32.mrb[0].mxu0
    %v2394 = vadd.f32 0.0, %v2393
    %v2395 = vpop.f32.mrb[0].mxu0
    %2396 = vmatprep.mubr.f32.mxu0 0.0
    %2397 = vmatmul.mubr.f32.gmra.mrb[0].mxu0 %v2262
    %v2398 = vpop.f32.mrb[0].mxu0
    %v2399 = vadd.f32 0.0, %v2398
    %v2400 = vpop.f32.mrb[0].mxu0
    %2401 = vmatprep.mubr.f32.mxu0 0.0
    %2402 = vmatmul.mubr.f32.gmra.mrb[0].mxu0 %v2265
    %v2403 = vpop.f32.mrb[0].mxu0
    %v2404 = vadd.f32 0.0, %v2403
    %v2405 = vpop.f32.mrb[0].mxu0
    %2406 = vmatprep.mubr.f32.mxu0 0.0
    %2407 = vmatmul.mubr.f32.gmra.mrb[0].mxu0 %v2268
    %v2408 = vpop.f32.mrb[0].mxu0
    %v2409 = vadd.f32 0.0, %v2408
    %v2410 = vpop.f32.mrb[0].mxu0
    %2411 = vmatprep.mubr.f32.mxu0 0.0
    %2412 = vmatmul.mubr.f32.gmra.mrb[0].mxu0 %v2271
    %v2413 = vpop.f32.mrb[0].mxu0
    %v2414 = vadd.f32 0.0, %v2413
    %v2415 = vpop.f32.mrb[0].mxu0
    %2416 = vmatprep.mubr.f32.mxu0 0.0
    %2417 = vmatmul.mubr.f32.gmra.mrb[0].mxu0 %v2274
    %v2418 = vpop.f32.mrb[0].mxu0
    %v2419 = vadd.f32 0.0, %v2418
    %v2420 = vpop.f32.mrb[0].mxu0
    %2421 = vmatprep.mubr.f32.mxu0 0.0
    %2422 = vmatmul.mubr.f32.gmra.mrb[0].mxu0 %v2277
    %v2423 = vpop.f32.mrb[0].mxu0
    %v2424 = vadd.f32 0.0, %v2423
    %v2425 = vpop.f32.mrb[0].mxu0
    %2426 = vdwg.mxu0
    %v2427 = vadd.f32 %v2198, %v2349
    %v2428 = vadd.f32 %v2199, %v2354
    %v2429 = vadd.f32 %v2200, %v2359
    %v2430 = vadd.f32 %v2201, %v2364
    %v2431 = vadd.f32 %v2202, %v2369
    %v2432 = vadd.f32 %v2203, %v2374
    %v2433 = vadd.f32 %v2204, %v2379
    %v2434 = vadd.f32 %v2205, %v2384
    %v2435 = vadd.f32 %v2206, %v2389
    %v2436 = vadd.f32 %v2207, %v2394
    %v2437 = vadd.f32 %v2208, %v2399
    %v2438 = vadd.f32 %v2209, %v2404
    %v2439 = vadd.f32 %v2210, %v2409
    %v2440 = vadd.f32 %v2211, %v2414
    %v2441 = vadd.f32 %v2212, %v2419
    %v2442 = vadd.f32 %v2213, %v2424
    %v2443 = vld [vmem:[%s1984 + $0x2] sm:$0xff]
    %v2444 = vld [vmem:[%s1984 + $0x12] sm:$0xff]
    %v2445 = vld [vmem:[%s1984 + $0x22] sm:$0xff]
    %v2446 = vld [vmem:[%s1984 + $0x32] sm:$0xff]
    %v2447 = vld [vmem:[%s1984 + $0x42] sm:$0xff]
    %v2448 = vld [vmem:[%s1984 + $0x52] sm:$0xff]
    %v2449 = vld [vmem:[%s1984 + $0x62] sm:$0xff]
    %v2450 = vld [vmem:[%s1984 + $0x72] sm:$0xff]
    %v2451 = vld [vmem:[%s1984 + $0xa2] sm:$0xff]
    %v2452 = vld [vmem:[%s1984 + $0xb2] sm:$0xff]
    %v2453 = vld [vmem:[%s1984 + $0xc2] sm:$0xff]
    %v2454 = vld [vmem:[%s1984 + $0xd2] sm:$0xff]
    %v2455 = vld [vmem:[%s1984 + $0xe2] sm:$0xff]
    %v2456 = vld [vmem:[%s1984 + $0xf2] sm:$0xff]
    %v2457 = vld [vmem:[%s1984 + $0x102] sm:$0xff]
    %v2458 = vld [vmem:[%s1984 + $0x112] sm:$0xff]
    %v2459 = vld [vmem:[%s1 + $0x48] sm:$0xf]
    %v2461 = vsel %vm387, %v2443, 0
    %v2464 = vsel %vm387, %v2444, 0
    %v2467 = vsel %vm387, %v2445, 0
    %v2470 = vsel %vm387, %v2446, 0
    %v2473 = vsel %vm387, %v2447, 0
    %v2476 = vsel %vm387, %v2448, 0
    %v2479 = vsel %vm387, %v2449, 0
    %v2482 = vsel %vm387, %v2450, 0
    %v2485 = vsel %vm387, %v2451, 0
    %v2488 = vsel %vm387, %v2452, 0
    %v2491 = vsel %vm387, %v2453, 0
    %v2494 = vsel %vm387, %v2454, 0
    %v2497 = vsel %vm387, %v2455, 0
    %v2500 = vsel %vm387, %v2456, 0
    %v2503 = vsel %vm387, %v2457, 0
    %v2506 = vsel %vm387, %v2458, 0
    %v2509 = vsel %vm723, %v2459, 0
    %2511 = vmatprep.subr.mxu0 0.0
    %2512 = vmatpush1.msra.mxu0 %v2509
    %2513 = vmatprep.subr.mxu0 0.0
    %2514 = vmatpush1.msra.mxu0 0.0
    %2515 = vmatprep.subr.mxu0 0.0
    %2516 = vmatpush1.msra.mxu0 0.0
    %2517 = vmatprep.subr.mxu0 0.0
    %2518 = vmatpush1.msra.mxu0 0.0
    %2519 = vmatprep.subr.mxu0 0.0
    %2520 = vmatpush1.msra.mxu0 0.0
    %2521 = vmatprep.subr.mxu0 0.0
    %2522 = vmatpush1.msra.mxu0 0.0
    %2523 = vmatprep.subr.mxu0 0.0
    %2524 = vmatpush1.msra.mxu0 0.0
    %2525 = vmatprep.subr.mxu0 0.0
    %2526 = vmatpush1.msra.mxu0 0.0
    %2527 = vmatprep.subr.mxu0 0.0
    %2528 = vmatpush1.msra.mxu0 0.0
    %2529 = vmatprep.subr.mxu0 0.0
    %2530 = vmatpush1.msra.mxu0 0.0
    %2531 = vmatprep.subr.mxu0 0.0
    %2532 = vmatpush1.msra.mxu0 0.0
    %2533 = vmatprep.subr.mxu0 0.0
    %2534 = vmatpush1.msra.mxu0 0.0
    %2535 = vmatprep.subr.mxu0 0.0
    %2536 = vmatpush1.msra.mxu0 0.0
    %2537 = vmatprep.subr.mxu0 0.0
    %2538 = vmatpush1.msra.mxu0 0.0
    %2539 = vmatprep.subr.mxu0 0.0
    %2540 = vmatpush1.msra.mxu0 0.0
    %2541 = vmatprep.subr.mxu0 0.0
    %2542 = vmatpush1.msra.mxu0 0.0
    %2543 = vmatprep.subr.mxu0 0.0
    %2544 = vmatpush1.msra.mxu0 0.0
    %2545 = vmatprep.subr.mxu0 0.0
    %2546 = vmatpush1.msra.mxu0 0.0
    %2547 = vmatprep.subr.mxu0 0.0
    %2548 = vmatpush1.msra.mxu0 0.0
    %2549 = vmatprep.subr.mxu0 0.0
    %2550 = vmatpush1.msra.mxu0 0.0
    %2551 = vmatprep.subr.mxu0 0.0
    %2552 = vmatpush1.msra.mxu0 0.0
    %2553 = vmatprep.subr.mxu0 0.0
    %2554 = vmatpush1.msra.mxu0 0.0
    %2555 = vmatprep.subr.mxu0 0.0
    %2556 = vmatpush1.msra.mxu0 0.0
    %2557 = vmatprep.subr.mxu0 0.0
    %2558 = vmatpush1.msra.mxu0 0.0
    %2559 = vmatprep.subr.mxu0 0.0
    %2560 = vmatpush1.msra.mxu0 0.0
    %2561 = vmatprep.subr.mxu0 0.0
    %2562 = vmatpush1.msra.mxu0 0.0
    %2563 = vmatprep.subr.mxu0 0.0
    %2564 = vmatpush1.msra.mxu0 0.0
    %2565 = vmatprep.subr.mxu0 0.0
    %2566 = vmatpush1.msra.mxu0 0.0
    %2567 = vmatprep.subr.mxu0 0.0
    %2568 = vmatpush1.msra.mxu0 0.0
    %2569 = vmatprep.subr.mxu0 0.0
    %2570 = vmatpush1.msra.mxu0 0.0
    %2571 = vmatprep.subr.mxu0 0.0
    %2572 = vmatpush1.msra.mxu0 0.0
    %2573 = vmatprep.subr.mxu0 0.0
    %2574 = vmatpush1.msra.mxu0 0.0
    %2575 = vmatprep.mubr.f32.mxu0 0.0
    %2576 = vmatmul.mubr.f32.gmra.mrb[0].mxu0 %v2461
    %v2577 = vpop.f32.mrb[0].mxu0
    %v2578 = vadd.f32 0.0, %v2577
    %v2579 = vpop.f32.mrb[0].mxu0
    %2580 = vmatprep.mubr.f32.mxu0 0.0
    %2581 = vmatmul.mubr.f32.gmra.mrb[0].mxu0 %v2464
    %v2582 = vpop.f32.mrb[0].mxu0
    %v2583 = vadd.f32 0.0, %v2582
    %v2584 = vpop.f32.mrb[0].mxu0
    %2585 = vmatprep.mubr.f32.mxu0 0.0
    %2586 = vmatmul.mubr.f32.gmra.mrb[0].mxu0 %v2467
    %v2587 = vpop.f32.mrb[0].mxu0
    %v2588 = vadd.f32 0.0, %v2587
    %v2589 = vpop.f32.mrb[0].mxu0
    %2590 = vmatprep.mubr.f32.mxu0 0.0
    %2591 = vmatmul.mubr.f32.gmra.mrb[0].mxu0 %v2470
    %v2592 = vpop.f32.mrb[0].mxu0
    %v2593 = vadd.f32 0.0, %v2592
    %v2594 = vpop.f32.mrb[0].mxu0
    %2595 = vmatprep.mubr.f32.mxu0 0.0
    %2596 = vmatmul.mubr.f32.gmra.mrb[0].mxu0 %v2473
    %v2597 = vpop.f32.mrb[0].mxu0
    %v2598 = vadd.f32 0.0, %v2597
    %v2599 = vpop.f32.mrb[0].mxu0
    %2600 = vmatprep.mubr.f32.mxu0 0.0
    %2601 = vmatmul.mubr.f32.gmra.mrb[0].mxu0 %v2476
    %v2602 = vpop.f32.mrb[0].mxu0
    %v2603 = vadd.f32 0.0, %v2602
    %v2604 = vpop.f32.mrb[0].mxu0
    %2605 = vmatprep.mubr.f32.mxu0 0.0
    %2606 = vmatmul.mubr.f32.gmra.mrb[0].mxu0 %v2479
    %v2607 = vpop.f32.mrb[0].mxu0
    %v2608 = vadd.f32 0.0, %v2607
    %v2609 = vpop.f32.mrb[0].mxu0
    %2610 = vmatprep.mubr.f32.mxu0 0.0
    %2611 = vmatmul.mubr.f32.gmra.mrb[0].mxu0 %v2482
    %v2612 = vpop.f32.mrb[0].mxu0
    %v2613 = vadd.f32 0.0, %v2612
    %v2614 = vpop.f32.mrb[0].mxu0
    %2615 = vmatprep.mubr.f32.mxu0 0.0
    %2616 = vmatmul.mubr.f32.gmra.mrb[0].mxu0 %v2485
    %v2617 = vpop.f32.mrb[0].mxu0
    %v2618 = vadd.f32 0.0, %v2617
    %v2619 = vpop.f32.mrb[0].mxu0
    %2620 = vmatprep.mubr.f32.mxu0 0.0
    %2621 = vmatmul.mubr.f32.gmra.mrb[0].mxu0 %v2488
    %v2622 = vpop.f32.mrb[0].mxu0
    %v2623 = vadd.f32 0.0, %v2622
    %v2624 = vpop.f32.mrb[0].mxu0
    %2625 = vmatprep.mubr.f32.mxu0 0.0
    %2626 = vmatmul.mubr.f32.gmra.mrb[0].mxu0 %v2491
    %v2627 = vpop.f32.mrb[0].mxu0
    %v2628 = vadd.f32 0.0, %v2627
    %v2629 = vpop.f32.mrb[0].mxu0
    %2630 = vmatprep.mubr.f32.mxu0 0.0
    %2631 = vmatmul.mubr.f32.gmra.mrb[0].mxu0 %v2494
    %v2632 = vpop.f32.mrb[0].mxu0
    %v2633 = vadd.f32 0.0, %v2632
    %v2634 = vpop.f32.mrb[0].mxu0
    %2635 = vmatprep.mubr.f32.mxu0 0.0
    %2636 = vmatmul.mubr.f32.gmra.mrb[0].mxu0 %v2497
    %v2637 = vpop.f32.mrb[0].mxu0
    %v2638 = vadd.f32 0.0, %v2637
    %v2639 = vpop.f32.mrb[0].mxu0
    %2640 = vmatprep.mubr.f32.mxu0 0.0
    %2641 = vmatmul.mubr.f32.gmra.mrb[0].mxu0 %v2500
    %v2642 = vpop.f32.mrb[0].mxu0
    %v2643 = vadd.f32 0.0, %v2642
    %v2644 = vpop.f32.mrb[0].mxu0
    %2645 = vmatprep.mubr.f32.mxu0 0.0
    %2646 = vmatmul.mubr.f32.gmra.mrb[0].mxu0 %v2503
    %v2647 = vpop.f32.mrb[0].mxu0
    %v2648 = vadd.f32 0.0, %v2647
    %v2649 = vpop.f32.mrb[0].mxu0
    %2650 = vmatprep.mubr.f32.mxu0 0.0
    %2651 = vmatmul.mubr.f32.gmra.mrb[0].mxu0 %v2506
    %v2652 = vpop.f32.mrb[0].mxu0
    %v2653 = vadd.f32 0.0, %v2652
    %v2654 = vpop.f32.mrb[0].mxu0
    %2655 = vdwg.mxu0
    %v2656 = vadd.f32 %v2427, %v2578
    %v2657 = vadd.f32 %v2428, %v2583
    %v2658 = vadd.f32 %v2429, %v2588
    %v2659 = vadd.f32 %v2430, %v2593
    %v2660 = vadd.f32 %v2431, %v2598
    %v2661 = vadd.f32 %v2432, %v2603
    %v2662 = vadd.f32 %v2433, %v2608
    %v2663 = vadd.f32 %v2434, %v2613
    %v2664 = vadd.f32 %v2435, %v2618
    %v2665 = vadd.f32 %v2436, %v2623
    %v2666 = vadd.f32 %v2437, %v2628
    %v2667 = vadd.f32 %v2438, %v2633
    %v2668 = vadd.f32 %v2439, %v2638
    %v2669 = vadd.f32 %v2440, %v2643
    %v2670 = vadd.f32 %v2441, %v2648
    %v2671 = vadd.f32 %v2442, %v2653
    %v2672 = vld [vmem:[%s2 + $0x1] sm:$0x1]
    %v2673 = vld [vmem:[%s2 + $0x5] sm:$0x1]
    %v2674 = vsel %vm387, %v2656, 0.0
    %v2675 = vsel %vm387, %v2657, 0.0
    %v2676 = vadd.f32 %v2674, %v2675
    %v2677 = vsel %vm387, %v2658, 0.0
    %v2678 = vadd.f32 %v2676, %v2677
    %v2679 = vsel %vm387, %v2659, 0.0
    %v2680 = vadd.f32 %v2678, %v2679
    %v2681 = vsel %vm387, %v2660, 0.0
    %v2682 = vadd.f32 %v2680, %v2681
    %v2683 = vsel %vm387, %v2661, 0.0
    %v2684 = vadd.f32 %v2682, %v2683
    %v2685 = vsel %vm387, %v2662, 0.0
    %v2686 = vadd.f32 %v2684, %v2685
    %v2687 = vsel %vm387, %v2663, 0.0
    %v2688 = vadd.f32 %v2686, %v2687
    %v2689 = vsel %vm387, %v2664, 0.0
    %v2690 = vadd.f32 %v2688, %v2689
    %v2691 = vsel %vm387, %v2665, 0.0
    %v2692 = vadd.f32 %v2690, %v2691
    %v2693 = vsel %vm387, %v2666, 0.0
    %v2694 = vadd.f32 %v2692, %v2693
    %v2695 = vsel %vm387, %v2667, 0.0
    %v2696 = vadd.f32 %v2694, %v2695
    %v2697 = vsel %vm387, %v2668, 0.0
    %v2698 = vadd.f32 %v2696, %v2697
    %v2699 = vsel %vm387, %v2669, 0.0
    %v2700 = vadd.f32 %v2698, %v2699
    %v2701 = vsel %vm387, %v2670, 0.0
    %v2702 = vadd.f32 %v2700, %v2701
    %v2703 = vsel %vm387, %v2671, 0.0
    %v2704 = vadd.f32 %v2702, %v2703
    %v2705 = vrot.slane %v2704, 4
    %v2706 = vadd.f32 %v2704, %v2705
    %v2707 = vrot.slane %v2706, 2
    %v2708 = vadd.f32 %v2706, %v2707
    %v2709 = vrot.slane %v2708, 1
    %v2710 = vadd.f32 %v2708, %v2709
    %v2711 = vmul.f32 %v2656, %v2656
    %v2712 = vmul.f32 %v2657, %v2657
    %v2713 = vmul.f32 %v2658, %v2658
    %v2714 = vmul.f32 %v2659, %v2659
    %v2715 = vmul.f32 %v2660, %v2660
    %v2716 = vmul.f32 %v2661, %v2661
    %v2717 = vmul.f32 %v2662, %v2662
    %v2718 = vmul.f32 %v2663, %v2663
    %v2719 = vmul.f32 %v2664, %v2664
    %v2720 = vmul.f32 %v2665, %v2665
    %v2721 = vmul.f32 %v2666, %v2666
    %v2722 = vmul.f32 %v2667, %v2667
    %v2723 = vmul.f32 %v2668, %v2668
    %v2724 = vmul.f32 %v2669, %v2669
    %v2725 = vmul.f32 %v2670, %v2670
    %v2726 = vmul.f32 %v2671, %v2671
    %v2727 = vsel %vm387, %v2711, 0.0
    %v2728 = vsel %vm387, %v2712, 0.0
    %v2729 = vadd.f32 %v2727, %v2728
    %v2730 = vsel %vm387, %v2713, 0.0
    %v2731 = vadd.f32 %v2729, %v2730
    %v2732 = vsel %vm387, %v2714, 0.0
    %v2733 = vadd.f32 %v2731, %v2732
    %v2734 = vsel %vm387, %v2715, 0.0
    %v2735 = vadd.f32 %v2733, %v2734
    %v2736 = vsel %vm387, %v2716, 0.0
    %v2737 = vadd.f32 %v2735, %v2736
    %v2738 = vsel %vm387, %v2717, 0.0
    %v2739 = vadd.f32 %v2737, %v2738
    %v2740 = vsel %vm387, %v2718, 0.0
    %v2741 = vadd.f32 %v2739, %v2740
    %v2742 = vsel %vm387, %v2719, 0.0
    %v2743 = vadd.f32 %v2741, %v2742
    %v2744 = vsel %vm387, %v2720, 0.0
    %v2745 = vadd.f32 %v2743, %v2744
    %v2746 = vsel %vm387, %v2721, 0.0
    %v2747 = vadd.f32 %v2745, %v2746
    %v2748 = vsel %vm387, %v2722, 0.0
    %v2749 = vadd.f32 %v2747, %v2748
    %v2750 = vsel %vm387, %v2723, 0.0
    %v2751 = vadd.f32 %v2749, %v2750
    %v2752 = vsel %vm387, %v2724, 0.0
    %v2753 = vadd.f32 %v2751, %v2752
    %v2754 = vsel %vm387, %v2725, 0.0
    %v2755 = vadd.f32 %v2753, %v2754
    %v2756 = vsel %vm387, %v2726, 0.0
    %v2757 = vadd.f32 %v2755, %v2756
    %v2758 = vrot.slane %v2757, 4
    %v2759 = vadd.f32 %v2757, %v2758
    %v2760 = vrot.slane %v2759, 2
    %v2761 = vadd.f32 %v2759, %v2760
    %v2762 = vrot.slane %v2761, 1
    %v2763 = vadd.f32 %v2761, %v2762
    %v2764 = vmul.f32 %v2710, 0.0078125
    %v2765 = vmul.f32 %v2763, 0.0078125
    %v2766 = vmul.f32 %v2764, %v2764
    %v2767 = vsub.f32 %v2765, %v2766
    %v2768 = vmax.f32 %v2767, 0.0
    %v2769 = vsub.f32 %v2656, %v2764
    %v2770 = vsub.f32 %v2657, %v2764
    %v2771 = vsub.f32 %v2658, %v2764
    %v2772 = vsub.f32 %v2659, %v2764
    %v2773 = vsub.f32 %v2660, %v2764
    %v2774 = vsub.f32 %v2661, %v2764
    %v2775 = vsub.f32 %v2662, %v2764
    %v2776 = vsub.f32 %v2663, %v2764
    %v2777 = vsub.f32 %v2664, %v2764
    %v2778 = vsub.f32 %v2665, %v2764
    %v2779 = vsub.f32 %v2666, %v2764
    %v2780 = vsub.f32 %v2667, %v2764
    %v2781 = vsub.f32 %v2668, %v2764
    %v2782 = vsub.f32 %v2669, %v2764
    %v2783 = vsub.f32 %v2670, %v2764
    %v2784 = vsub.f32 %v2671, %v2764
    %v2785 = vadd.f32 %v2768, 1e-05
    %v2786 = vrsqrt.pop %v2785
    %v2787 = vmul.f32 %v2769, %v2786
    %v2788 = vmul.f32 %v2770, %v2786
    %v2789 = vmul.f32 %v2771, %v2786
    %v2790 = vmul.f32 %v2772, %v2786
    %v2791 = vmul.f32 %v2773, %v2786
    %v2792 = vmul.f32 %v2774, %v2786
    %v2793 = vmul.f32 %v2775, %v2786
    %v2794 = vmul.f32 %v2776, %v2786
    %v2795 = vmul.f32 %v2777, %v2786
    %v2796 = vmul.f32 %v2778, %v2786
    %v2797 = vmul.f32 %v2779, %v2786
    %v2798 = vmul.f32 %v2780, %v2786
    %v2799 = vmul.f32 %v2781, %v2786
    %v2800 = vmul.f32 %v2782, %v2786
    %v2801 = vmul.f32 %v2783, %v2786
    %v2802 = vmul.f32 %v2784, %v2786
    %v2803 = vlaneseq
    %v2804 = vshrl.u32 %v2803, 7
    %v2805 = vsub.s32 0, %v2804
    %v2806 = vrot.slane %v2672, %v2805
    %v2807 = vmul.f32 %v2787, %v2806
    %v2808 = vmul.f32 %v2788, %v2806
    %v2809 = vmul.f32 %v2789, %v2806
    %v2810 = vmul.f32 %v2790, %v2806
    %v2811 = vmul.f32 %v2791, %v2806
    %v2812 = vmul.f32 %v2792, %v2806
    %v2813 = vmul.f32 %v2793, %v2806
    %v2814 = vmul.f32 %v2794, %v2806
    %v2815 = vmul.f32 %v2795, %v2806
    %v2816 = vmul.f32 %v2796, %v2806
    %v2817 = vmul.f32 %v2797, %v2806
    %v2818 = vmul.f32 %v2798, %v2806
    %v2819 = vmul.f32 %v2799, %v2806
    %v2820 = vmul.f32 %v2800, %v2806
    %v2821 = vmul.f32 %v2801, %v2806
    %v2822 = vmul.f32 %v2802, %v2806
    %v2823 = vlaneseq
    %v2824 = vshrl.u32 %v2823, 7
    %v2825 = vsub.s32 0, %v2824
    %v2826 = vrot.slane %v2673, %v2825
    %v2827 = vadd.f32 %v2807, %v2826
    %v2828 = vadd.f32 %v2808, %v2826
    %v2829 = vadd.f32 %v2809, %v2826
    %v2830 = vadd.f32 %v2810, %v2826
    %v2831 = vadd.f32 %v2811, %v2826
    %v2832 = vadd.f32 %v2812, %v2826
    %v2833 = vadd.f32 %v2813, %v2826
    %v2834 = vadd.f32 %v2814, %v2826
    %v2835 = vadd.f32 %v2815, %v2826
    %v2836 = vadd.f32 %v2816, %v2826
    %v2837 = vadd.f32 %v2817, %v2826
    %v2838 = vadd.f32 %v2818, %v2826
    %v2839 = vadd.f32 %v2819, %v2826
    %v2840 = vadd.f32 %v2820, %v2826
    %v2841 = vadd.f32 %v2821, %v2826
    %v2842 = vadd.f32 %v2822, %v2826
    %v2843 = vmax.f32 %v2827, 0.0
    %v2844 = vmax.f32 %v2828, 0.0
    %v2845 = vmax.f32 %v2829, 0.0
    %v2846 = vmax.f32 %v2830, 0.0
    %v2847 = vmax.f32 %v2831, 0.0
    %v2848 = vmax.f32 %v2832, 0.0
    %v2849 = vmax.f32 %v2833, 0.0
    %v2850 = vmax.f32 %v2834, 0.0
    %v2851 = vmax.f32 %v2835, 0.0
    %v2852 = vmax.f32 %v2836, 0.0
    %v2853 = vmax.f32 %v2837, 0.0
    %v2854 = vmax.f32 %v2838, 0.0
    %v2855 = vmax.f32 %v2839, 0.0
    %v2856 = vmax.f32 %v2840, 0.0
    %v2857 = vmax.f32 %v2841, 0.0
    %v2858 = vmax.f32 %v2842, 0.0
    %v2859 = vld [vmem:[%s1 + $0x50] sm:$0xf]
    %v2861 = vsel %vm387, %v2843, 0
    %v2864 = vsel %vm387, %v2844, 0
    %v2867 = vsel %vm387, %v2845, 0
    %v2870 = vsel %vm387, %v2846, 0
    %v2873 = vsel %vm387, %v2847, 0
    %v2876 = vsel %vm387, %v2848, 0
    %v2879 = vsel %vm387, %v2849, 0
    %v2882 = vsel %vm387, %v2850, 0
    %v2885 = vsel %vm387, %v2851, 0
    %v2888 = vsel %vm387, %v2852, 0
    %v2891 = vsel %vm387, %v2853, 0
    %v2894 = vsel %vm387, %v2854, 0
    %v2897 = vsel %vm387, %v2855, 0
    %v2900 = vsel %vm387, %v2856, 0
    %v2903 = vsel %vm387, %v2857, 0
    %v2906 = vsel %vm387, %v2858, 0
    %v2909 = vsel %vm723, %v2859, 0
    %2911 = vmatprep.subr.mxu0 0.0
    %2912 = vmatpush1.msra.mxu0 %v2909
    %2913 = vmatprep.subr.mxu0 0.0
    %2914 = vmatpush1.msra.mxu0 0.0
    %2915 = vmatprep.subr.mxu0 0.0
    %2916 = vmatpush1.msra.mxu0 0.0
    %2917 = vmatprep.subr.mxu0 0.0
    %2918 = vmatpush1.msra.mxu0 0.0
    %2919 = vmatprep.subr.mxu0 0.0
    %2920 = vmatpush1.msra.mxu0 0.0
    %2921 = vmatprep.subr.mxu0 0.0
    %2922 = vmatpush1.msra.mxu0 0.0
    %2923 = vmatprep.subr.mxu0 0.0
    %2924 = vmatpush1.msra.mxu0 0.0
    %2925 = vmatprep.subr.mxu0 0.0
    %2926 = vmatpush1.msra.mxu0 0.0
    %2927 = vmatprep.subr.mxu0 0.0
    %2928 = vmatpush1.msra.mxu0 0.0
    %2929 = vmatprep.subr.mxu0 0.0
    %2930 = vmatpush1.msra.mxu0 0.0
    %2931 = vmatprep.subr.mxu0 0.0
    %2932 = vmatpush1.msra.mxu0 0.0
    %2933 = vmatprep.subr.mxu0 0.0
    %2934 = vmatpush1.msra.mxu0 0.0
    %2935 = vmatprep.subr.mxu0 0.0
    %2936 = vmatpush1.msra.mxu0 0.0
    %2937 = vmatprep.subr.mxu0 0.0
    %2938 = vmatpush1.msra.mxu0 0.0
    %2939 = vmatprep.subr.mxu0 0.0
    %2940 = vmatpush1.msra.mxu0 0.0
    %2941 = vmatprep.subr.mxu0 0.0
    %2942 = vmatpush1.msra.mxu0 0.0
    %2943 = vmatprep.subr.mxu0 0.0
    %2944 = vmatpush1.msra.mxu0 0.0
    %2945 = vmatprep.subr.mxu0 0.0
    %2946 = vmatpush1.msra.mxu0 0.0
    %2947 = vmatprep.subr.mxu0 0.0
    %2948 = vmatpush1.msra.mxu0 0.0
    %2949 = vmatprep.subr.mxu0 0.0
    %2950 = vmatpush1.msra.mxu0 0.0
    %2951 = vmatprep.subr.mxu0 0.0
    %2952 = vmatpush1.msra.mxu0 0.0
    %2953 = vmatprep.subr.mxu0 0.0
    %2954 = vmatpush1.msra.mxu0 0.0
    %2955 = vmatprep.subr.mxu0 0.0
    %2956 = vmatpush1.msra.mxu0 0.0
    %2957 = vmatprep.subr.mxu0 0.0
    %2958 = vmatpush1.msra.mxu0 0.0
    %2959 = vmatprep.subr.mxu0 0.0
    %2960 = vmatpush1.msra.mxu0 0.0
    %2961 = vmatprep.subr.mxu0 0.0
    %2962 = vmatpush1.msra.mxu0 0.0
    %2963 = vmatprep.subr.mxu0 0.0
    %2964 = vmatpush1.msra.mxu0 0.0
    %2965 = vmatprep.subr.mxu0 0.0
    %2966 = vmatpush1.msra.mxu0 0.0
    %2967 = vmatprep.subr.mxu0 0.0
    %2968 = vmatpush1.msra.mxu0 0.0
    %2969 = vmatprep.subr.mxu0 0.0
    %2970 = vmatpush1.msra.mxu0 0.0
    %2971 = vmatprep.subr.mxu0 0.0
    %2972 = vmatpush1.msra.mxu0 0.0
    %2973 = vmatprep.subr.mxu0 0.0
    %2974 = vmatpush1.msra.mxu0 0.0
    %2975 = vmatprep.mubr.f32.mxu0 0.0
    %2976 = vmatmul.mubr.f32.gmra.mrb[0].mxu0 %v2861
    %v2977 = vpop.f32.mrb[0].mxu0
    %v2978 = vadd.f32 0.0, %v2977
    %v2979 = vpop.f32.mrb[0].mxu0
    %2980 = vmatprep.mubr.f32.mxu0 0.0
    %2981 = vmatmul.mubr.f32.gmra.mrb[0].mxu0 %v2864
    %v2982 = vpop.f32.mrb[0].mxu0
    %v2983 = vadd.f32 0.0, %v2982
    %v2984 = vpop.f32.mrb[0].mxu0
    %2985 = vmatprep.mubr.f32.mxu0 0.0
    %2986 = vmatmul.mubr.f32.gmra.mrb[0].mxu0 %v2867
    %v2987 = vpop.f32.mrb[0].mxu0
    %v2988 = vadd.f32 0.0, %v2987
    %v2989 = vpop.f32.mrb[0].mxu0
    %2990 = vmatprep.mubr.f32.mxu0 0.0
    %2991 = vmatmul.mubr.f32.gmra.mrb[0].mxu0 %v2870
    %v2992 = vpop.f32.mrb[0].mxu0
    %v2993 = vadd.f32 0.0, %v2992
    %v2994 = vpop.f32.mrb[0].mxu0
    %2995 = vmatprep.mubr.f32.mxu0 0.0
    %2996 = vmatmul.mubr.f32.gmra.mrb[0].mxu0 %v2873
    %v2997 = vpop.f32.mrb[0].mxu0
    %v2998 = vadd.f32 0.0, %v2997
    %v2999 = vpop.f32.mrb[0].mxu0
    %3000 = vmatprep.mubr.f32.mxu0 0.0
    %3001 = vmatmul.mubr.f32.gmra.mrb[0].mxu0 %v2876
    %v3002 = vpop.f32.mrb[0].mxu0
    %v3003 = vadd.f32 0.0, %v3002
    %v3004 = vpop.f32.mrb[0].mxu0
    %3005 = vmatprep.mubr.f32.mxu0 0.0
    %3006 = vmatmul.mubr.f32.gmra.mrb[0].mxu0 %v2879
    %v3007 = vpop.f32.mrb[0].mxu0
    %v3008 = vadd.f32 0.0, %v3007
    %v3009 = vpop.f32.mrb[0].mxu0
    %3010 = vmatprep.mubr.f32.mxu0 0.0
    %3011 = vmatmul.mubr.f32.gmra.mrb[0].mxu0 %v2882
    %v3012 = vpop.f32.mrb[0].mxu0
    %v3013 = vadd.f32 0.0, %v3012
    %v3014 = vpop.f32.mrb[0].mxu0
    %3015 = vmatprep.mubr.f32.mxu0 0.0
    %3016 = vmatmul.mubr.f32.gmra.mrb[0].mxu0 %v2885
    %v3017 = vpop.f32.mrb[0].mxu0
    %v3018 = vadd.f32 0.0, %v3017
    %v3019 = vpop.f32.mrb[0].mxu0
    %3020 = vmatprep.mubr.f32.mxu0 0.0
    %3021 = vmatmul.mubr.f32.gmra.mrb[0].mxu0 %v2888
    %v3022 = vpop.f32.mrb[0].mxu0
    %v3023 = vadd.f32 0.0, %v3022
    %v3024 = vpop.f32.mrb[0].mxu0
    %3025 = vmatprep.mubr.f32.mxu0 0.0
    %3026 = vmatmul.mubr.f32.gmra.mrb[0].mxu0 %v2891
    %v3027 = vpop.f32.mrb[0].mxu0
    %v3028 = vadd.f32 0.0, %v3027
    %v3029 = vpop.f32.mrb[0].mxu0
    %3030 = vmatprep.mubr.f32.mxu0 0.0
    %3031 = vmatmul.mubr.f32.gmra.mrb[0].mxu0 %v2894
    %v3032 = vpop.f32.mrb[0].mxu0
    %v3033 = vadd.f32 0.0, %v3032
    %v3034 = vpop.f32.mrb[0].mxu0
    %3035 = vmatprep.mubr.f32.mxu0 0.0
    %3036 = vmatmul.mubr.f32.gmra.mrb[0].mxu0 %v2897
    %v3037 = vpop.f32.mrb[0].mxu0
    %v3038 = vadd.f32 0.0, %v3037
    %v3039 = vpop.f32.mrb[0].mxu0
    %3040 = vmatprep.mubr.f32.mxu0 0.0
    %3041 = vmatmul.mubr.f32.gmra.mrb[0].mxu0 %v2900
    %v3042 = vpop.f32.mrb[0].mxu0
    %v3043 = vadd.f32 0.0, %v3042
    %v3044 = vpop.f32.mrb[0].mxu0
    %3045 = vmatprep.mubr.f32.mxu0 0.0
    %3046 = vmatmul.mubr.f32.gmra.mrb[0].mxu0 %v2903
    %v3047 = vpop.f32.mrb[0].mxu0
    %v3048 = vadd.f32 0.0, %v3047
    %v3049 = vpop.f32.mrb[0].mxu0
    %3050 = vmatprep.mubr.f32.mxu0 0.0
    %3051 = vmatmul.mubr.f32.gmra.mrb[0].mxu0 %v2906
    %v3052 = vpop.f32.mrb[0].mxu0
    %v3053 = vadd.f32 0.0, %v3052
    %v3054 = vpop.f32.mrb[0].mxu0
    %3055 = vdwg.mxu0
    %v3056 = vld [vmem:[%s2 + $0x2] sm:$0x1]
    %v3057 = vld [vmem:[%s2 + $0x6] sm:$0x1]
    %v3058 = vsel %vm191, %v2978, 0.0
    %v3059 = vsel %vm191, %v2983, 0.0
    %v3060 = vadd.f32 %v3058, %v3059
    %v3061 = vsel %vm191, %v2988, 0.0
    %v3062 = vadd.f32 %v3060, %v3061
    %v3063 = vsel %vm191, %v2993, 0.0
    %v3064 = vadd.f32 %v3062, %v3063
    %v3065 = vsel %vm191, %v2998, 0.0
    %v3066 = vadd.f32 %v3064, %v3065
    %v3067 = vsel %vm191, %v3003, 0.0
    %v3068 = vadd.f32 %v3066, %v3067
    %v3069 = vsel %vm191, %v3008, 0.0
    %v3070 = vadd.f32 %v3068, %v3069
    %v3071 = vsel %vm191, %v3013, 0.0
    %v3072 = vadd.f32 %v3070, %v3071
    %v3073 = vsel %vm191, %v3018, 0.0
    %v3074 = vadd.f32 %v3072, %v3073
    %v3075 = vsel %vm191, %v3023, 0.0
    %v3076 = vadd.f32 %v3074, %v3075
    %v3077 = vsel %vm191, %v3028, 0.0
    %v3078 = vadd.f32 %v3076, %v3077
    %v3079 = vsel %vm191, %v3033, 0.0
    %v3080 = vadd.f32 %v3078, %v3079
    %v3081 = vsel %vm191, %v3038, 0.0
    %v3082 = vadd.f32 %v3080, %v3081
    %v3083 = vsel %vm191, %v3043, 0.0
    %v3084 = vadd.f32 %v3082, %v3083
    %v3085 = vsel %vm191, %v3048, 0.0
    %v3086 = vadd.f32 %v3084, %v3085
    %v3087 = vsel %vm191, %v3053, 0.0
    %v3088 = vadd.f32 %v3086, %v3087
    %v3089 = vrot.slane %v3088, 4
    %v3090 = vadd.f32 %v3088, %v3089
    %v3091 = vrot.slane %v3090, 2
    %v3092 = vadd.f32 %v3090, %v3091
    %v3093 = vrot.slane %v3092, 1
    %v3094 = vadd.f32 %v3092, %v3093
    %v3095 = vmul.f32 %v2978, %v2978
    %v3096 = vmul.f32 %v2983, %v2983
    %v3097 = vmul.f32 %v2988, %v2988
    %v3098 = vmul.f32 %v2993, %v2993
    %v3099 = vmul.f32 %v2998, %v2998
    %v3100 = vmul.f32 %v3003, %v3003
    %v3101 = vmul.f32 %v3008, %v3008
    %v3102 = vmul.f32 %v3013, %v3013
    %v3103 = vmul.f32 %v3018, %v3018
    %v3104 = vmul.f32 %v3023, %v3023
    %v3105 = vmul.f32 %v3028, %v3028
    %v3106 = vmul.f32 %v3033, %v3033
    %v3107 = vmul.f32 %v3038, %v3038
    %v3108 = vmul.f32 %v3043, %v3043
    %v3109 = vmul.f32 %v3048, %v3048
    %v3110 = vmul.f32 %v3053, %v3053
    %v3111 = vsel %vm191, %v3095, 0.0
    %v3112 = vsel %vm191, %v3096, 0.0
    %v3113 = vadd.f32 %v3111, %v3112
    %v3114 = vsel %vm191, %v3097, 0.0
    %v3115 = vadd.f32 %v3113, %v3114
    %v3116 = vsel %vm191, %v3098, 0.0
    %v3117 = vadd.f32 %v3115, %v3116
    %v3118 = vsel %vm191, %v3099, 0.0
    %v3119 = vadd.f32 %v3117, %v3118
    %v3120 = vsel %vm191, %v3100, 0.0
    %v3121 = vadd.f32 %v3119, %v3120
    %v3122 = vsel %vm191, %v3101, 0.0
    %v3123 = vadd.f32 %v3121, %v3122
    %v3124 = vsel %vm191, %v3102, 0.0
    %v3125 = vadd.f32 %v3123, %v3124
    %v3126 = vsel %vm191, %v3103, 0.0
    %v3127 = vadd.f32 %v3125, %v3126
    %v3128 = vsel %vm191, %v3104, 0.0
    %v3129 = vadd.f32 %v3127, %v3128
    %v3130 = vsel %vm191, %v3105, 0.0
    %v3131 = vadd.f32 %v3129, %v3130
    %v3132 = vsel %vm191, %v3106, 0.0
    %v3133 = vadd.f32 %v3131, %v3132
    %v3134 = vsel %vm191, %v3107, 0.0
    %v3135 = vadd.f32 %v3133, %v3134
    %v3136 = vsel %vm191, %v3108, 0.0
    %v3137 = vadd.f32 %v3135, %v3136
    %v3138 = vsel %vm191, %v3109, 0.0
    %v3139 = vadd.f32 %v3137, %v3138
    %v3140 = vsel %vm191, %v3110, 0.0
    %v3141 = vadd.f32 %v3139, %v3140
    %v3142 = vrot.slane %v3141, 4
    %v3143 = vadd.f32 %v3141, %v3142
    %v3144 = vrot.slane %v3143, 2
    %v3145 = vadd.f32 %v3143, %v3144
    %v3146 = vrot.slane %v3145, 1
    %v3147 = vadd.f32 %v3145, %v3146
    %v3148 = vmul.f32 %v3094, 0.0078125
    %v3149 = vmul.f32 %v3147, 0.0078125
    %v3150 = vmul.f32 %v3148, %v3148
    %v3151 = vsub.f32 %v3149, %v3150
    %v3152 = vmax.f32 %v3151, 0.0
    %v3153 = vsub.f32 %v2978, %v3148
    %v3154 = vsub.f32 %v2983, %v3148
    %v3155 = vsub.f32 %v2988, %v3148
    %v3156 = vsub.f32 %v2993, %v3148
    %v3157 = vsub.f32 %v2998, %v3148
    %v3158 = vsub.f32 %v3003, %v3148
    %v3159 = vsub.f32 %v3008, %v3148
    %v3160 = vsub.f32 %v3013, %v3148
    %v3161 = vsub.f32 %v3018, %v3148
    %v3162 = vsub.f32 %v3023, %v3148
    %v3163 = vsub.f32 %v3028, %v3148
    %v3164 = vsub.f32 %v3033, %v3148
    %v3165 = vsub.f32 %v3038, %v3148
    %v3166 = vsub.f32 %v3043, %v3148
    %v3167 = vsub.f32 %v3048, %v3148
    %v3168 = vsub.f32 %v3053, %v3148
    %v3169 = vadd.f32 %v3152, 1e-05
    %v3170 = vrsqrt.pop %v3169
    %v3171 = vmul.f32 %v3153, %v3170
    %v3172 = vmul.f32 %v3154, %v3170
    %v3173 = vmul.f32 %v3155, %v3170
    %v3174 = vmul.f32 %v3156, %v3170
    %v3175 = vmul.f32 %v3157, %v3170
    %v3176 = vmul.f32 %v3158, %v3170
    %v3177 = vmul.f32 %v3159, %v3170
    %v3178 = vmul.f32 %v3160, %v3170
    %v3179 = vmul.f32 %v3161, %v3170
    %v3180 = vmul.f32 %v3162, %v3170
    %v3181 = vmul.f32 %v3163, %v3170
    %v3182 = vmul.f32 %v3164, %v3170
    %v3183 = vmul.f32 %v3165, %v3170
    %v3184 = vmul.f32 %v3166, %v3170
    %v3185 = vmul.f32 %v3167, %v3170
    %v3186 = vmul.f32 %v3168, %v3170
    %v3187 = vlaneseq
    %v3188 = vshrl.u32 %v3187, 7
    %v3189 = vsub.s32 0, %v3188
    %v3190 = vrot.slane %v3056, %v3189
    %v3191 = vmul.f32 %v3171, %v3190
    %v3192 = vmul.f32 %v3172, %v3190
    %v3193 = vmul.f32 %v3173, %v3190
    %v3194 = vmul.f32 %v3174, %v3190
    %v3195 = vmul.f32 %v3175, %v3190
    %v3196 = vmul.f32 %v3176, %v3190
    %v3197 = vmul.f32 %v3177, %v3190
    %v3198 = vmul.f32 %v3178, %v3190
    %v3199 = vmul.f32 %v3179, %v3190
    %v3200 = vmul.f32 %v3180, %v3190
    %v3201 = vmul.f32 %v3181, %v3190
    %v3202 = vmul.f32 %v3182, %v3190
    %v3203 = vmul.f32 %v3183, %v3190
    %v3204 = vmul.f32 %v3184, %v3190
    %v3205 = vmul.f32 %v3185, %v3190
    %v3206 = vmul.f32 %v3186, %v3190
    %v3207 = vlaneseq
    %v3208 = vshrl.u32 %v3207, 7
    %v3209 = vsub.s32 0, %v3208
    %v3210 = vrot.slane %v3057, %v3209
    %v3211 = vadd.f32 %v3191, %v3210
    %v3212 = vadd.f32 %v3192, %v3210
    %v3213 = vadd.f32 %v3193, %v3210
    %v3214 = vadd.f32 %v3194, %v3210
    %v3215 = vadd.f32 %v3195, %v3210
    %v3216 = vadd.f32 %v3196, %v3210
    %v3217 = vadd.f32 %v3197, %v3210
    %v3218 = vadd.f32 %v3198, %v3210
    %v3219 = vadd.f32 %v3199, %v3210
    %v3220 = vadd.f32 %v3200, %v3210
    %v3221 = vadd.f32 %v3201, %v3210
    %v3222 = vadd.f32 %v3202, %v3210
    %v3223 = vadd.f32 %v3203, %v3210
    %v3224 = vadd.f32 %v3204, %v3210
    %v3225 = vadd.f32 %v3205, %v3210
    %v3226 = vadd.f32 %v3206, %v3210
    %v3227 = vmax.f32 %v3211, 0.0
    %v3228 = vmax.f32 %v3212, 0.0
    %v3229 = vmax.f32 %v3213, 0.0
    %v3230 = vmax.f32 %v3214, 0.0
    %v3231 = vmax.f32 %v3215, 0.0
    %v3232 = vmax.f32 %v3216, 0.0
    %v3233 = vmax.f32 %v3217, 0.0
    %v3234 = vmax.f32 %v3218, 0.0
    %v3235 = vmax.f32 %v3219, 0.0
    %v3236 = vmax.f32 %v3220, 0.0
    %v3237 = vmax.f32 %v3221, 0.0
    %v3238 = vmax.f32 %v3222, 0.0
    %v3239 = vmax.f32 %v3223, 0.0
    %v3240 = vmax.f32 %v3224, 0.0
    %v3241 = vmax.f32 %v3225, 0.0
    %v3242 = vmax.f32 %v3226, 0.0
    %v3243 = vld [vmem:[%s1 + $0x58] sm:$0xff]
    %v3244 = vadd.f32 %v3227, %v174
    %v3245 = vadd.f32 %v3228, %v175
    %v3246 = vadd.f32 %v3229, %v176
    %v3247 = vadd.f32 %v3230, %v177
    %v3248 = vadd.f32 %v3231, %v178
    %v3249 = vadd.f32 %v3232, %v179
    %v3250 = vadd.f32 %v3233, %v180
    %v3251 = vadd.f32 %v3234, %v181
    %v3252 = vadd.f32 %v3235, %v182
    %v3253 = vadd.f32 %v3236, %v183
    %v3254 = vadd.f32 %v3237, %v184
    %v3255 = vadd.f32 %v3238, %v185
    %v3256 = vadd.f32 %v3239, %v186
    %v3257 = vadd.f32 %v3240, %v187
    %v3258 = vadd.f32 %v3241, %v188
    %v3259 = vadd.f32 %v3242, %v189
    %v3261 = vsel %vm191, %v3244, 0
    %v3264 = vsel %vm191, %v3245, 0
    %v3267 = vsel %vm191, %v3246, 0
    %v3270 = vsel %vm191, %v3247, 0
    %v3273 = vsel %vm191, %v3248, 0
    %v3276 = vsel %vm191, %v3249, 0
    %v3279 = vsel %vm191, %v3250, 0
    %v3282 = vsel %vm191, %v3251, 0
    %v3285 = vsel %vm191, %v3252, 0
    %v3288 = vsel %vm191, %v3253, 0
    %v3291 = vsel %vm191, %v3254, 0
    %v3294 = vsel %vm191, %v3255, 0
    %v3297 = vsel %vm191, %v3256, 0
    %v3300 = vsel %vm191, %v3257, 0
    %v3303 = vsel %vm191, %v3258, 0
    %v3306 = vsel %vm191, %v3259, 0
    %3308 = vmatprep.subr.mxu0 0.0
    %3309 = vmatpush1.msra.mxu0 %v3243
    %3310 = vmatprep.subr.mxu0 0.0
    %3311 = vmatpush1.msra.mxu0 0.0
    %3312 = vmatprep.subr.mxu0 0.0
    %3313 = vmatpush1.msra.mxu0 0.0
    %3314 = vmatprep.subr.mxu0 0.0
    %3315 = vmatpush1.msra.mxu0 0.0
    %3316 = vmatprep.subr.mxu0 0.0
    %3317 = vmatpush1.msra.mxu0 0.0
    %3318 = vmatprep.subr.mxu0 0.0
    %3319 = vmatpush1.msra.mxu0 0.0
    %3320 = vmatprep.subr.mxu0 0.0
    %3321 = vmatpush1.msra.mxu0 0.0
    %3322 = vmatprep.subr.mxu0 0.0
    %3323 = vmatpush1.msra.mxu0 0.0
    %3324 = vmatprep.subr.mxu0 0.0
    %3325 = vmatpush1.msra.mxu0 0.0
    %3326 = vmatprep.subr.mxu0 0.0
    %3327 = vmatpush1.msra.mxu0 0.0
    %3328 = vmatprep.subr.mxu0 0.0
    %3329 = vmatpush1.msra.mxu0 0.0
    %3330 = vmatprep.subr.mxu0 0.0
    %3331 = vmatpush1.msra.mxu0 0.0
    %3332 = vmatprep.subr.mxu0 0.0
    %3333 = vmatpush1.msra.mxu0 0.0
    %3334 = vmatprep.subr.mxu0 0.0
    %3335 = vmatpush1.msra.mxu0 0.0
    %3336 = vmatprep.subr.mxu0 0.0
    %3337 = vmatpush1.msra.mxu0 0.0
    %3338 = vmatprep.subr.mxu0 0.0
    %3339 = vmatpush1.msra.mxu0 0.0
    %3340 = vmatprep.subr.mxu0 0.0
    %3341 = vmatpush1.msra.mxu0 0.0
    %3342 = vmatprep.subr.mxu0 0.0
    %3343 = vmatpush1.msra.mxu0 0.0
    %3344 = vmatprep.subr.mxu0 0.0
    %3345 = vmatpush1.msra.mxu0 0.0
    %3346 = vmatprep.subr.mxu0 0.0
    %3347 = vmatpush1.msra.mxu0 0.0
    %3348 = vmatprep.subr.mxu0 0.0
    %3349 = vmatpush1.msra.mxu0 0.0
    %3350 = vmatprep.subr.mxu0 0.0
    %3351 = vmatpush1.msra.mxu0 0.0
    %3352 = vmatprep.subr.mxu0 0.0
    %3353 = vmatpush1.msra.mxu0 0.0
    %3354 = vmatprep.subr.mxu0 0.0
    %3355 = vmatpush1.msra.mxu0 0.0
    %3356 = vmatprep.subr.mxu0 0.0
    %3357 = vmatpush1.msra.mxu0 0.0
    %3358 = vmatprep.subr.mxu0 0.0
    %3359 = vmatpush1.msra.mxu0 0.0
    %3360 = vmatprep.subr.mxu0 0.0
    %3361 = vmatpush1.msra.mxu0 0.0
    %3362 = vmatprep.subr.mxu0 0.0
    %3363 = vmatpush1.msra.mxu0 0.0
    %3364 = vmatprep.subr.mxu0 0.0
    %3365 = vmatpush1.msra.mxu0 0.0
    %3366 = vmatprep.subr.mxu0 0.0
    %3367 = vmatpush1.msra.mxu0 0.0
    %3368 = vmatprep.subr.mxu0 0.0
    %3369 = vmatpush1.msra.mxu0 0.0
    %3370 = vmatprep.subr.mxu0 0.0
    %3371 = vmatpush1.msra.mxu0 0.0
    %3372 = vmatprep.mubr.f32.mxu0 0.0
    %3373 = vmatmul.mubr.f32.gmra.mrb[0].mxu0 %v3261
    %v3374 = vpop.f32.mrb[0].mxu0
    %v3375 = vadd.f32 0.0, %v3374
    %v3376 = vpop.f32.mrb[0].mxu0
    %3377 = vmatprep.mubr.f32.mxu0 0.0
    %3378 = vmatmul.mubr.f32.gmra.mrb[0].mxu0 %v3264
    %v3379 = vpop.f32.mrb[0].mxu0
    %v3380 = vadd.f32 0.0, %v3379
    %v3381 = vpop.f32.mrb[0].mxu0
    %3382 = vmatprep.mubr.f32.mxu0 0.0
    %3383 = vmatmul.mubr.f32.gmra.mrb[0].mxu0 %v3267
    %v3384 = vpop.f32.mrb[0].mxu0
    %v3385 = vadd.f32 0.0, %v3384
    %v3386 = vpop.f32.mrb[0].mxu0
    %3387 = vmatprep.mubr.f32.mxu0 0.0
    %3388 = vmatmul.mubr.f32.gmra.mrb[0].mxu0 %v3270
    %v3389 = vpop.f32.mrb[0].mxu0
    %v3390 = vadd.f32 0.0, %v3389
    %v3391 = vpop.f32.mrb[0].mxu0
    %3392 = vmatprep.mubr.f32.mxu0 0.0
    %3393 = vmatmul.mubr.f32.gmra.mrb[0].mxu0 %v3273
    %v3394 = vpop.f32.mrb[0].mxu0
    %v3395 = vadd.f32 0.0, %v3394
    %v3396 = vpop.f32.mrb[0].mxu0
    %3397 = vmatprep.mubr.f32.mxu0 0.0
    %3398 = vmatmul.mubr.f32.gmra.mrb[0].mxu0 %v3276
    %v3399 = vpop.f32.mrb[0].mxu0
    %v3400 = vadd.f32 0.0, %v3399
    %v3401 = vpop.f32.mrb[0].mxu0
    %3402 = vmatprep.mubr.f32.mxu0 0.0
    %3403 = vmatmul.mubr.f32.gmra.mrb[0].mxu0 %v3279
    %v3404 = vpop.f32.mrb[0].mxu0
    %v3405 = vadd.f32 0.0, %v3404
    %v3406 = vpop.f32.mrb[0].mxu0
    %3407 = vmatprep.mubr.f32.mxu0 0.0
    %3408 = vmatmul.mubr.f32.gmra.mrb[0].mxu0 %v3282
    %v3409 = vpop.f32.mrb[0].mxu0
    %v3410 = vadd.f32 0.0, %v3409
    %v3411 = vpop.f32.mrb[0].mxu0
    %3412 = vmatprep.mubr.f32.mxu0 0.0
    %3413 = vmatmul.mubr.f32.gmra.mrb[0].mxu0 %v3285
    %v3414 = vpop.f32.mrb[0].mxu0
    %v3415 = vadd.f32 0.0, %v3414
    %v3416 = vpop.f32.mrb[0].mxu0
    %3417 = vmatprep.mubr.f32.mxu0 0.0
    %3418 = vmatmul.mubr.f32.gmra.mrb[0].mxu0 %v3288
    %v3419 = vpop.f32.mrb[0].mxu0
    %v3420 = vadd.f32 0.0, %v3419
    %v3421 = vpop.f32.mrb[0].mxu0
    %3422 = vmatprep.mubr.f32.mxu0 0.0
    %3423 = vmatmul.mubr.f32.gmra.mrb[0].mxu0 %v3291
    %v3424 = vpop.f32.mrb[0].mxu0
    %v3425 = vadd.f32 0.0, %v3424
    %v3426 = vpop.f32.mrb[0].mxu0
    %3427 = vmatprep.mubr.f32.mxu0 0.0
    %3428 = vmatmul.mubr.f32.gmra.mrb[0].mxu0 %v3294
    %v3429 = vpop.f32.mrb[0].mxu0
    %v3430 = vadd.f32 0.0, %v3429
    %v3431 = vpop.f32.mrb[0].mxu0
    %3432 = vmatprep.mubr.f32.mxu0 0.0
    %3433 = vmatmul.mubr.f32.gmra.mrb[0].mxu0 %v3297
    %v3434 = vpop.f32.mrb[0].mxu0
    %v3435 = vadd.f32 0.0, %v3434
    %v3436 = vpop.f32.mrb[0].mxu0
    %3437 = vmatprep.mubr.f32.mxu0 0.0
    %3438 = vmatmul.mubr.f32.gmra.mrb[0].mxu0 %v3300
    %v3439 = vpop.f32.mrb[0].mxu0
    %v3440 = vadd.f32 0.0, %v3439
    %v3441 = vpop.f32.mrb[0].mxu0
    %3442 = vmatprep.mubr.f32.mxu0 0.0
    %3443 = vmatmul.mubr.f32.gmra.mrb[0].mxu0 %v3303
    %v3444 = vpop.f32.mrb[0].mxu0
    %v3445 = vadd.f32 0.0, %v3444
    %v3446 = vpop.f32.mrb[0].mxu0
    %3447 = vmatprep.mubr.f32.mxu0 0.0
    %3448 = vmatmul.mubr.f32.gmra.mrb[0].mxu0 %v3306
    %v3449 = vpop.f32.mrb[0].mxu0
    %v3450 = vadd.f32 0.0, %v3449
    %v3451 = vpop.f32.mrb[0].mxu0
    %3452 = vdwg.mxu0
    %v3453 = vld [vmem:[%s2 + $0x3] sm:$0x1]
    %v3454 = vld [vmem:[%s2 + $0x7] sm:$0x1]
    %vm3455 = vcmask 130048
    %v3456 = vsel %vm3455, %v3375, 0.0
    %v3457 = vsel %vm3455, %v3380, 0.0
    %v3458 = vadd.f32 %v3456, %v3457
    %v3459 = vsel %vm3455, %v3385, 0.0
    %v3460 = vadd.f32 %v3458, %v3459
    %v3461 = vsel %vm3455, %v3390, 0.0
    %v3462 = vadd.f32 %v3460, %v3461
    %v3463 = vsel %vm3455, %v3395, 0.0
    %v3464 = vadd.f32 %v3462, %v3463
    %v3465 = vsel %vm3455, %v3400, 0.0
    %v3466 = vadd.f32 %v3464, %v3465
    %v3467 = vsel %vm3455, %v3405, 0.0
    %v3468 = vadd.f32 %v3466, %v3467
    %v3469 = vsel %vm3455, %v3410, 0.0
    %v3470 = vadd.f32 %v3468, %v3469
    %v3471 = vsel %vm3455, %v3415, 0.0
    %v3472 = vadd.f32 %v3470, %v3471
    %v3473 = vsel %vm3455, %v3420, 0.0
    %v3474 = vadd.f32 %v3472, %v3473
    %v3475 = vsel %vm3455, %v3425, 0.0
    %v3476 = vadd.f32 %v3474, %v3475
    %v3477 = vsel %vm3455, %v3430, 0.0
    %v3478 = vadd.f32 %v3476, %v3477
    %v3479 = vsel %vm3455, %v3435, 0.0
    %v3480 = vadd.f32 %v3478, %v3479
    %v3481 = vsel %vm3455, %v3440, 0.0
    %v3482 = vadd.f32 %v3480, %v3481
    %v3483 = vsel %vm3455, %v3445, 0.0
    %v3484 = vadd.f32 %v3482, %v3483
    %v3485 = vsel %vm3455, %v3450, 0.0
    %v3486 = vadd.f32 %v3484, %v3485
    %v3487 = vrot.slane %v3486, 4
    %v3488 = vadd.f32 %v3486, %v3487
    %v3489 = vrot.slane %v3488, 2
    %v3490 = vadd.f32 %v3488, %v3489
    %v3491 = vrot.slane %v3490, 1
    %v3492 = vadd.f32 %v3490, %v3491
    %v3493 = vmul.f32 %v3375, %v3375
    %v3494 = vmul.f32 %v3380, %v3380
    %v3495 = vmul.f32 %v3385, %v3385
    %v3496 = vmul.f32 %v3390, %v3390
    %v3497 = vmul.f32 %v3395, %v3395
    %v3498 = vmul.f32 %v3400, %v3400
    %v3499 = vmul.f32 %v3405, %v3405
    %v3500 = vmul.f32 %v3410, %v3410
    %v3501 = vmul.f32 %v3415, %v3415
    %v3502 = vmul.f32 %v3420, %v3420
    %v3503 = vmul.f32 %v3425, %v3425
    %v3504 = vmul.f32 %v3430, %v3430
    %v3505 = vmul.f32 %v3435, %v3435
    %v3506 = vmul.f32 %v3440, %v3440
    %v3507 = vmul.f32 %v3445, %v3445
    %v3508 = vmul.f32 %v3450, %v3450
    %v3509 = vsel %vm3455, %v3493, 0.0
    %v3510 = vsel %vm3455, %v3494, 0.0
    %v3511 = vadd.f32 %v3509, %v3510
    %v3512 = vsel %vm3455, %v3495, 0.0
    %v3513 = vadd.f32 %v3511, %v3512
    %v3514 = vsel %vm3455, %v3496, 0.0
    %v3515 = vadd.f32 %v3513, %v3514
    %v3516 = vsel %vm3455, %v3497, 0.0
    %v3517 = vadd.f32 %v3515, %v3516
    %v3518 = vsel %vm3455, %v3498, 0.0
    %v3519 = vadd.f32 %v3517, %v3518
    %v3520 = vsel %vm3455, %v3499, 0.0
    %v3521 = vadd.f32 %v3519, %v3520
    %v3522 = vsel %vm3455, %v3500, 0.0
    %v3523 = vadd.f32 %v3521, %v3522
    %v3524 = vsel %vm3455, %v3501, 0.0
    %v3525 = vadd.f32 %v3523, %v3524
    %v3526 = vsel %vm3455, %v3502, 0.0
    %v3527 = vadd.f32 %v3525, %v3526
    %v3528 = vsel %vm3455, %v3503, 0.0
    %v3529 = vadd.f32 %v3527, %v3528
    %v3530 = vsel %vm3455, %v3504, 0.0
    %v3531 = vadd.f32 %v3529, %v3530
    %v3532 = vsel %vm3455, %v3505, 0.0
    %v3533 = vadd.f32 %v3531, %v3532
    %v3534 = vsel %vm3455, %v3506, 0.0
    %v3535 = vadd.f32 %v3533, %v3534
    %v3536 = vsel %vm3455, %v3507, 0.0
    %v3537 = vadd.f32 %v3535, %v3536
    %v3538 = vsel %vm3455, %v3508, 0.0
    %v3539 = vadd.f32 %v3537, %v3538
    %v3540 = vrot.slane %v3539, 4
    %v3541 = vadd.f32 %v3539, %v3540
    %v3542 = vrot.slane %v3541, 2
    %v3543 = vadd.f32 %v3541, %v3542
    %v3544 = vrot.slane %v3543, 1
    %v3545 = vadd.f32 %v3543, %v3544
    %v3546 = vmul.f32 %v3492, 0.0078125
    %v3547 = vmul.f32 %v3545, 0.0078125
    %v3548 = vmul.f32 %v3546, %v3546
    %v3549 = vsub.f32 %v3547, %v3548
    %v3550 = vmax.f32 %v3549, 0.0
    %v3551 = vsub.f32 %v3375, %v3546
    %v3552 = vsub.f32 %v3380, %v3546
    %v3553 = vsub.f32 %v3385, %v3546
    %v3554 = vsub.f32 %v3390, %v3546
    %v3555 = vsub.f32 %v3395, %v3546
    %v3556 = vsub.f32 %v3400, %v3546
    %v3557 = vsub.f32 %v3405, %v3546
    %v3558 = vsub.f32 %v3410, %v3546
    %v3559 = vsub.f32 %v3415, %v3546
    %v3560 = vsub.f32 %v3420, %v3546
    %v3561 = vsub.f32 %v3425, %v3546
    %v3562 = vsub.f32 %v3430, %v3546
    %v3563 = vsub.f32 %v3435, %v3546
    %v3564 = vsub.f32 %v3440, %v3546
    %v3565 = vsub.f32 %v3445, %v3546
    %v3566 = vsub.f32 %v3450, %v3546
    %v3567 = vadd.f32 %v3550, 1e-05
    %v3568 = vrsqrt.pop %v3567
    %v3569 = vmul.f32 %v3551, %v3568
    %v3570 = vmul.f32 %v3552, %v3568
    %v3571 = vmul.f32 %v3553, %v3568
    %v3572 = vmul.f32 %v3554, %v3568
    %v3573 = vmul.f32 %v3555, %v3568
    %v3574 = vmul.f32 %v3556, %v3568
    %v3575 = vmul.f32 %v3557, %v3568
    %v3576 = vmul.f32 %v3558, %v3568
    %v3577 = vmul.f32 %v3559, %v3568
    %v3578 = vmul.f32 %v3560, %v3568
    %v3579 = vmul.f32 %v3561, %v3568
    %v3580 = vmul.f32 %v3562, %v3568
    %v3581 = vmul.f32 %v3563, %v3568
    %v3582 = vmul.f32 %v3564, %v3568
    %v3583 = vmul.f32 %v3565, %v3568
    %v3584 = vmul.f32 %v3566, %v3568
    %v3585 = vlaneseq
    %v3586 = vshrl.u32 %v3585, 7
    %v3587 = vsub.s32 0, %v3586
    %v3588 = vrot.slane %v3453, %v3587
    %v3589 = vmul.f32 %v3569, %v3588
    %v3590 = vmul.f32 %v3570, %v3588
    %v3591 = vmul.f32 %v3571, %v3588
    %v3592 = vmul.f32 %v3572, %v3588
    %v3593 = vmul.f32 %v3573, %v3588
    %v3594 = vmul.f32 %v3574, %v3588
    %v3595 = vmul.f32 %v3575, %v3588
    %v3596 = vmul.f32 %v3576, %v3588
    %v3597 = vmul.f32 %v3577, %v3588
    %v3598 = vmul.f32 %v3578, %v3588
    %v3599 = vmul.f32 %v3579, %v3588
    %v3600 = vmul.f32 %v3580, %v3588
    %v3601 = vmul.f32 %v3581, %v3588
    %v3602 = vmul.f32 %v3582, %v3588
    %v3603 = vmul.f32 %v3583, %v3588
    %v3604 = vmul.f32 %v3584, %v3588
    %v3605 = vlaneseq
    %v3606 = vshrl.u32 %v3605, 7
    %v3607 = vsub.s32 0, %v3606
    %v3608 = vrot.slane %v3454, %v3607
    %v3609 = vadd.f32 %v3589, %v3608
    %v3610 = vadd.f32 %v3590, %v3608
    %v3611 = vadd.f32 %v3591, %v3608
    %v3612 = vadd.f32 %v3592, %v3608
    %v3613 = vadd.f32 %v3593, %v3608
    %v3614 = vadd.f32 %v3594, %v3608
    %v3615 = vadd.f32 %v3595, %v3608
    %v3616 = vadd.f32 %v3596, %v3608
    %v3617 = vadd.f32 %v3597, %v3608
    %v3618 = vadd.f32 %v3598, %v3608
    %v3619 = vadd.f32 %v3599, %v3608
    %v3620 = vadd.f32 %v3600, %v3608
    %v3621 = vadd.f32 %v3601, %v3608
    %v3622 = vadd.f32 %v3602, %v3608
    %v3623 = vadd.f32 %v3603, %v3608
    %v3624 = vadd.f32 %v3604, %v3608
    %v3625 = vmax.f32 %v3609, 0.0
    %v3626 = vmax.f32 %v3610, 0.0
    %v3627 = vmax.f32 %v3611, 0.0
    %v3628 = vmax.f32 %v3612, 0.0
    %v3629 = vmax.f32 %v3613, 0.0
    %v3630 = vmax.f32 %v3614, 0.0
    %v3631 = vmax.f32 %v3615, 0.0
    %v3632 = vmax.f32 %v3616, 0.0
    %v3633 = vmax.f32 %v3617, 0.0
    %v3634 = vmax.f32 %v3618, 0.0
    %v3635 = vmax.f32 %v3619, 0.0
    %v3636 = vmax.f32 %v3620, 0.0
    %v3637 = vmax.f32 %v3621, 0.0
    %v3638 = vmax.f32 %v3622, 0.0
    %v3639 = vmax.f32 %v3623, 0.0
    %v3640 = vmax.f32 %v3624, 0.0
    %3641 = vxpose.xlu0.b32.start [1/16] %v3625, 128
    %3642 = vxpose.xlu0.b32.cont [2/16] %v3626, 128
    %3643 = vxpose.xlu0.b32.cont [3/16] %v3627, 128
    %3644 = vxpose.xlu0.b32.cont [4/16] %v3628, 128
    %3645 = vxpose.xlu0.b32.cont [5/16] %v3629, 128
    %3646 = vxpose.xlu0.b32.cont [6/16] %v3630, 128
    %3647 = vxpose.xlu0.b32.cont [7/16] %v3631, 128
    %3648 = vxpose.xlu0.b32.cont [8/16] %v3632, 128
    %3649 = vxpose.xlu0.b32.cont [9/16] 0.0, 128
    %3650 = vxpose.xlu0.b32.cont [10/16] 0.0, 128
    %3651 = vxpose.xlu0.b32.cont [11/16] 0.0, 128
    %3652 = vxpose.xlu0.b32.cont [12/16] 0.0, 128
    %3653 = vxpose.xlu0.b32.cont [13/16] 0.0, 128
    %3654 = vxpose.xlu0.b32.cont [14/16] 0.0, 128
    %3655 = vxpose.xlu0.b32.cont [15/16] 0.0, 128
    %3656 = vxpose.xlu0.b32.end [16/16] 0.0, 128
    %v3657 = vpop.trf.xlu0
    %v3658 = vpop.trf.xlu0
    %v3659 = vpop.trf.xlu0
    %v3660 = vpop.trf.xlu0
    %v3661 = vpop.trf.xlu0
    %v3662 = vpop.trf.xlu0
    %v3663 = vpop.trf.xlu0
    %v3664 = vpop.trf.xlu0
    %v3665 = vpop.trf.xlu0
    %v3666 = vpop.trf.xlu0
    %v3667 = vpop.trf.xlu0
    %v3668 = vpop.trf.xlu0
    %v3669 = vpop.trf.xlu0
    %v3670 = vpop.trf.xlu0
    %v3671 = vpop.trf.xlu0
    %v3672 = vpop.trf.xlu0
    %3673 = vxpose.xlu0.b32.start [1/16] %v3633, 128
    %3674 = vxpose.xlu0.b32.cont [2/16] %v3634, 128
    %3675 = vxpose.xlu0.b32.cont [3/16] %v3635, 128
    %3676 = vxpose.xlu0.b32.cont [4/16] %v3636, 128
    %3677 = vxpose.xlu0.b32.cont [5/16] %v3637, 128
    %3678 = vxpose.xlu0.b32.cont [6/16] %v3638, 128
    %3679 = vxpose.xlu0.b32.cont [7/16] %v3639, 128
    %3680 = vxpose.xlu0.b32.cont [8/16] %v3640, 128
    %3681 = vxpose.xlu0.b32.cont [9/16] 0.0, 128
    %3682 = vxpose.xlu0.b32.cont [10/16] 0.0, 128
    %3683 = vxpose.xlu0.b32.cont [11/16] 0.0, 128
    %3684 = vxpose.xlu0.b32.cont [12/16] 0.0, 128
    %3685 = vxpose.xlu0.b32.cont [13/16] 0.0, 128
    %3686 = vxpose.xlu0.b32.cont [14/16] 0.0, 128
    %3687 = vxpose.xlu0.b32.cont [15/16] 0.0, 128
    %3688 = vxpose.xlu0.b32.end [16/16] 0.0, 128
    %v3689 = vpop.trf.xlu0
    %v3690 = vpop.trf.xlu0
    %v3691 = vpop.trf.xlu0
    %v3692 = vpop.trf.xlu0
    %v3693 = vpop.trf.xlu0
    %v3694 = vpop.trf.xlu0
    %v3695 = vpop.trf.xlu0
    %v3696 = vpop.trf.xlu0
    %v3697 = vpop.trf.xlu0
    %v3698 = vpop.trf.xlu0
    %v3699 = vpop.trf.xlu0
    %v3700 = vpop.trf.xlu0
    %v3701 = vpop.trf.xlu0
    %v3702 = vpop.trf.xlu0
    %v3703 = vpop.trf.xlu0
    %v3704 = vpop.trf.xlu0
    %vm3705 = vcmask 523264
    %3706 = vst.msk [vmem:[#allocation3] sm:$0xff] %vm3705, %v3657
    %3707 = vst.msk [vmem:[#allocation3 + $0x8] sm:$0xff] %vm3705, %v3658
    %3708 = vst.msk [vmem:[#allocation3 + $0x10] sm:$0xff] %vm3705, %v3689
    %3709 = vst.msk [vmem:[#allocation3 + $0x18] sm:$0xff] %vm3705, %v3690
    // Predicated region
    $region14: #{tpu_custom_call.1} parent=1 // pred_check
      _
    $region15: #{tpu_custom_call.1} parent=1 // pred_check_branch
      %3711 = sbr.rel (0) target = $region17
    $region16: #{tpu_custom_call.1} parent=1 // pred_region
      %s3713 = ssub.s32 512, 512
      %3714 = vsyncadd [#allocation4], %s3713
      %s3715 = sshll.u32 [#allocation3], 4
      %s3716 = int_to_ptr.vmem [resolvable:$true] %s3715
      %3721 = dma.vmem_to_hbm [thread:$0]  %s3716, 512, %s3, [#allocation4], 128, 128, 8
    $region17: #{tpu_custom_call.1} parent=1 // pred_fallthru
      _
    // Predicated region
    $region18: #{tpu_custom_call.1} parent=1 // pred_check
      _
    $region19: #{tpu_custom_call.1} parent=1 // pred_check_branch
      %3723 = sbr.rel (0) target = $region21
    $region20: #{tpu_custom_call.1} parent=1 // pred_region
      %3724 = dma.done [#allocation4], 512
    $region21: #{tpu_custom_call.1} parent=1 // pred_fallthru
      _
    %3725 = vsyncpa [#allocation4], 1

</llo_original>
